<compile_context>
chip_gen: v5e
topology: v5e:2x2
jax: 0.10.0
libtpu: 0.0.40
codegen_flags: <defaults>
</compile_context>

<pallas_src>
import functools

import jax
import jax.numpy as jnp
from jax.experimental import pallas as pl
from jax.experimental.pallas import tpu as pltpu


def _fusion_kernel(x_ref, xf_ref, w1_ref, b1_ref, wmx_ref, wmf_ref, bm_ref,
                   wd_ref, bd_ref, e_ref, s2_ref, t2_ref, o_ref, f1pad_ref,
                   *, H, W, C, K):
    HW = H * W
    KK = K * K
    c = K // 2

    # ---- proj1: 1x1 conv with BN1 folded in (bf16 MXU, f32 accumulate) ----
    x = x_ref[0].reshape(HW, C)                                    # (HW, C) f32
    feat1 = (
        jnp.dot(x.astype(jnp.bfloat16), w1_ref[...],
                preferred_element_type=jnp.float32)
        + b1_ref[...]
    )                                                              # (HW, C) f32

    # ---- zero-padded feat1 in VMEM scratch (ref patches for conv_offset) ----
    f1pad_ref[...] = jnp.zeros_like(f1pad_ref)
    f1pad_ref[c:c + H, c:c + W, :] = feat1.reshape(H, W, C)

    xf = xf_ref[0]                                                 # (Hp, Wp, C)
    f1p = f1pad_ref[...]                                           # (Hp, Wp, C)

    # ---- im2col: build the 9 tap slices once, reuse for both convolutions ----
    x_taps = []
    f_taps = []
    for k in range(KK):
        kh, kw = k // K, k % K
        x_taps.append(xf[kh:kh + H, kw:kw + W, :].reshape(HW, C))
        f_taps.append(f1p[kh:kh + H, kw:kw + W, :].reshape(HW, C))
    xP = jnp.concatenate(x_taps, axis=-1)                          # (HW, 9C) f32
    fP = jnp.concatenate(f_taps, axis=-1)                          # (HW, 9C) f32

    # ---- conv_offset, mask output channels only (zero-offset DCN path) ----
    # TODO(synk): bilinear sampling at non-zero deformable offsets (per-pixel
    # gather) is not implemented; the module zero-initializes conv_offset, so
    # the offsets are exactly zero and integer-grid sampling below is exact.
    logits = (
        jnp.dot(xP.astype(jnp.bfloat16), wmx_ref[...],
                preferred_element_type=jnp.float32)
        + jnp.dot(fP.astype(jnp.bfloat16), wmf_ref[...],
                  preferred_element_type=jnp.float32)
        + bm_ref[...]
    )                                                              # (HW, 9)
    mask = jax.nn.sigmoid(logits)                                  # (HW, 9) f32

    # ---- modulated (zero-offset) deformable conv: one K=9C matmul ----
    # Expand mask per tap group with a 0/1 selector matmul (exact in f32).
    mask_rep = jnp.dot(mask, e_ref[...],
                       preferred_element_type=jnp.float32)         # (HW, 9C)
    xPm = (xP * mask_rep).astype(jnp.bfloat16)
    acc = (
        jnp.dot(xPm, wd_ref[...], preferred_element_type=jnp.float32)
        + bd_ref[...]
    )                                                              # (HW, C) f32

    # ---- folded BN2 + residual add + ReLU ----
    y = acc * s2_ref[...] + t2_ref[...]
    out = jnp.maximum(feat1 + y, 0.0)
    o_ref[...] = out.reshape(1, H, W, C).astype(o_ref.dtype)


def feature_flip_fusion(x, w1, b1, bn1, w_off, b_off, w_dcn, b_dcn, bn2,
                        *, eps=1e-5):
    """x: (N, H, W, C) float32.  Parameters in the PyTorch layouts of the module."""
    N, H, W, C = x.shape
    K = w_dcn.shape[-1]
    KK = K * K
    g1, beta1, m1, v1 = bn1
    g2, beta2, m2, v2 = bn2

    # ---- fold BN1 into the 1x1 conv (bf16 weight, f32 bias) ----
    s1 = g1 / jnp.sqrt(v1 + eps)
    w1_eff = (w1.T * s1[None, :]).astype(jnp.bfloat16)       # (C_in, C_out)
    b1_eff = ((b1 - m1) * s1 + beta1)[None, :]               # (1, C)

    # ---- conv_offset: keep only the 9 mask output channels ----
    wom = jnp.transpose(w_off[2 * KK:], (2, 3, 1, 0)).reshape(KK, 2 * C, KK)
    wmx = wom[:, :C, :].reshape(KK * C, KK).astype(jnp.bfloat16)   # flipped-x half
    wmf = wom[:, C:, :].reshape(KK * C, KK).astype(jnp.bfloat16)   # feat1 half
    bm = b_off[2 * KK:][None, :]                                   # (1, 9)

    # ---- deformable conv weight as one (9*C_in, C_out) im2col matrix ----
    wd = jnp.transpose(w_dcn, (2, 3, 1, 0)).reshape(KK * C, C).astype(jnp.bfloat16)
    bd = b_dcn[None, :]

    # ---- fold BN2 into a post-conv scale/shift ----
    s2 = (g2 / jnp.sqrt(v2 + eps))[None, :]
    t2 = (beta2 - m2 * g2 / jnp.sqrt(v2 + eps))[None, :]

    # 0/1 selector: mask (HW, 9) @ E (9, 9C) -> per-tap-group scales.
    e_mat = jnp.repeat(jnp.eye(KK, dtype=jnp.float32), C, axis=1)

    # Width flip + zero pad once in XLA (single extra pass over x).
    c = K // 2
    xf_pad = jnp.pad(x[:, :, ::-1, :], ((0, 0), (c, c), (c, c), (0, 0)))
    Hp, Wp = H + 2 * c, W + 2 * c

    kernel = functools.partial(_fusion_kernel, H=H, W=W, C=C, K=K)
    return pl.pallas_call(
        kernel,
        out_shape=jax.ShapeDtypeStruct((N, H, W, C), jnp.float32),
        grid_spec=pltpu.PrefetchScalarGridSpec(
            num_scalar_prefetch=0,
            grid=(N,),
            in_specs=[
                pl.BlockSpec((1, H, W, C), lambda n: (n, 0, 0, 0)),     # x
                pl.BlockSpec((1, Hp, Wp, C), lambda n: (n, 0, 0, 0)),   # flip+pad x
                pl.BlockSpec((C, C), lambda n: (0, 0)),                 # w1 (bf16)
                pl.BlockSpec((1, C), lambda n: (0, 0)),                 # b1_eff
                pl.BlockSpec((KK * C, KK), lambda n: (0, 0)),           # wmx (bf16)
                pl.BlockSpec((KK * C, KK), lambda n: (0, 0)),           # wmf (bf16)
                pl.BlockSpec((1, KK), lambda n: (0, 0)),                # bm
                pl.BlockSpec((KK * C, C), lambda n: (0, 0)),            # wd (bf16)
                pl.BlockSpec((1, C), lambda n: (0, 0)),                 # bd
                pl.BlockSpec((KK, KK * C), lambda n: (0, 0)),           # selector E
                pl.BlockSpec((1, C), lambda n: (0, 0)),                 # s2
                pl.BlockSpec((1, C), lambda n: (0, 0)),                 # t2
            ],
            out_specs=pl.BlockSpec((1, H, W, C), lambda n: (n, 0, 0, 0)),
            scratch_shapes=[pltpu.VMEM((Hp, Wp, C), jnp.float32)],
        ),
        compiler_params=pltpu.CompilerParams(
            dimension_semantics=("parallel",),
        ),
    )(x, xf_pad, w1_eff, b1_eff, wmx, wmf, bm, wd, bd, e_mat, s2, t2)


if __name__ == "__main__":
    N, C, H, W, K = 2, 32, 16, 16, 3
    KK = K * K
    eps = 1e-5

    keys = jax.random.split(jax.random.PRNGKey(0), 12)

    # Input feature in the PyTorch NCHW convention.
    x_nchw = jax.random.normal(keys[0], (N, C, H, W), jnp.float32)

    # ---- deterministic synthetic parameters (shapes from module __init__) ----
    # proj1: Conv2d(C, C, 1) + BatchNorm2d(C)
    w1 = jax.random.normal(keys[1], (C, C), jnp.float32) / jnp.sqrt(jnp.float32(C))
    b1 = 0.1 * jax.random.normal(keys[2], (C,), jnp.float32)
    g1 = 1.0 + 0.1 * jax.random.normal(keys[3], (C,), jnp.float32)
    beta1 = 0.1 * jax.random.normal(keys[4], (C,), jnp.float32)
    m1 = 0.1 * jax.random.normal(keys[5], (C,), jnp.float32)
    v1 = jnp.abs(jax.random.normal(keys[6], (C,), jnp.float32)) + 0.5

    # proj2_conv (DCN_v2_Ref): conv_offset zero-initialized (module init_weights)
    w_off_pt = jnp.zeros((3 * KK, 2 * C, K, K), jnp.float32)
    b_off_pt = jnp.zeros((3 * KK,), jnp.float32)
    # deformable conv weight ~ U(-stdv, stdv), bias zero (module init_weights)
    stdv = 1.0 / jnp.sqrt(jnp.float32(C * KK))
    w_dcn_pt = jax.random.uniform(keys[7], (C, C, K, K), jnp.float32, -stdv, stdv)
    b_dcn = jnp.zeros((C,), jnp.float32)

    # proj2_norm: BatchNorm2d(C)
    g2 = 1.0 + 0.1 * jax.random.normal(keys[8], (C,), jnp.float32)
    beta2 = 0.1 * jax.random.normal(keys[9], (C,), jnp.float32)
    m2 = 0.1 * jax.random.normal(keys[10], (C,), jnp.float32)
    v2 = jnp.abs(jax.random.normal(keys[11], (C,), jnp.float32)) + 0.5

    # ---- run the fused Pallas kernel (NHWC) ----
    x = jnp.transpose(x_nchw, (0, 2, 3, 1))
    out = feature_flip_fusion(
        x, w1, b1, (g1, beta1, m1, v1), w_off_pt, b_off_pt,
        w_dcn_pt, b_dcn, (g2, beta2, m2, v2), eps=eps,
    )
    out = jax.block_until_ready(out)

    # ---- pure-f32 JAX reference of the full forward pass (eval-mode BN) ----
    pad = ((0, 0), (K // 2, K // 2), (K // 2, K // 2), (0, 0))
    w_off_r = jnp.transpose(w_off_pt, (2, 3, 1, 0)).reshape(KK, 2 * C, 3 * KK)
    w_dcn_r = jnp.transpose(w_dcn_pt, (2, 3, 1, 0)).reshape(KK, C, C)

    def reference():
        y1 = jnp.einsum("nhwc,oc->nhwo", x, w1) + b1
        feat1_r = (y1 - m1) / jnp.sqrt(v1 + eps) * g1 + beta1
        xfp = jnp.pad(x[:, :, ::-1, :], pad)
        f1p = jnp.pad(feat1_r, pad)
        om = jnp.zeros((N, H, W, 3 * KK), jnp.float32) + b_off_pt
        for k in range(KK):
            kh, kw = k // K, k % K
            cat = jnp.concatenate(
                [xfp[:, kh:kh + H, kw:kw + W, :], f1p[:, kh:kh + H, kw:kw + W, :]],
                axis=-1,
            )
            om = om + jnp.einsum("nhwc,co->nhwo", cat, w_off_r[k])
        mask_r = jax.nn.sigmoid(om[..., 2 * KK:])
        acc = jnp.zeros((N, H, W, C), jnp.float32) + b_dcn
        for k in range(KK):
            kh, kw = k // K, k % K
            acc = acc + jnp.einsum(
                "nhwc,co->nhwo",
                xfp[:, kh:kh + H, kw:kw + W, :] * mask_r[..., k:k + 1],
                w_dcn_r[k],
            )
        y2 = (acc - m2) / jnp.sqrt(v2 + eps) * g2 + beta2
        return jax.nn.relu(feat1_r + y2)

    ref = reference()
    # Tolerance reflects bf16 MXU operands (f32 accumulation) in the kernel vs.
    # a pure-f32 reference; typical max |err| here is ~1e-2.
    err = float(jnp.max(jnp.abs(out - ref)))
    assert err < 4e-2, f"max abs err {err}"
    print("KERNEL_OK")
</pallas_src>

<mosaic_0001>
module attributes {stable_mosaic.version = 11 : i64} {
  func.func @_fusion_kernel(%arg0: i32, %arg1: memref<1x16x16x32xf32, #tpu.memory_space<vmem>>, %arg2: memref<1x18x18x32xf32, #tpu.memory_space<vmem>>, %arg3: memref<32x32xbf16, #tpu.memory_space<vmem>>, %arg4: memref<1x32xf32, #tpu.memory_space<vmem>>, %arg5: memref<288x9xbf16, #tpu.memory_space<vmem>>, %arg6: memref<288x9xbf16, #tpu.memory_space<vmem>>, %arg7: memref<1x9xf32, #tpu.memory_space<vmem>>, %arg8: memref<288x32xbf16, #tpu.memory_space<vmem>>, %arg9: memref<1x32xf32, #tpu.memory_space<vmem>>, %arg10: memref<9x288xf32, #tpu.memory_space<vmem>>, %arg11: memref<1x32xf32, #tpu.memory_space<vmem>>, %arg12: memref<1x32xf32, #tpu.memory_space<vmem>>, %arg13: memref<1x16x16x32xf32, #tpu.memory_space<vmem>>, %arg14: memref<18x18x32xf32, #tpu.memory_space<vmem>>) attributes {dimension_semantics = [#tpu.dimension_semantics<parallel>], iteration_bounds = array<i64: 2>, scalar_prefetch = 0 : i64, scratch_operands = 1 : i64, tpu.core_type = #tpu.core_type<tc>, window_params = [{transform_indices = @transform_0, window_bounds = array<i64: 1, 16, 16, 32>}, {transform_indices = @transform_1, window_bounds = array<i64: 1, 18, 18, 32>}, {pipeline_mode = #tpu.pipeline_mode<synchronous>, transform_indices = @transform_2, window_bounds = array<i64: 32, 32>}, {pipeline_mode = #tpu.pipeline_mode<synchronous>, transform_indices = @transform_3, window_bounds = array<i64: 1, 32>}, {pipeline_mode = #tpu.pipeline_mode<synchronous>, transform_indices = @transform_4, window_bounds = array<i64: 288, 9>}, {pipeline_mode = #tpu.pipeline_mode<synchronous>, transform_indices = @transform_5, window_bounds = array<i64: 288, 9>}, {pipeline_mode = #tpu.pipeline_mode<synchronous>, transform_indices = @transform_6, window_bounds = array<i64: 1, 9>}, {pipeline_mode = #tpu.pipeline_mode<synchronous>, transform_indices = @transform_7, window_bounds = array<i64: 288, 32>}, {pipeline_mode = #tpu.pipeline_mode<synchronous>, transform_indices = @transform_8, window_bounds = array<i64: 1, 32>}, {pipeline_mode = #tpu.pipeline_mode<synchronous>, transform_indices = @transform_9, window_bounds = array<i64: 9, 288>}, {pipeline_mode = #tpu.pipeline_mode<synchronous>, transform_indices = @transform_10, window_bounds = array<i64: 1, 32>}, {pipeline_mode = #tpu.pipeline_mode<synchronous>, transform_indices = @transform_11, window_bounds = array<i64: 1, 32>}, {transform_indices = @transform_12, window_bounds = array<i64: 1, 16, 16, 32>}]} {
    %c0 = arith.constant 0 : index
    %c0_0 = arith.constant 0 : index
    %c0_1 = arith.constant 0 : index
    %c0_2 = arith.constant 0 : index
    %0 = vector.load %arg1[%c0, %c0_0, %c0_1, %c0_2] : memref<1x16x16x32xf32, #tpu.memory_space<vmem>>, vector<1x16x16x32xf32>
    %1 = vector.shape_cast %0 : vector<1x16x16x32xf32> to vector<16x16x32xf32>
    %2 = vector.shape_cast %1 : vector<16x16x32xf32> to vector<256x32xf32>
    %3 = arith.truncf %2 : vector<256x32xf32> to vector<256x32xbf16>
    %c0_3 = arith.constant 0 : index
    %c0_4 = arith.constant 0 : index
    %4 = vector.load %arg3[%c0_3, %c0_4] : memref<32x32xbf16, #tpu.memory_space<vmem>>, vector<32x32xbf16>
    %cst = arith.constant dense<0.000000e+00> : vector<256x32xf32>
    %5 = tpu.matmul %3, %4, %cst {dimension_numbers = #tpu.dot_dimension_numbers<[1], [0], [0], [1], [0, 0, 1, 1], [], []>} : vector<256x32xbf16>, vector<32x32xbf16>, vector<256x32xf32> -> vector<256x32xf32>
    %c0_5 = arith.constant 0 : index
    %c0_6 = arith.constant 0 : index
    %6 = vector.load %arg4[%c0_5, %c0_6] : memref<1x32xf32, #tpu.memory_space<vmem>>, vector<1x32xf32>
    %7 = vector.broadcast %6 : vector<1x32xf32> to vector<256x32xf32>
    %8 = arith.addf %5, %7 : vector<256x32xf32>
    %cst_7 = arith.constant 0.000000e+00 : f32
    %9 = vector.broadcast %cst_7 : f32 to vector<18x18x32xf32>
    %c0_8 = arith.constant 0 : index
    %c0_9 = arith.constant 0 : index
    %c0_10 = arith.constant 0 : index
    %10 = vector.load %arg14[%c0_8, %c0_9, %c0_10] : memref<18x18x32xf32, #tpu.memory_space<vmem>>, vector<18x18x32xf32>
    tpu.vector_store %arg14[%c0_8, %c0_9, %c0_10], %9 {strides = array<i32>} : memref<18x18x32xf32, #tpu.memory_space<vmem>>, vector<18x18x32xf32>,
    %11 = vector.shape_cast %8 : vector<256x32xf32> to vector<16x16x32xf32>
    %c1 = arith.constant 1 : index
    %c1_11 = arith.constant 1 : index
    %c0_12 = arith.constant 0 : index
    %12 = vector.load %arg14[%c1, %c1_11, %c0_12] : memref<18x18x32xf32, #tpu.memory_space<vmem>>, vector<16x16x32xf32>
    tpu.vector_store %arg14[%c1, %c1_11, %c0_12], %11 {strides = array<i32>} : memref<18x18x32xf32, #tpu.memory_space<vmem>>, vector<16x16x32xf32>,
    %c0_13 = arith.constant 0 : index
    %c0_14 = arith.constant 0 : index
    %c0_15 = arith.constant 0 : index
    %c0_16 = arith.constant 0 : index
    %13 = vector.load %arg2[%c0_13, %c0_14, %c0_15, %c0_16] : memref<1x18x18x32xf32, #tpu.memory_space<vmem>>, vector<1x18x18x32xf32>
    %14 = vector.shape_cast %13 : vector<1x18x18x32xf32> to vector<18x18x32xf32>
    %c0_17 = arith.constant 0 : index
    %c0_18 = arith.constant 0 : index
    %c0_19 = arith.constant 0 : index
    %15 = vector.load %arg14[%c0_17, %c0_18, %c0_19] : memref<18x18x32xf32, #tpu.memory_space<vmem>>, vector<18x18x32xf32>
    %16 = vector.extract_strided_slice %14 {offsets = [0, 0, 0], sizes = [16, 16, 32], strides = [1, 1, 1]} : vector<18x18x32xf32> to vector<16x16x32xf32>
    %17 = vector.shape_cast %16 : vector<16x16x32xf32> to vector<256x32xf32>
    %18 = vector.extract_strided_slice %15 {offsets = [0, 0, 0], sizes = [16, 16, 32], strides = [1, 1, 1]} : vector<18x18x32xf32> to vector<16x16x32xf32>
    %19 = vector.shape_cast %18 : vector<16x16x32xf32> to vector<256x32xf32>
    %20 = vector.extract_strided_slice %14 {offsets = [0, 1, 0], sizes = [16, 16, 32], strides = [1, 1, 1]} : vector<18x18x32xf32> to vector<16x16x32xf32>
    %21 = vector.shape_cast %20 : vector<16x16x32xf32> to vector<256x32xf32>
    %22 = vector.extract_strided_slice %15 {offsets = [0, 1, 0], sizes = [16, 16, 32], strides = [1, 1, 1]} : vector<18x18x32xf32> to vector<16x16x32xf32>
    %23 = vector.shape_cast %22 : vector<16x16x32xf32> to vector<256x32xf32>
    %24 = vector.extract_strided_slice %14 {offsets = [0, 2, 0], sizes = [16, 16, 32], strides = [1, 1, 1]} : vector<18x18x32xf32> to vector<16x16x32xf32>
    %25 = vector.shape_cast %24 : vector<16x16x32xf32> to vector<256x32xf32>
    %26 = vector.extract_strided_slice %15 {offsets = [0, 2, 0], sizes = [16, 16, 32], strides = [1, 1, 1]} : vector<18x18x32xf32> to vector<16x16x32xf32>
    %27 = vector.shape_cast %26 : vector<16x16x32xf32> to vector<256x32xf32>
    %28 = vector.extract_strided_slice %14 {offsets = [1, 0, 0], sizes = [16, 16, 32], strides = [1, 1, 1]} : vector<18x18x32xf32> to vector<16x16x32xf32>
    %29 = vector.shape_cast %28 : vector<16x16x32xf32> to vector<256x32xf32>
    %30 = vector.extract_strided_slice %15 {offsets = [1, 0, 0], sizes = [16, 16, 32], strides = [1, 1, 1]} : vector<18x18x32xf32> to vector<16x16x32xf32>
    %31 = vector.shape_cast %30 : vector<16x16x32xf32> to vector<256x32xf32>
    %32 = vector.extract_strided_slice %14 {offsets = [1, 1, 0], sizes = [16, 16, 32], strides = [1, 1, 1]} : vector<18x18x32xf32> to vector<16x16x32xf32>
    %33 = vector.shape_cast %32 : vector<16x16x32xf32> to vector<256x32xf32>
    %34 = vector.extract_strided_slice %15 {offsets = [1, 1, 0], sizes = [16, 16, 32], strides = [1, 1, 1]} : vector<18x18x32xf32> to vector<16x16x32xf32>
    %35 = vector.shape_cast %34 : vector<16x16x32xf32> to vector<256x32xf32>
    %36 = vector.extract_strided_slice %14 {offsets = [1, 2, 0], sizes = [16, 16, 32], strides = [1, 1, 1]} : vector<18x18x32xf32> to vector<16x16x32xf32>
    %37 = vector.shape_cast %36 : vector<16x16x32xf32> to vector<256x32xf32>
    %38 = vector.extract_strided_slice %15 {offsets = [1, 2, 0], sizes = [16, 16, 32], strides = [1, 1, 1]} : vector<18x18x32xf32> to vector<16x16x32xf32>
    %39 = vector.shape_cast %38 : vector<16x16x32xf32> to vector<256x32xf32>
    %40 = vector.extract_strided_slice %14 {offsets = [2, 0, 0], sizes = [16, 16, 32], strides = [1, 1, 1]} : vector<18x18x32xf32> to vector<16x16x32xf32>
    %41 = vector.shape_cast %40 : vector<16x16x32xf32> to vector<256x32xf32>
    %42 = vector.extract_strided_slice %15 {offsets = [2, 0, 0], sizes = [16, 16, 32], strides = [1, 1, 1]} : vector<18x18x32xf32> to vector<16x16x32xf32>
    %43 = vector.shape_cast %42 : vector<16x16x32xf32> to vector<256x32xf32>
    %44 = vector.extract_strided_slice %14 {offsets = [2, 1, 0], sizes = [16, 16, 32], strides = [1, 1, 1]} : vector<18x18x32xf32> to vector<16x16x32xf32>
    %45 = vector.shape_cast %44 : vector<16x16x32xf32> to vector<256x32xf32>
    %46 = vector.extract_strided_slice %15 {offsets = [2, 1, 0], sizes = [16, 16, 32], strides = [1, 1, 1]} : vector<18x18x32xf32> to vector<16x16x32xf32>
    %47 = vector.shape_cast %46 : vector<16x16x32xf32> to vector<256x32xf32>
    %48 = vector.extract_strided_slice %14 {offsets = [2, 2, 0], sizes = [16, 16, 32], strides = [1, 1, 1]} : vector<18x18x32xf32> to vector<16x16x32xf32>
    %49 = vector.shape_cast %48 : vector<16x16x32xf32> to vector<256x32xf32>
    %50 = vector.extract_strided_slice %15 {offsets = [2, 2, 0], sizes = [16, 16, 32], strides = [1, 1, 1]} : vector<18x18x32xf32> to vector<16x16x32xf32>
    %51 = vector.shape_cast %50 : vector<16x16x32xf32> to vector<256x32xf32>
    %52 = tpu.concatenate %17, %21, %25, %29, %33, %37, %41, %45, %49 in 1 : vector<256x32xf32>, vector<256x32xf32>, vector<256x32xf32>, vector<256x32xf32>, vector<256x32xf32>, vector<256x32xf32>, vector<256x32xf32>, vector<256x32xf32>, vector<256x32xf32> -> vector<256x288xf32>
    %53 = tpu.concatenate %19, %23, %27, %31, %35, %39, %43, %47, %51 in 1 : vector<256x32xf32>, vector<256x32xf32>, vector<256x32xf32>, vector<256x32xf32>, vector<256x32xf32>, vector<256x32xf32>, vector<256x32xf32>, vector<256x32xf32>, vector<256x32xf32> -> vector<256x288xf32>
    %54 = arith.truncf %52 : vector<256x288xf32> to vector<256x288xbf16>
    %c0_20 = arith.constant 0 : index
    %c0_21 = arith.constant 0 : index
    %55 = vector.load %arg5[%c0_20, %c0_21] : memref<288x9xbf16, #tpu.memory_space<vmem>>, vector<288x9xbf16>
    %cst_22 = arith.constant dense<0.000000e+00> : vector<256x9xf32>
    %56 = tpu.matmul %54, %55, %cst_22 {dimension_numbers = #tpu.dot_dimension_numbers<[1], [0], [0], [1], [0, 0, 1, 1], [], []>} : vector<256x288xbf16>, vector<288x9xbf16>, vector<256x9xf32> -> vector<256x9xf32>
    %57 = arith.truncf %53 : vector<256x288xf32> to vector<256x288xbf16>
    %c0_23 = arith.constant 0 : index
    %c0_24 = arith.constant 0 : index
    %58 = vector.load %arg6[%c0_23, %c0_24] : memref<288x9xbf16, #tpu.memory_space<vmem>>, vector<288x9xbf16>
    %cst_25 = arith.constant dense<0.000000e+00> : vector<256x9xf32>
    %59 = tpu.matmul %57, %58, %cst_25 {dimension_numbers = #tpu.dot_dimension_numbers<[1], [0], [0], [1], [0, 0, 1, 1], [], []>} : vector<256x288xbf16>, vector<288x9xbf16>, vector<256x9xf32> -> vector<256x9xf32>
    %60 = arith.addf %56, %59 : vector<256x9xf32>
    %c0_26 = arith.constant 0 : index
    %c0_27 = arith.constant 0 : index
    %61 = vector.load %arg7[%c0_26, %c0_27] : memref<1x9xf32, #tpu.memory_space<vmem>>, vector<1x9xf32>
    %62 = vector.broadcast %61 : vector<1x9xf32> to vector<256x9xf32>
    %63 = arith.addf %60, %62 : vector<256x9xf32>
    %64 = arith.negf %63 : vector<256x9xf32>
    %65 = math.exp %64 : vector<256x9xf32>
    %cst_28 = arith.constant 1.000000e+00 : f32
    %66 = vector.broadcast %cst_28 : f32 to vector<256x9xf32>
    %67 = arith.addf %66, %65 : vector<256x9xf32>
    %68 = arith.divf %66, %67 : vector<256x9xf32>
    %c0_29 = arith.constant 0 : index
    %c0_30 = arith.constant 0 : index
    %69 = vector.load %arg10[%c0_29, %c0_30] : memref<9x288xf32, #tpu.memory_space<vmem>>, vector<9x288xf32>
    %cst_31 = arith.constant dense<0.000000e+00> : vector<256x288xf32>
    %70 = tpu.matmul %68, %69, %cst_31 {dimension_numbers = #tpu.dot_dimension_numbers<[1], [0], [0], [1], [0, 0, 1, 1], [], []>} : vector<256x9xf32>, vector<9x288xf32>, vector<256x288xf32> -> vector<256x288xf32>
    %71 = arith.mulf %52, %70 : vector<256x288xf32>
    %72 = arith.truncf %71 : vector<256x288xf32> to vector<256x288xbf16>
    %c0_32 = arith.constant 0 : index
    %c0_33 = arith.constant 0 : index
    %73 = vector.load %arg8[%c0_32, %c0_33] : memref<288x32xbf16, #tpu.memory_space<vmem>>, vector<288x32xbf16>
    %cst_34 = arith.constant dense<0.000000e+00> : vector<256x32xf32>
    %74 = tpu.matmul %72, %73, %cst_34 {dimension_numbers = #tpu.dot_dimension_numbers<[1], [0], [0], [1], [0, 0, 1, 1], [], []>} : vector<256x288xbf16>, vector<288x32xbf16>, vector<256x32xf32> -> vector<256x32xf32>
    %c0_35 = arith.constant 0 : index
    %c0_36 = arith.constant 0 : index
    %75 = vector.load %arg9[%c0_35, %c0_36] : memref<1x32xf32, #tpu.memory_space<vmem>>, vector<1x32xf32>
    %76 = vector.broadcast %75 : vector<1x32xf32> to vector<256x32xf32>
    %77 = arith.addf %74, %76 : vector<256x32xf32>
    %c0_37 = arith.constant 0 : index
    %c0_38 = arith.constant 0 : index
    %78 = vector.load %arg11[%c0_37, %c0_38] : memref<1x32xf32, #tpu.memory_space<vmem>>, vector<1x32xf32>
    %79 = vector.broadcast %78 : vector<1x32xf32> to vector<256x32xf32>
    %80 = arith.mulf %77, %79 : vector<256x32xf32>
    %c0_39 = arith.constant 0 : index
    %c0_40 = arith.constant 0 : index
    %81 = vector.load %arg12[%c0_39, %c0_40] : memref<1x32xf32, #tpu.memory_space<vmem>>, vector<1x32xf32>
    %82 = vector.broadcast %81 : vector<1x32xf32> to vector<256x32xf32>
    %83 = arith.addf %80, %82 : vector<256x32xf32>
    %84 = arith.addf %8, %83 : vector<256x32xf32>
    %cst_41 = arith.constant 0.000000e+00 : f32
    %85 = vector.broadcast %cst_41 : f32 to vector<256x32xf32>
    %86 = arith.maximumf %84, %85 : vector<256x32xf32>
    %87 = vector.shape_cast %86 : vector<256x32xf32> to vector<1x16x16x32xf32>
    %c0_42 = arith.constant 0 : index
    %c0_43 = arith.constant 0 : index
    %c0_44 = arith.constant 0 : index
    %c0_45 = arith.constant 0 : index
    %88 = vector.load %arg13[%c0_42, %c0_43, %c0_44, %c0_45] : memref<1x16x16x32xf32, #tpu.memory_space<vmem>>, vector<1x16x16x32xf32>
    tpu.vector_store %arg13[%c0_42, %c0_43, %c0_44, %c0_45], %87 {strides = array<i32>} : memref<1x16x16x32xf32, #tpu.memory_space<vmem>>, vector<1x16x16x32xf32>,
    return
  }
  func.func @transform_0(%arg0: i32) -> (i32, i32, i32, i32) {
    %c0_i32 = arith.constant 0 : i32
    %c0_i32_0 = arith.constant 0 : i32
    %c0_i32_1 = arith.constant 0 : i32
    %c0_i32_2 = arith.constant 0 : i32
    return %arg0, %c0_i32, %c0_i32_0, %c0_i32_1 : i32, i32, i32, i32
  }
  func.func @transform_1(%arg0: i32) -> (i32, i32, i32, i32) {
    %c0_i32 = arith.constant 0 : i32
    %c0_i32_0 = arith.constant 0 : i32
    %c0_i32_1 = arith.constant 0 : i32
    %c0_i32_2 = arith.constant 0 : i32
    return %arg0, %c0_i32, %c0_i32_0, %c0_i32_1 : i32, i32, i32, i32
  }
  func.func @transform_2(%arg0: i32) -> (i32, i32) {
    %c0_i32 = arith.constant 0 : i32
    %c0_i32_0 = arith.constant 0 : i32
    %c0_i32_1 = arith.constant 0 : i32
    return %c0_i32, %c0_i32_0 : i32, i32
  }
  func.func @transform_3(%arg0: i32) -> (i32, i32) {
    %c0_i32 = arith.constant 0 : i32
    %c0_i32_0 = arith.constant 0 : i32
    %c0_i32_1 = arith.constant 0 : i32
    return %c0_i32, %c0_i32_0 : i32, i32
  }
  func.func @transform_4(%arg0: i32) -> (i32, i32) {
    %c0_i32 = arith.constant 0 : i32
    %c0_i32_0 = arith.constant 0 : i32
    %c0_i32_1 = arith.constant 0 : i32
    return %c0_i32, %c0_i32_0 : i32, i32
  }
  func.func @transform_5(%arg0: i32) -> (i32, i32) {
    %c0_i32 = arith.constant 0 : i32
    %c0_i32_0 = arith.constant 0 : i32
    %c0_i32_1 = arith.constant 0 : i32
    return %c0_i32, %c0_i32_0 : i32, i32
  }
  func.func @transform_6(%arg0: i32) -> (i32, i32) {
    %c0_i32 = arith.constant 0 : i32
    %c0_i32_0 = arith.constant 0 : i32
    %c0_i32_1 = arith.constant 0 : i32
    return %c0_i32, %c0_i32_0 : i32, i32
  }
  func.func @transform_7(%arg0: i32) -> (i32, i32) {
    %c0_i32 = arith.constant 0 : i32
    %c0_i32_0 = arith.constant 0 : i32
    %c0_i32_1 = arith.constant 0 : i32
    return %c0_i32, %c0_i32_0 : i32, i32
  }
  func.func @transform_8(%arg0: i32) -> (i32, i32) {
    %c0_i32 = arith.constant 0 : i32
    %c0_i32_0 = arith.constant 0 : i32
    %c0_i32_1 = arith.constant 0 : i32
    return %c0_i32, %c0_i32_0 : i32, i32
  }
  func.func @transform_9(%arg0: i32) -> (i32, i32) {
    %c0_i32 = arith.constant 0 : i32
    %c0_i32_0 = arith.constant 0 : i32
    %c0_i32_1 = arith.constant 0 : i32
    return %c0_i32, %c0_i32_0 : i32, i32
  }
  func.func @transform_10(%arg0: i32) -> (i32, i32) {
    %c0_i32 = arith.constant 0 : i32
    %c0_i32_0 = arith.constant 0 : i32
    %c0_i32_1 = arith.constant 0 : i32
    return %c0_i32, %c0_i32_0 : i32, i32
  }
  func.func @transform_11(%arg0: i32) -> (i32, i32) {
    %c0_i32 = arith.constant 0 : i32
    %c0_i32_0 = arith.constant 0 : i32
    %c0_i32_1 = arith.constant 0 : i32
    return %c0_i32, %c0_i32_0 : i32, i32
  }
  func.func @transform_12(%arg0: i32) -> (i32, i32, i32, i32) {
    %c0_i32 = arith.constant 0 : i32
    %c0_i32_0 = arith.constant 0 : i32
    %c0_i32_1 = arith.constant 0 : i32
    %c0_i32_2 = arith.constant 0 : i32
    return %arg0, %c0_i32, %c0_i32_0, %c0_i32_1 : i32, i32, i32, i32
  }
}

</mosaic_0001>

<llo_original>
// kernel: tpu_custom_call.1
$region0: #{tpu_custom_call.1}
  #allocation0 [shape = 'u32[]', space=smem, size = 0x4, offset = 0x4, fixed_abs, tag = 'smem constant byte address 0x4 - core index']
  #allocation1 [shape = 'u32[72,128]{1,0:T(1,128)}', space=vmem, size = 0x9000, scoped, tag = 'internal scratch']
  #allocation2 [shape = 'f32[18,18,32]{2,1,0:T(8,128)}', space=vmem, size = 0x36000, scoped, tag = 'scratch operand']
  %s0 = inlined_call_operand.vmem [shape: f32[2,16,16,32], index: 0, kind: input, shape index: {}]
  %s1 = inlined_call_operand.vmem [shape: f32[2,18,18,32], index: 1, kind: input, shape index: {}]
  %s2 = inlined_call_operand.vmem [shape: bf16[32,32], index: 2, kind: input, shape index: {}]
  %s3 = inlined_call_operand.vmem [shape: f32[1,32], index: 3, kind: input, shape index: {}]
  %s4 = inlined_call_operand.vmem [shape: bf16[288,9], index: 4, kind: input, shape index: {}]
  %s5 = inlined_call_operand.vmem [shape: bf16[288,9], index: 5, kind: input, shape index: {}]
  %s6 = inlined_call_operand.vmem [shape: f32[1,9], index: 6, kind: input, shape index: {}]
  %s7 = inlined_call_operand.vmem [shape: bf16[288,32], index: 7, kind: input, shape index: {}]
  %s8 = inlined_call_operand.vmem [shape: f32[1,32], index: 8, kind: input, shape index: {}]
  %s9 = inlined_call_operand.vmem [shape: f32[9,288], index: 9, kind: input, shape index: {}]
  %s10 = inlined_call_operand.vmem [shape: f32[1,32], index: 10, kind: input, shape index: {}]
  %s11 = inlined_call_operand.vmem [shape: f32[1,32], index: 11, kind: input, shape index: {}]
  %s12 = inlined_call_operand.hbm [shape: f32[2,16,16,32], index: 12, kind: output, shape index: {}]
  %s13 = sld [smem:[#allocation0]]
  $region81: #{tpu_custom_call.1} parent=0
    _
  %s15 = ssub.s32 1, %s13
  %s16 = scalar_select 0, %s15, %s13
  $region1: #{tpu_custom_call.1} parent=0
    #allocation3 [shape = 'u8[262144]{0}', space=vmem, size = 0x40000, scoped, tag = 'output window, operand 0']
    #allocation4 [shape = 's32[2]{0}', space=sflag, size = 0x8, scoped, tag = 'scoped memory for tpu_custom_call.1']
    %17 = vsyncpa [#allocation4], 0
    %s18 = scalar_lea.sflag [#allocation4], 1
    %19 = vsyncpa %s18, 0
    loop: start=0, step=1, limit=4
    $region2: #{tpu_custom_call.1} parent=1 // loop_pre_header
      _
    $region3: #{tpu_custom_call.1} parent=1 // loop_header
      %s21 = sphi 0, %s25
      %p22 = scmp.ge.s32.totalorder %s21, 4
      %s31 = sphi 0, %s33
      %s34 = sphi 0, %s31
      %s35 = sphi 0, %s34
      %s51 = sphi 0, %s35
      %s57 = sphi 0, %s59
      %s60 = sphi 0, %s57
      %s61 = sphi 0, %s60
      %s77 = sphi 0, %s61
      %s81 = sphi 0, %s81
      %s83 = sphi 0, %s81
      %s84 = sphi 0, %s83
      %s98 = sphi 0, %s84
      %s102 = sphi 0, %s102
      %s104 = sphi 0, %s102
      %s105 = sphi 0, %s104
      %s119 = sphi 0, %s105
      %s123 = sphi 0, %s123
      %s125 = sphi 0, %s123
      %s126 = sphi 0, %s125
      %s140 = sphi 0, %s126
      %s144 = sphi 0, %s144
      %s146 = sphi 0, %s144
      %s147 = sphi 0, %s146
      %s161 = sphi 0, %s147
      %s165 = sphi 0, %s165
      %s167 = sphi 0, %s165
      %s168 = sphi 0, %s167
      %s182 = sphi 0, %s168
      %s186 = sphi 0, %s186
      %s188 = sphi 0, %s186
      %s189 = sphi 0, %s188
      %s203 = sphi 0, %s189
      %s207 = sphi 0, %s207
      %s209 = sphi 0, %s207
      %s210 = sphi 0, %s209
      %s224 = sphi 0, %s210
      %s228 = sphi 0, %s228
      %s230 = sphi 0, %s228
      %s231 = sphi 0, %s230
      %s245 = sphi 0, %s231
      %s249 = sphi 0, %s249
      %s251 = sphi 0, %s249
      %s252 = sphi 0, %s251
      %s266 = sphi 0, %s252
      %s270 = sphi 0, %s270
      %s272 = sphi 0, %s270
      %s273 = sphi 0, %s272
      %s287 = sphi 0, %s273
      %s293 = sphi 0, %s295
      %s296 = sphi 0, %s293
      %s297 = sphi 0, %s296
      %s313 = sphi 0, %s297
    $region4: #{tpu_custom_call.1} parent=1 // loop_header_branch
      %24 = sbr.rel (%p22) target = $region8
    $region5: #{tpu_custom_call.1} parent=1 // loop_body
      %s26 = ssub.s32 %s21, 1
      %s27 = ssub.s32 %s21, 2
      %s28 = sadd.s32 %s21, 1
      %s29 = ssub.s32 %s21, %s28
      %p30 = scmp.eq.s32.totalorder %s29, 0
      %s32 = sadd.s32 %s31, 1
      %s33 = scalar_select %p30, %s31, %s32
      %p36 = pneg %p30
      %p37 = scmp.eq.s32.totalorder %s21, 1
      %p38 = por %p36, %p37
      %p39 = scmp.ne.s32.totalorder %s31, %s34
      %p40 = scmp.eq.s32.totalorder %s21, 0
      %p41 = por %p39, %p40
      %p42 = scmp.ne.s32.totalorder %s31, %s34
      %p43 = scmp.eq.s32.totalorder %s26, 1
      %p44 = por %p42, %p43
      %p45 = scmp.ne.s32.totalorder %s34, %s35
      %p46 = scmp.eq.s32.totalorder %s26, 0
      %p47 = por %p45, %p46
      %p48 = scmp.ne.s32.totalorder %s34, %s35
      %p49 = scmp.eq.s32.totalorder %s27, 1
      %p50 = por %p48, %p49
      %p52 = scmp.ne.s32.totalorder %s35, %s51
      %p53 = scmp.eq.s32.totalorder %s27, 0
      %p54 = por %p52, %p53
      %s55 = ssub.s32 %s21, %s28
      %p56 = scmp.eq.s32.totalorder %s55, 0
      %s58 = sadd.s32 %s57, 1
      %s59 = scalar_select %p56, %s57, %s58
      %p62 = pneg %p56
      %p63 = scmp.eq.s32.totalorder %s21, 1
      %p64 = por %p62, %p63
      %p65 = scmp.ne.s32.totalorder %s57, %s60
      %p66 = scmp.eq.s32.totalorder %s21, 0
      %p67 = por %p65, %p66
      %p68 = scmp.ne.s32.totalorder %s57, %s60
      %p69 = scmp.eq.s32.totalorder %s26, 1
      %p70 = por %p68, %p69
      %p71 = scmp.ne.s32.totalorder %s60, %s61
      %p72 = scmp.eq.s32.totalorder %s26, 0
      %p73 = por %p71, %p72
      %p74 = scmp.ne.s32.totalorder %s60, %s61
      %p75 = scmp.eq.s32.totalorder %s27, 1
      %p76 = por %p74, %p75
      %p78 = scmp.ne.s32.totalorder %s61, %s77
      %p79 = scmp.eq.s32.totalorder %s27, 0
      %p80 = por %p78, %p79
      %s82 = sadd.s32 %s81, 1
      %p85 = scmp.eq.s32.totalorder %s21, 1
      %p86 = scmp.ne.s32.totalorder %s81, %s83
      %p87 = scmp.eq.s32.totalorder %s21, 0
      %p88 = por %p86, %p87
      %p89 = scmp.ne.s32.totalorder %s81, %s83
      %p90 = scmp.eq.s32.totalorder %s26, 1
      %p91 = por %p89, %p90
      %p92 = scmp.ne.s32.totalorder %s83, %s84
      %p93 = scmp.eq.s32.totalorder %s26, 0
      %p94 = por %p92, %p93
      %p95 = scmp.ne.s32.totalorder %s83, %s84
      %p96 = scmp.eq.s32.totalorder %s27, 1
      %p97 = por %p95, %p96
      %p99 = scmp.ne.s32.totalorder %s84, %s98
      %p100 = scmp.eq.s32.totalorder %s27, 0
      %p101 = por %p99, %p100
      %s103 = sadd.s32 %s102, 1
      %p106 = scmp.eq.s32.totalorder %s21, 1
      %p107 = scmp.ne.s32.totalorder %s102, %s104
      %p108 = scmp.eq.s32.totalorder %s21, 0
      %p109 = por %p107, %p108
      %p110 = scmp.ne.s32.totalorder %s102, %s104
      %p111 = scmp.eq.s32.totalorder %s26, 1
      %p112 = por %p110, %p111
      %p113 = scmp.ne.s32.totalorder %s104, %s105
      %p114 = scmp.eq.s32.totalorder %s26, 0
      %p115 = por %p113, %p114
      %p116 = scmp.ne.s32.totalorder %s104, %s105
      %p117 = scmp.eq.s32.totalorder %s27, 1
      %p118 = por %p116, %p117
      %p120 = scmp.ne.s32.totalorder %s105, %s119
      %p121 = scmp.eq.s32.totalorder %s27, 0
      %p122 = por %p120, %p121
      %s124 = sadd.s32 %s123, 1
      %p127 = scmp.eq.s32.totalorder %s21, 1
      %p128 = scmp.ne.s32.totalorder %s123, %s125
      %p129 = scmp.eq.s32.totalorder %s21, 0
      %p130 = por %p128, %p129
      %p131 = scmp.ne.s32.totalorder %s123, %s125
      %p132 = scmp.eq.s32.totalorder %s26, 1
      %p133 = por %p131, %p132
      %p134 = scmp.ne.s32.totalorder %s125, %s126
      %p135 = scmp.eq.s32.totalorder %s26, 0
      %p136 = por %p134, %p135
      %p137 = scmp.ne.s32.totalorder %s125, %s126
      %p138 = scmp.eq.s32.totalorder %s27, 1
      %p139 = por %p137, %p138
      %p141 = scmp.ne.s32.totalorder %s126, %s140
      %p142 = scmp.eq.s32.totalorder %s27, 0
      %p143 = por %p141, %p142
      %s145 = sadd.s32 %s144, 1
      %p148 = scmp.eq.s32.totalorder %s21, 1
      %p149 = scmp.ne.s32.totalorder %s144, %s146
      %p150 = scmp.eq.s32.totalorder %s21, 0
      %p151 = por %p149, %p150
      %p152 = scmp.ne.s32.totalorder %s144, %s146
      %p153 = scmp.eq.s32.totalorder %s26, 1
      %p154 = por %p152, %p153
      %p155 = scmp.ne.s32.totalorder %s146, %s147
      %p156 = scmp.eq.s32.totalorder %s26, 0
      %p157 = por %p155, %p156
      %p158 = scmp.ne.s32.totalorder %s146, %s147
      %p159 = scmp.eq.s32.totalorder %s27, 1
      %p160 = por %p158, %p159
      %p162 = scmp.ne.s32.totalorder %s147, %s161
      %p163 = scmp.eq.s32.totalorder %s27, 0
      %p164 = por %p162, %p163
      %s166 = sadd.s32 %s165, 1
      %p169 = scmp.eq.s32.totalorder %s21, 1
      %p170 = scmp.ne.s32.totalorder %s165, %s167
      %p171 = scmp.eq.s32.totalorder %s21, 0
      %p172 = por %p170, %p171
      %p173 = scmp.ne.s32.totalorder %s165, %s167
      %p174 = scmp.eq.s32.totalorder %s26, 1
      %p175 = por %p173, %p174
      %p176 = scmp.ne.s32.totalorder %s167, %s168
      %p177 = scmp.eq.s32.totalorder %s26, 0
      %p178 = por %p176, %p177
      %p179 = scmp.ne.s32.totalorder %s167, %s168
      %p180 = scmp.eq.s32.totalorder %s27, 1
      %p181 = por %p179, %p180
      %p183 = scmp.ne.s32.totalorder %s168, %s182
      %p184 = scmp.eq.s32.totalorder %s27, 0
      %p185 = por %p183, %p184
      %s187 = sadd.s32 %s186, 1
      %p190 = scmp.eq.s32.totalorder %s21, 1
      %p191 = scmp.ne.s32.totalorder %s186, %s188
      %p192 = scmp.eq.s32.totalorder %s21, 0
      %p193 = por %p191, %p192
      %p194 = scmp.ne.s32.totalorder %s186, %s188
      %p195 = scmp.eq.s32.totalorder %s26, 1
      %p196 = por %p194, %p195
      %p197 = scmp.ne.s32.totalorder %s188, %s189
      %p198 = scmp.eq.s32.totalorder %s26, 0
      %p199 = por %p197, %p198
      %p200 = scmp.ne.s32.totalorder %s188, %s189
      %p201 = scmp.eq.s32.totalorder %s27, 1
      %p202 = por %p200, %p201
      %p204 = scmp.ne.s32.totalorder %s189, %s203
      %p205 = scmp.eq.s32.totalorder %s27, 0
      %p206 = por %p204, %p205
      %s208 = sadd.s32 %s207, 1
      %p211 = scmp.eq.s32.totalorder %s21, 1
      %p212 = scmp.ne.s32.totalorder %s207, %s209
      %p213 = scmp.eq.s32.totalorder %s21, 0
      %p214 = por %p212, %p213
      %p215 = scmp.ne.s32.totalorder %s207, %s209
      %p216 = scmp.eq.s32.totalorder %s26, 1
      %p217 = por %p215, %p216
      %p218 = scmp.ne.s32.totalorder %s209, %s210
      %p219 = scmp.eq.s32.totalorder %s26, 0
      %p220 = por %p218, %p219
      %p221 = scmp.ne.s32.totalorder %s209, %s210
      %p222 = scmp.eq.s32.totalorder %s27, 1
      %p223 = por %p221, %p222
      %p225 = scmp.ne.s32.totalorder %s210, %s224
      %p226 = scmp.eq.s32.totalorder %s27, 0
      %p227 = por %p225, %p226
      %s229 = sadd.s32 %s228, 1
      %p232 = scmp.eq.s32.totalorder %s21, 1
      %p233 = scmp.ne.s32.totalorder %s228, %s230
      %p234 = scmp.eq.s32.totalorder %s21, 0
      %p235 = por %p233, %p234
      %p236 = scmp.ne.s32.totalorder %s228, %s230
      %p237 = scmp.eq.s32.totalorder %s26, 1
      %p238 = por %p236, %p237
      %p239 = scmp.ne.s32.totalorder %s230, %s231
      %p240 = scmp.eq.s32.totalorder %s26, 0
      %p241 = por %p239, %p240
      %p242 = scmp.ne.s32.totalorder %s230, %s231
      %p243 = scmp.eq.s32.totalorder %s27, 1
      %p244 = por %p242, %p243
      %p246 = scmp.ne.s32.totalorder %s231, %s245
      %p247 = scmp.eq.s32.totalorder %s27, 0
      %p248 = por %p246, %p247
      %s250 = sadd.s32 %s249, 1
      %p253 = scmp.eq.s32.totalorder %s21, 1
      %p254 = scmp.ne.s32.totalorder %s249, %s251
      %p255 = scmp.eq.s32.totalorder %s21, 0
      %p256 = por %p254, %p255
      %p257 = scmp.ne.s32.totalorder %s249, %s251
      %p258 = scmp.eq.s32.totalorder %s26, 1
      %p259 = por %p257, %p258
      %p260 = scmp.ne.s32.totalorder %s251, %s252
      %p261 = scmp.eq.s32.totalorder %s26, 0
      %p262 = por %p260, %p261
      %p263 = scmp.ne.s32.totalorder %s251, %s252
      %p264 = scmp.eq.s32.totalorder %s27, 1
      %p265 = por %p263, %p264
      %p267 = scmp.ne.s32.totalorder %s252, %s266
      %p268 = scmp.eq.s32.totalorder %s27, 0
      %p269 = por %p267, %p268
      %s271 = sadd.s32 %s270, 1
      %p274 = scmp.eq.s32.totalorder %s21, 1
      %p275 = scmp.ne.s32.totalorder %s270, %s272
      %p276 = scmp.eq.s32.totalorder %s21, 0
      %p277 = por %p275, %p276
      %p278 = scmp.ne.s32.totalorder %s270, %s272
      %p279 = scmp.eq.s32.totalorder %s26, 1
      %p280 = por %p278, %p279
      %p281 = scmp.ne.s32.totalorder %s272, %s273
      %p282 = scmp.eq.s32.totalorder %s26, 0
      %p283 = por %p281, %p282
      %p284 = scmp.ne.s32.totalorder %s272, %s273
      %p285 = scmp.eq.s32.totalorder %s27, 1
      %p286 = por %p284, %p285
      %p288 = scmp.ne.s32.totalorder %s273, %s287
      %p289 = scmp.eq.s32.totalorder %s27, 0
      %p290 = por %p288, %p289
      %s291 = ssub.s32 %s21, %s28
      %p292 = scmp.eq.s32.totalorder %s291, 0
      %s294 = sadd.s32 %s293, 1
      %s295 = scalar_select %p292, %s293, %s294
      %p298 = pneg %p292
      %p299 = scmp.eq.s32.totalorder %s21, 1
      %p300 = por %p298, %p299
      %p301 = scmp.ne.s32.totalorder %s293, %s296
      %p302 = scmp.eq.s32.totalorder %s21, 0
      %p303 = por %p301, %p302
      %p304 = scmp.ne.s32.totalorder %s293, %s296
      %p305 = scmp.eq.s32.totalorder %s26, 1
      %p306 = por %p304, %p305
      %p307 = scmp.ne.s32.totalorder %s296, %s297
      %p308 = scmp.eq.s32.totalorder %s26, 0
      %p309 = por %p307, %p308
      %p310 = scmp.ne.s32.totalorder %s296, %s297
      %p311 = scmp.eq.s32.totalorder %s27, 1
      %p312 = por %p310, %p311
      %p314 = scmp.ne.s32.totalorder %s297, %s313
      %p315 = scmp.eq.s32.totalorder %s27, 0
      %p316 = por %p314, %p315
      %p317 = scmp.le.s32.totalorder 1, %s21
      %p318 = scmp.lt.s32.totalorder %s21, 3
      %p319 = pnand %p317, %p318
      %p320 = pneg %p319
      // Predicated region
      $region9: #{tpu_custom_call.1} parent=5 // pred_check
        _
      $region10: #{tpu_custom_call.1} parent=5 // pred_check_branch
        %322 = sbr.rel (%p319) target = $region12
      $region11: #{tpu_custom_call.1} parent=5 // pred_region
        %s323 = ssub.s32 %s21, 1
        // Predicated region
        $region13: #{tpu_custom_call.1} parent=11 // pred_check
          %p324 = pneg %p94
        $region14: #{tpu_custom_call.1} parent=11 // pred_check_branch
          %326 = sbr.rel (%p324) target = $region16
        $region15: #{tpu_custom_call.1} parent=11 // pred_region
          _
        $region16: #{tpu_custom_call.1} parent=11 // pred_fallthru
          _
        // Predicated region
        $region17: #{tpu_custom_call.1} parent=11 // pred_check
          %p327 = pneg %p115
        $region18: #{tpu_custom_call.1} parent=11 // pred_check_branch
          %329 = sbr.rel (%p327) target = $region20
        $region19: #{tpu_custom_call.1} parent=11 // pred_region
          _
        $region20: #{tpu_custom_call.1} parent=11 // pred_fallthru
          _
        // Predicated region
        $region21: #{tpu_custom_call.1} parent=11 // pred_check
          %p330 = pneg %p136
        $region22: #{tpu_custom_call.1} parent=11 // pred_check_branch
          %332 = sbr.rel (%p330) target = $region24
        $region23: #{tpu_custom_call.1} parent=11 // pred_region
          _
        $region24: #{tpu_custom_call.1} parent=11 // pred_fallthru
          _
        // Predicated region
        $region25: #{tpu_custom_call.1} parent=11 // pred_check
          %p333 = pneg %p157
        $region26: #{tpu_custom_call.1} parent=11 // pred_check_branch
          %335 = sbr.rel (%p333) target = $region28
        $region27: #{tpu_custom_call.1} parent=11 // pred_region
          _
        $region28: #{tpu_custom_call.1} parent=11 // pred_fallthru
          _
        // Predicated region
        $region29: #{tpu_custom_call.1} parent=11 // pred_check
          %p336 = pneg %p178
        $region30: #{tpu_custom_call.1} parent=11 // pred_check_branch
          %338 = sbr.rel (%p336) target = $region32
        $region31: #{tpu_custom_call.1} parent=11 // pred_region
          _
        $region32: #{tpu_custom_call.1} parent=11 // pred_fallthru
          _
        // Predicated region
        $region33: #{tpu_custom_call.1} parent=11 // pred_check
          %p339 = pneg %p199
        $region34: #{tpu_custom_call.1} parent=11 // pred_check_branch
          %341 = sbr.rel (%p339) target = $region36
        $region35: #{tpu_custom_call.1} parent=11 // pred_region
          _
        $region36: #{tpu_custom_call.1} parent=11 // pred_fallthru
          _
        // Predicated region
        $region37: #{tpu_custom_call.1} parent=11 // pred_check
          %p342 = pneg %p220
        $region38: #{tpu_custom_call.1} parent=11 // pred_check_branch
          %344 = sbr.rel (%p342) target = $region40
        $region39: #{tpu_custom_call.1} parent=11 // pred_region
          _
        $region40: #{tpu_custom_call.1} parent=11 // pred_fallthru
          _
        // Predicated region
        $region41: #{tpu_custom_call.1} parent=11 // pred_check
          %p345 = pneg %p241
        $region42: #{tpu_custom_call.1} parent=11 // pred_check_branch
          %347 = sbr.rel (%p345) target = $region44
        $region43: #{tpu_custom_call.1} parent=11 // pred_region
          _
        $region44: #{tpu_custom_call.1} parent=11 // pred_fallthru
          _
        // Predicated region
        $region45: #{tpu_custom_call.1} parent=11 // pred_check
          %p348 = pneg %p262
        $region46: #{tpu_custom_call.1} parent=11 // pred_check_branch
          %350 = sbr.rel (%p348) target = $region48
        $region47: #{tpu_custom_call.1} parent=11 // pred_region
          _
        $region48: #{tpu_custom_call.1} parent=11 // pred_fallthru
          _
        // Predicated region
        $region49: #{tpu_custom_call.1} parent=11 // pred_check
          %p351 = pneg %p283
        $region50: #{tpu_custom_call.1} parent=11 // pred_check_branch
          %353 = sbr.rel (%p351) target = $region52
        $region51: #{tpu_custom_call.1} parent=11 // pred_region
          _
        $region52: #{tpu_custom_call.1} parent=11 // pred_fallthru
          _
      $region12: #{tpu_custom_call.1} parent=5 // pred_fallthru
        _
      %p354 = scmp.lt.s32.totalorder %s21, 2
      // Predicated region
      $region53: #{tpu_custom_call.1} parent=5 // pred_check
        %p355 = pneg %p354
      $region54: #{tpu_custom_call.1} parent=5 // pred_check_branch
        %357 = sbr.rel (%p355) target = $region56
      $region55: #{tpu_custom_call.1} parent=5 // pred_region
        // Predicated region
        $region57: #{tpu_custom_call.1} parent=55 // pred_check
          %p358 = pneg %p41
        $region58: #{tpu_custom_call.1} parent=55 // pred_check_branch
          %360 = sbr.rel (%p358) target = $region60
        $region59: #{tpu_custom_call.1} parent=55 // pred_region
          %p361 = scmp.lt.s32.totalorder %s21, 1
          %s362 = scalar_select %p361, %s21, 1
          %s363 = smul.addr %s362, 32
          %s364 = smul.addr %s363, 8
          %s365 = scalar_lea.vmem %s0, %s364
        $region60: #{tpu_custom_call.1} parent=55 // pred_fallthru
          _
        // Predicated region
        $region61: #{tpu_custom_call.1} parent=55 // pred_check
          %p366 = pneg %p67
        $region62: #{tpu_custom_call.1} parent=55 // pred_check_branch
          %368 = sbr.rel (%p366) target = $region64
        $region63: #{tpu_custom_call.1} parent=55 // pred_region
          %p369 = scmp.lt.s32.totalorder %s21, 1
          %s370 = scalar_select %p369, %s21, 1
          %s371 = smul.addr %s370, 54
          %s372 = smul.addr %s371, 8
          %s373 = scalar_lea.vmem %s1, %s372
        $region64: #{tpu_custom_call.1} parent=55 // pred_fallthru
          _
      $region56: #{tpu_custom_call.1} parent=5 // pred_fallthru
        _
      %p374 = scmp.le.s32.totalorder 1, %s21
      %p375 = scmp.lt.s32.totalorder %s21, 3
      %p376 = pnand %p374, %p375
      %p377 = pneg %p376
      // Predicated region
      $region65: #{tpu_custom_call.1} parent=5 // pred_check
        _
      $region66: #{tpu_custom_call.1} parent=5 // pred_check_branch
        %379 = sbr.rel (%p376) target = $region68
      $region67: #{tpu_custom_call.1} parent=5 // pred_region
        %s380 = ssub.s32 %s21, 1
        %p381 = scmp.lt.s32.totalorder %s26, 1
        %s382 = scalar_select %p381, %s26, 1
        %s383 = smul.addr %s382, 32
        %s384 = smul.addr %s383, 8
        %s385 = scalar_lea.vmem %s0, %s384
        %p386 = pneg %p47
        %p387 = pneg %p44
        %p388 = scmp.lt.s32.totalorder %s26, 1
        %s389 = scalar_select %p388, %s26, 1
        %s390 = smul.addr %s389, 54
        %s391 = smul.addr %s390, 8
        %s392 = scalar_lea.vmem %s1, %s391
        %p393 = pneg %p73
        %p394 = pneg %p70
        %p395 = pneg %p94
        %p396 = pneg %p91
        %p397 = pneg %p115
        %p398 = pneg %p112
        %p399 = pneg %p136
        %p400 = pneg %p133
        %p401 = pneg %p157
        %p402 = pneg %p154
        %p403 = pneg %p178
        %p404 = pneg %p175
        %p405 = pneg %p199
        %p406 = pneg %p196
        %p407 = pneg %p220
        %p408 = pneg %p217
        %p409 = pneg %p241
        %p410 = pneg %p238
        %p411 = pneg %p262
        %p412 = pneg %p259
        %p413 = pneg %p283
        %p414 = pneg %p280
        %p415 = pneg %p309
        %p416 = pneg %p306
        %s417 = sand.u32 %s296, 1
        %s418 = scalar_lea.sflag [#allocation4], %s417
        %s419 = sand.u32 %s296, 1
        %s420 = smul.addr %s419, 256
        %s421 = scalar_lea.vmem [#allocation3], %s420
        %p422 = scmp.lt.s32.totalorder %s26, 1
        %s423 = scalar_select %p422, %s26, 1
        %s424 = smul.addr %s423, 32
        %s425 = smul.addr %s424, 8
        %s426 = scalar_lea.vmem %s0, %s425
        %p427 = scmp.lt.s32.totalorder %s26, 1
        %s428 = scalar_select %p427, %s26, 1
        %s429 = smul.addr %s428, 54
        %s430 = smul.addr %s429, 8
        %s431 = scalar_lea.vmem %s1, %s430
        %v433 = vld [vmem:[%s426] sm:$0xff]
        %v434 = vld [vmem:[%s426 + $0x8] sm:$0xff]
        %v435 = vld [vmem:[%s426 + $0x10] sm:$0xff]
        %v436 = vld [vmem:[%s426 + $0x18] sm:$0xff]
        %v437 = vld [vmem:[%s426 + $0x20] sm:$0xff]
        %v438 = vld [vmem:[%s426 + $0x28] sm:$0xff]
        %v439 = vld [vmem:[%s426 + $0x30] sm:$0xff]
        %v440 = vld [vmem:[%s426 + $0x38] sm:$0xff]
        %v441 = vld [vmem:[%s426 + $0x40] sm:$0xff]
        %v442 = vld [vmem:[%s426 + $0x48] sm:$0xff]
        %v443 = vld [vmem:[%s426 + $0x50] sm:$0xff]
        %v444 = vld [vmem:[%s426 + $0x58] sm:$0xff]
        %v445 = vld [vmem:[%s426 + $0x60] sm:$0xff]
        %v446 = vld [vmem:[%s426 + $0x68] sm:$0xff]
        %v447 = vld [vmem:[%s426 + $0x70] sm:$0xff]
        %v448 = vld [vmem:[%s426 + $0x78] sm:$0xff]
        %v449 = vld [vmem:[%s426 + $0x80] sm:$0xff]
        %v450 = vld [vmem:[%s426 + $0x88] sm:$0xff]
        %v451 = vld [vmem:[%s426 + $0x90] sm:$0xff]
        %v452 = vld [vmem:[%s426 + $0x98] sm:$0xff]
        %v453 = vld [vmem:[%s426 + $0xa0] sm:$0xff]
        %v454 = vld [vmem:[%s426 + $0xa8] sm:$0xff]
        %v455 = vld [vmem:[%s426 + $0xb0] sm:$0xff]
        %v456 = vld [vmem:[%s426 + $0xb8] sm:$0xff]
        %v457 = vld [vmem:[%s426 + $0xc0] sm:$0xff]
        %v458 = vld [vmem:[%s426 + $0xc8] sm:$0xff]
        %v459 = vld [vmem:[%s426 + $0xd0] sm:$0xff]
        %v460 = vld [vmem:[%s426 + $0xd8] sm:$0xff]
        %v461 = vld [vmem:[%s426 + $0xe0] sm:$0xff]
        %v462 = vld [vmem:[%s426 + $0xe8] sm:$0xff]
        %v463 = vld [vmem:[%s426 + $0xf0] sm:$0xff]
        %v464 = vld [vmem:[%s426 + $0xf8] sm:$0xff]
        %v465 = vpack.c.bf16 %v434, %v433
        %v466 = vpack.c.bf16 %v436, %v435
        %v467 = vpack.c.bf16 %v438, %v437
        %v468 = vpack.c.bf16 %v440, %v439
        %v469 = vpack.c.bf16 %v442, %v441
        %v470 = vpack.c.bf16 %v444, %v443
        %v471 = vpack.c.bf16 %v446, %v445
        %v472 = vpack.c.bf16 %v448, %v447
        %v473 = vpack.c.bf16 %v450, %v449
        %v474 = vpack.c.bf16 %v452, %v451
        %v475 = vpack.c.bf16 %v454, %v453
        %v476 = vpack.c.bf16 %v456, %v455
        %v477 = vpack.c.bf16 %v458, %v457
        %v478 = vpack.c.bf16 %v460, %v459
        %v479 = vpack.c.bf16 %v462, %v461
        %v480 = vpack.c.bf16 %v464, %v463
        %v481 = vld [vmem:[%s2] sm:$0xf]
        %v482 = vld [vmem:[%s2 + $0x4] sm:$0xf]
        %v483 = vld [vmem:[%s2 + $0x8] sm:$0xf]
        %v484 = vld [vmem:[%s2 + $0xc] sm:$0xf]
        %v485 = vld [vmem:[%s3] sm:$0x1]
        %v487 = vperm.slane %v485, 0
        %v493 = vunpack.c.l.b16 %v481
        %v494 = vunpack.c.l.b16 %v482
        %v495 = vunpack.c.l.b16 %v483
        %v496 = vunpack.c.l.b16 %v484
        %v497 = vpack.c.b16 %v494, %v493
        %v498 = vpack.c.b16 %v496, %v495
        %vm501 = vcmask 261120
        %v503 = vsel %vm501, %v465, 0
        %v506 = vsel %vm501, %v466, 0
        %v509 = vsel %vm501, %v467, 0
        %v512 = vsel %vm501, %v468, 0
        %v515 = vsel %vm501, %v469, 0
        %v518 = vsel %vm501, %v470, 0
        %v521 = vsel %vm501, %v471, 0
        %v524 = vsel %vm501, %v472, 0
        %v527 = vsel %vm501, %v473, 0
        %v530 = vsel %vm501, %v474, 0
        %v533 = vsel %vm501, %v475, 0
        %v536 = vsel %vm501, %v476, 0
        %v539 = vsel %vm501, %v477, 0
        %v542 = vsel %vm501, %v478, 0
        %v545 = vsel %vm501, %v479, 0
        %v548 = vsel %vm501, %v480, 0
        %550 = vmatpush.bf16.msra.mxu0 0
        %551 = vmatpush.bf16.msra.mxu0 0
        %552 = vmatpush.bf16.msra.mxu0 0
        %553 = vmatpush.bf16.msra.mxu0 0
        %554 = vmatpush.bf16.msra.mxu0 0
        %555 = vmatpush.bf16.msra.mxu0 0
        %556 = vmatpush.bf16.msra.mxu0 %v498
        %557 = vmatpush.bf16.msra.mxu0 %v497
        %558 = vmatmul.bf16.gmra.mxu0 %v503
        %v559 = vpop.f32.mrf.mxu0
        %v560 = vadd.f32 %v487, %v559
        %v561 = vpop.f32.mrf.mxu0
        %v562 = vadd.f32 %v487, %v561
        %563 = vmatmul.bf16.gmra.mxu0 %v506
        %v564 = vpop.f32.mrf.mxu0
        %v565 = vadd.f32 %v487, %v564
        %v566 = vpop.f32.mrf.mxu0
        %v567 = vadd.f32 %v487, %v566
        %568 = vmatmul.bf16.gmra.mxu0 %v509
        %v569 = vpop.f32.mrf.mxu0
        %v570 = vadd.f32 %v487, %v569
        %v571 = vpop.f32.mrf.mxu0
        %v572 = vadd.f32 %v487, %v571
        %573 = vmatmul.bf16.gmra.mxu0 %v512
        %v574 = vpop.f32.mrf.mxu0
        %v575 = vadd.f32 %v487, %v574
        %v576 = vpop.f32.mrf.mxu0
        %v577 = vadd.f32 %v487, %v576
        %578 = vmatmul.bf16.gmra.mxu0 %v515
        %v579 = vpop.f32.mrf.mxu0
        %v580 = vadd.f32 %v487, %v579
        %v581 = vpop.f32.mrf.mxu0
        %v582 = vadd.f32 %v487, %v581
        %583 = vmatmul.bf16.gmra.mxu0 %v518
        %v584 = vpop.f32.mrf.mxu0
        %v585 = vadd.f32 %v487, %v584
        %v586 = vpop.f32.mrf.mxu0
        %v587 = vadd.f32 %v487, %v586
        %588 = vmatmul.bf16.gmra.mxu0 %v521
        %v589 = vpop.f32.mrf.mxu0
        %v590 = vadd.f32 %v487, %v589
        %v591 = vpop.f32.mrf.mxu0
        %v592 = vadd.f32 %v487, %v591
        %593 = vmatmul.bf16.gmra.mxu0 %v524
        %v594 = vpop.f32.mrf.mxu0
        %v595 = vadd.f32 %v487, %v594
        %v596 = vpop.f32.mrf.mxu0
        %v597 = vadd.f32 %v487, %v596
        %598 = vmatmul.bf16.gmra.mxu0 %v527
        %v599 = vpop.f32.mrf.mxu0
        %v600 = vadd.f32 %v487, %v599
        %v601 = vpop.f32.mrf.mxu0
        %v602 = vadd.f32 %v487, %v601
        %603 = vmatmul.bf16.gmra.mxu0 %v530
        %v604 = vpop.f32.mrf.mxu0
        %v605 = vadd.f32 %v487, %v604
        %v606 = vpop.f32.mrf.mxu0
        %v607 = vadd.f32 %v487, %v606
        %608 = vmatmul.bf16.gmra.mxu0 %v533
        %v609 = vpop.f32.mrf.mxu0
        %v610 = vadd.f32 %v487, %v609
        %v611 = vpop.f32.mrf.mxu0
        %v612 = vadd.f32 %v487, %v611
        %613 = vmatmul.bf16.gmra.mxu0 %v536
        %v614 = vpop.f32.mrf.mxu0
        %v615 = vadd.f32 %v487, %v614
        %v616 = vpop.f32.mrf.mxu0
        %v617 = vadd.f32 %v487, %v616
        %618 = vmatmul.bf16.gmra.mxu0 %v539
        %v619 = vpop.f32.mrf.mxu0
        %v620 = vadd.f32 %v487, %v619
        %v621 = vpop.f32.mrf.mxu0
        %v622 = vadd.f32 %v487, %v621
        %623 = vmatmul.bf16.gmra.mxu0 %v542
        %v624 = vpop.f32.mrf.mxu0
        %v625 = vadd.f32 %v487, %v624
        %v626 = vpop.f32.mrf.mxu0
        %v627 = vadd.f32 %v487, %v626
        %628 = vmatmul.bf16.gmra.mxu0 %v545
        %v629 = vpop.f32.mrf.mxu0
        %v630 = vadd.f32 %v487, %v629
        %v631 = vpop.f32.mrf.mxu0
        %v632 = vadd.f32 %v487, %v631
        %633 = vmatmul.bf16.gmra.mxu0 %v548
        %v634 = vpop.f32.mrf.mxu0
        %v635 = vadd.f32 %v487, %v634
        %v636 = vpop.f32.mrf.mxu0
        %v637 = vadd.f32 %v487, %v636
        %638 = vdwg.mxu0
        %639 = vst.msk [vmem:[#allocation2] sm:$0xff] %vm501, 0.0
        %640 = vst.msk [vmem:[#allocation2 + $0x8] sm:$0xff] %vm501, 0.0
        %vm641 = vcmask 254976
        %642 = vst.msk [vmem:[#allocation2 + $0x10] sm:$0x3] %vm641, 0.0
        %643 = vst.msk [vmem:[#allocation2 + $0x18] sm:$0xff] %vm501, 0.0
        %644 = vst.msk [vmem:[#allocation2 + $0x20] sm:$0xff] %vm501, 0.0
        %645 = vst.msk [vmem:[#allocation2 + $0x28] sm:$0x3] %vm641, 0.0
        %646 = vst.msk [vmem:[#allocation2 + $0x30] sm:$0xff] %vm501, 0.0
        %647 = vst.msk [vmem:[#allocation2 + $0x38] sm:$0xff] %vm501, 0.0
        %648 = vst.msk [vmem:[#allocation2 + $0x40] sm:$0x3] %vm641, 0.0
        %649 = vst.msk [vmem:[#allocation2 + $0x48] sm:$0xff] %vm501, 0.0
        %650 = vst.msk [vmem:[#allocation2 + $0x50] sm:$0xff] %vm501, 0.0
        %651 = vst.msk [vmem:[#allocation2 + $0x58] sm:$0x3] %vm641, 0.0
        %652 = vst.msk [vmem:[#allocation2 + $0x60] sm:$0xff] %vm501, 0.0
        %653 = vst.msk [vmem:[#allocation2 + $0x68] sm:$0xff] %vm501, 0.0
        %654 = vst.msk [vmem:[#allocation2 + $0x70] sm:$0x3] %vm641, 0.0
        %655 = vst.msk [vmem:[#allocation2 + $0x78] sm:$0xff] %vm501, 0.0
        %656 = vst.msk [vmem:[#allocation2 + $0x80] sm:$0xff] %vm501, 0.0
        %657 = vst.msk [vmem:[#allocation2 + $0x88] sm:$0x3] %vm641, 0.0
        %658 = vst.msk [vmem:[#allocation2 + $0x90] sm:$0xff] %vm501, 0.0
        %659 = vst.msk [vmem:[#allocation2 + $0x98] sm:$0xff] %vm501, 0.0
        %660 = vst.msk [vmem:[#allocation2 + $0xa0] sm:$0x3] %vm641, 0.0
        %661 = vst.msk [vmem:[#allocation2 + $0xa8] sm:$0xff] %vm501, 0.0
        %662 = vst.msk [vmem:[#allocation2 + $0xb0] sm:$0xff] %vm501, 0.0
        %663 = vst.msk [vmem:[#allocation2 + $0xb8] sm:$0x3] %vm641, 0.0
        %664 = vst.msk [vmem:[#allocation2 + $0xc0] sm:$0xff] %vm501, 0.0
        %665 = vst.msk [vmem:[#allocation2 + $0xc8] sm:$0xff] %vm501, 0.0
        %666 = vst.msk [vmem:[#allocation2 + $0xd0] sm:$0x3] %vm641, 0.0
        %667 = vst.msk [vmem:[#allocation2 + $0xd8] sm:$0xff] %vm501, 0.0
        %668 = vst.msk [vmem:[#allocation2 + $0xe0] sm:$0xff] %vm501, 0.0
        %669 = vst.msk [vmem:[#allocation2 + $0xe8] sm:$0x3] %vm641, 0.0
        %670 = vst.msk [vmem:[#allocation2 + $0xf0] sm:$0xff] %vm501, 0.0
        %671 = vst.msk [vmem:[#allocation2 + $0xf8] sm:$0xff] %vm501, 0.0
        %672 = vst.msk [vmem:[#allocation2 + $0x100] sm:$0x3] %vm641, 0.0
        %673 = vst.msk [vmem:[#allocation2 + $0x108] sm:$0xff] %vm501, 0.0
        %674 = vst.msk [vmem:[#allocation2 + $0x110] sm:$0xff] %vm501, 0.0
        %675 = vst.msk [vmem:[#allocation2 + $0x118] sm:$0x3] %vm641, 0.0
        %676 = vst.msk [vmem:[#allocation2 + $0x120] sm:$0xff] %vm501, 0.0
        %677 = vst.msk [vmem:[#allocation2 + $0x128] sm:$0xff] %vm501, 0.0
        %678 = vst.msk [vmem:[#allocation2 + $0x130] sm:$0x3] %vm641, 0.0
        %679 = vst.msk [vmem:[#allocation2 + $0x138] sm:$0xff] %vm501, 0.0
        %680 = vst.msk [vmem:[#allocation2 + $0x140] sm:$0xff] %vm501, 0.0
        %681 = vst.msk [vmem:[#allocation2 + $0x148] sm:$0x3] %vm641, 0.0
        %682 = vst.msk [vmem:[#allocation2 + $0x150] sm:$0xff] %vm501, 0.0
        %683 = vst.msk [vmem:[#allocation2 + $0x158] sm:$0xff] %vm501, 0.0
        %684 = vst.msk [vmem:[#allocation2 + $0x160] sm:$0x3] %vm641, 0.0
        %685 = vst.msk [vmem:[#allocation2 + $0x168] sm:$0xff] %vm501, 0.0
        %686 = vst.msk [vmem:[#allocation2 + $0x170] sm:$0xff] %vm501, 0.0
        %687 = vst.msk [vmem:[#allocation2 + $0x178] sm:$0x3] %vm641, 0.0
        %688 = vst.msk [vmem:[#allocation2 + $0x180] sm:$0xff] %vm501, 0.0
        %689 = vst.msk [vmem:[#allocation2 + $0x188] sm:$0xff] %vm501, 0.0
        %690 = vst.msk [vmem:[#allocation2 + $0x190] sm:$0x3] %vm641, 0.0
        %691 = vst.msk [vmem:[#allocation2 + $0x198] sm:$0xff] %vm501, 0.0
        %692 = vst.msk [vmem:[#allocation2 + $0x1a0] sm:$0xff] %vm501, 0.0
        %693 = vst.msk [vmem:[#allocation2 + $0x1a8] sm:$0x3] %vm641, 0.0
        %s694 = scalar_lea.vmem [#allocation2], 24
        %695 = vst.msk [vmem:[%s694 + $0x1] sm:$0xff] %vm501, %v560
        %696 = vst.msk [vmem:[%s694 + $0x9] sm:$0xff] %vm501, %v562
        %697 = vst.msk [vmem:[%s694 + $0x19] sm:$0xff] %vm501, %v565
        %698 = vst.msk [vmem:[%s694 + $0x21] sm:$0xff] %vm501, %v567
        %699 = vst.msk [vmem:[%s694 + $0x31] sm:$0xff] %vm501, %v570
        %700 = vst.msk [vmem:[%s694 + $0x39] sm:$0xff] %vm501, %v572
        %701 = vst.msk [vmem:[%s694 + $0x49] sm:$0xff] %vm501, %v575
        %702 = vst.msk [vmem:[%s694 + $0x51] sm:$0xff] %vm501, %v577
        %703 = vst.msk [vmem:[%s694 + $0x61] sm:$0xff] %vm501, %v580
        %704 = vst.msk [vmem:[%s694 + $0x69] sm:$0xff] %vm501, %v582
        %705 = vst.msk [vmem:[%s694 + $0x79] sm:$0xff] %vm501, %v585
        %706 = vst.msk [vmem:[%s694 + $0x81] sm:$0xff] %vm501, %v587
        %707 = vst.msk [vmem:[%s694 + $0x91] sm:$0xff] %vm501, %v590
        %708 = vst.msk [vmem:[%s694 + $0x99] sm:$0xff] %vm501, %v592
        %709 = vst.msk [vmem:[%s694 + $0xa9] sm:$0xff] %vm501, %v595
        %710 = vst.msk [vmem:[%s694 + $0xb1] sm:$0xff] %vm501, %v597
        %711 = vst.msk [vmem:[%s694 + $0xc1] sm:$0xff] %vm501, %v600
        %712 = vst.msk [vmem:[%s694 + $0xc9] sm:$0xff] %vm501, %v602
        %713 = vst.msk [vmem:[%s694 + $0xd9] sm:$0xff] %vm501, %v605
        %714 = vst.msk [vmem:[%s694 + $0xe1] sm:$0xff] %vm501, %v607
        %715 = vst.msk [vmem:[%s694 + $0xf1] sm:$0xff] %vm501, %v610
        %716 = vst.msk [vmem:[%s694 + $0xf9] sm:$0xff] %vm501, %v612
        %717 = vst.msk [vmem:[%s694 + $0x109] sm:$0xff] %vm501, %v615
        %718 = vst.msk [vmem:[%s694 + $0x111] sm:$0xff] %vm501, %v617
        %719 = vst.msk [vmem:[%s694 + $0x121] sm:$0xff] %vm501, %v620
        %720 = vst.msk [vmem:[%s694 + $0x129] sm:$0xff] %vm501, %v622
        %721 = vst.msk [vmem:[%s694 + $0x139] sm:$0xff] %vm501, %v625
        %722 = vst.msk [vmem:[%s694 + $0x141] sm:$0xff] %vm501, %v627
        %723 = vst.msk [vmem:[%s694 + $0x151] sm:$0xff] %vm501, %v630
        %724 = vst.msk [vmem:[%s694 + $0x159] sm:$0xff] %vm501, %v632
        %725 = vst.msk [vmem:[%s694 + $0x169] sm:$0xff] %vm501, %v635
        %726 = vst.msk [vmem:[%s694 + $0x171] sm:$0xff] %vm501, %v637
        %v727 = vld [vmem:[%s431] sm:$0xff]
        %v728 = vld [vmem:[%s431 + $0x8] sm:$0xff]
        %v729 = vld [vmem:[%s431 + $0x10] sm:$0x3]
        %v730 = vld [vmem:[%s431 + $0x18] sm:$0xff]
        %v731 = vld [vmem:[%s431 + $0x20] sm:$0xff]
        %v732 = vld [vmem:[%s431 + $0x28] sm:$0x3]
        %v733 = vld [vmem:[%s431 + $0x30] sm:$0xff]
        %v734 = vld [vmem:[%s431 + $0x38] sm:$0xff]
        %v735 = vld [vmem:[%s431 + $0x40] sm:$0x3]
        %v736 = vld [vmem:[%s431 + $0x48] sm:$0xff]
        %v737 = vld [vmem:[%s431 + $0x50] sm:$0xff]
        %v738 = vld [vmem:[%s431 + $0x58] sm:$0x3]
        %v739 = vld [vmem:[%s431 + $0x60] sm:$0xff]
        %v740 = vld [vmem:[%s431 + $0x68] sm:$0xff]
        %v741 = vld [vmem:[%s431 + $0x70] sm:$0x3]
        %v742 = vld [vmem:[%s431 + $0x78] sm:$0xff]
        %v743 = vld [vmem:[%s431 + $0x80] sm:$0xff]
        %v744 = vld [vmem:[%s431 + $0x88] sm:$0x3]
        %v745 = vld [vmem:[%s431 + $0x90] sm:$0xff]
        %v746 = vld [vmem:[%s431 + $0x98] sm:$0xff]
        %v747 = vld [vmem:[%s431 + $0xa0] sm:$0x3]
        %v748 = vld [vmem:[%s431 + $0xa8] sm:$0xff]
        %v749 = vld [vmem:[%s431 + $0xb0] sm:$0xff]
        %v750 = vld [vmem:[%s431 + $0xb8] sm:$0x3]
        %v751 = vld [vmem:[%s431 + $0xc0] sm:$0xff]
        %v752 = vld [vmem:[%s431 + $0xc8] sm:$0xff]
        %v753 = vld [vmem:[%s431 + $0xd0] sm:$0x3]
        %v754 = vld [vmem:[%s431 + $0xd8] sm:$0xff]
        %v755 = vld [vmem:[%s431 + $0xe0] sm:$0xff]
        %v756 = vld [vmem:[%s431 + $0xe8] sm:$0x3]
        %v757 = vld [vmem:[%s431 + $0xf0] sm:$0xff]
        %v758 = vld [vmem:[%s431 + $0xf8] sm:$0xff]
        %v759 = vld [vmem:[%s431 + $0x100] sm:$0x3]
        %v760 = vld [vmem:[%s431 + $0x108] sm:$0xff]
        %v761 = vld [vmem:[%s431 + $0x110] sm:$0xff]
        %v762 = vld [vmem:[%s431 + $0x118] sm:$0x3]
        %v763 = vld [vmem:[%s431 + $0x120] sm:$0xff]
        %v764 = vld [vmem:[%s431 + $0x128] sm:$0xff]
        %v765 = vld [vmem:[%s431 + $0x130] sm:$0x3]
        %v766 = vld [vmem:[%s431 + $0x138] sm:$0xff]
        %v767 = vld [vmem:[%s431 + $0x140] sm:$0xff]
        %v768 = vld [vmem:[%s431 + $0x148] sm:$0x3]
        %v769 = vld [vmem:[%s431 + $0x150] sm:$0xff]
        %v770 = vld [vmem:[%s431 + $0x158] sm:$0xff]
        %v771 = vld [vmem:[%s431 + $0x160] sm:$0x3]
        %v772 = vld [vmem:[%s431 + $0x168] sm:$0xff]
        %v773 = vld [vmem:[%s431 + $0x170] sm:$0xff]
        %v774 = vld [vmem:[%s431 + $0x178] sm:$0x3]
        %v775 = vld [vmem:[%s431 + $0x180] sm:$0xff]
        %v776 = vld [vmem:[%s431 + $0x188] sm:$0xff]
        %v777 = vld [vmem:[%s431 + $0x190] sm:$0x3]
        %v778 = vld [vmem:[%s431 + $0x198] sm:$0xff]
        %v779 = vld [vmem:[%s431 + $0x1a0] sm:$0xff]
        %v780 = vld [vmem:[%s431 + $0x1a8] sm:$0x3]
        %v781 = vld [vmem:[#allocation2] sm:$0xff]
        %v782 = vld [vmem:[#allocation2 + $0x8] sm:$0xff]
        %v783 = vld [vmem:[#allocation2 + $0x10] sm:$0x3]
        %v784 = vld [vmem:[#allocation2 + $0x18] sm:$0xff]
        %v785 = vld [vmem:[#allocation2 + $0x20] sm:$0xff]
        %v786 = vld [vmem:[#allocation2 + $0x28] sm:$0x3]
        %v787 = vld [vmem:[#allocation2 + $0x30] sm:$0xff]
        %v788 = vld [vmem:[#allocation2 + $0x38] sm:$0xff]
        %v789 = vld [vmem:[#allocation2 + $0x40] sm:$0x3]
        %v790 = vld [vmem:[#allocation2 + $0x48] sm:$0xff]
        %v791 = vld [vmem:[#allocation2 + $0x50] sm:$0xff]
        %v792 = vld [vmem:[#allocation2 + $0x58] sm:$0x3]
        %v793 = vld [vmem:[#allocation2 + $0x60] sm:$0xff]
        %v794 = vld [vmem:[#allocation2 + $0x68] sm:$0xff]
        %v795 = vld [vmem:[#allocation2 + $0x70] sm:$0x3]
        %v796 = vld [vmem:[#allocation2 + $0x78] sm:$0xff]
        %v797 = vld [vmem:[#allocation2 + $0x80] sm:$0xff]
        %v798 = vld [vmem:[#allocation2 + $0x88] sm:$0x3]
        %v799 = vld [vmem:[#allocation2 + $0x90] sm:$0xff]
        %v800 = vld [vmem:[#allocation2 + $0x98] sm:$0xff]
        %v801 = vld [vmem:[#allocation2 + $0xa0] sm:$0x3]
        %v802 = vld [vmem:[#allocation2 + $0xa8] sm:$0xff]
        %v803 = vld [vmem:[#allocation2 + $0xb0] sm:$0xff]
        %v804 = vld [vmem:[#allocation2 + $0xb8] sm:$0x3]
        %v805 = vld [vmem:[#allocation2 + $0xc0] sm:$0xff]
        %v806 = vld [vmem:[#allocation2 + $0xc8] sm:$0xff]
        %v807 = vld [vmem:[#allocation2 + $0xd0] sm:$0x3]
        %v808 = vld [vmem:[#allocation2 + $0xd8] sm:$0xff]
        %v809 = vld [vmem:[#allocation2 + $0xe0] sm:$0xff]
        %v810 = vld [vmem:[#allocation2 + $0xe8] sm:$0x3]
        %v811 = vld [vmem:[#allocation2 + $0xf0] sm:$0xff]
        %v812 = vld [vmem:[#allocation2 + $0xf8] sm:$0xff]
        %v813 = vld [vmem:[#allocation2 + $0x100] sm:$0x3]
        %v814 = vld [vmem:[#allocation2 + $0x108] sm:$0xff]
        %v815 = vld [vmem:[#allocation2 + $0x110] sm:$0xff]
        %v816 = vld [vmem:[#allocation2 + $0x118] sm:$0x3]
        %v817 = vld [vmem:[#allocation2 + $0x120] sm:$0xff]
        %v818 = vld [vmem:[#allocation2 + $0x128] sm:$0xff]
        %v819 = vld [vmem:[#allocation2 + $0x130] sm:$0x3]
        %v820 = vld [vmem:[#allocation2 + $0x138] sm:$0xff]
        %v821 = vld [vmem:[#allocation2 + $0x140] sm:$0xff]
        %v822 = vld [vmem:[#allocation2 + $0x148] sm:$0x3]
        %v823 = vld [vmem:[#allocation2 + $0x150] sm:$0xff]
        %v824 = vld [vmem:[#allocation2 + $0x158] sm:$0xff]
        %v825 = vld [vmem:[#allocation2 + $0x160] sm:$0x3]
        %v826 = vld [vmem:[#allocation2 + $0x168] sm:$0xff]
        %v827 = vld [vmem:[#allocation2 + $0x170] sm:$0xff]
        %v828 = vld [vmem:[#allocation2 + $0x178] sm:$0x3]
        %v829 = vld [vmem:[#allocation2 + $0x180] sm:$0xff]
        %v830 = vld [vmem:[#allocation2 + $0x188] sm:$0xff]
        %v831 = vld [vmem:[#allocation2 + $0x190] sm:$0x3]
        %v832 = vld [vmem:[#allocation2 + $0x198] sm:$0xff]
        %v833 = vld [vmem:[#allocation2 + $0x1a0] sm:$0xff]
        %v834 = vld [vmem:[#allocation2 + $0x1a8] sm:$0x3]
        %vm883 = vcmask 1046528
        %v884 = vrot.slane %v727, 1
        %v885 = vrot.slane %v728, 1
        %v886 = vsel %vm883, %v884, %v885
        %v887 = vrot.slane %v729, 1
        %v888 = vsel %vm883, %v885, %v887
        %v889 = vrot.slane %v730, 1
        %v890 = vrot.slane %v731, 1
        %v891 = vsel %vm883, %v889, %v890
        %v892 = vrot.slane %v732, 1
        %v893 = vsel %vm883, %v890, %v892
        %v894 = vrot.slane %v733, 1
        %v895 = vrot.slane %v734, 1
        %v896 = vsel %vm883, %v894, %v895
        %v897 = vrot.slane %v735, 1
        %v898 = vsel %vm883, %v895, %v897
        %v899 = vrot.slane %v736, 1
        %v900 = vrot.slane %v737, 1
        %v901 = vsel %vm883, %v899, %v900
        %v902 = vrot.slane %v738, 1
        %v903 = vsel %vm883, %v900, %v902
        %v904 = vrot.slane %v739, 1
        %v905 = vrot.slane %v740, 1
        %v906 = vsel %vm883, %v904, %v905
        %v907 = vrot.slane %v741, 1
        %v908 = vsel %vm883, %v905, %v907
        %v909 = vrot.slane %v742, 1
        %v910 = vrot.slane %v743, 1
        %v911 = vsel %vm883, %v909, %v910
        %v912 = vrot.slane %v744, 1
        %v913 = vsel %vm883, %v910, %v912
        %v914 = vrot.slane %v745, 1
        %v915 = vrot.slane %v746, 1
        %v916 = vsel %vm883, %v914, %v915
        %v917 = vrot.slane %v747, 1
        %v918 = vsel %vm883, %v915, %v917
        %v919 = vrot.slane %v748, 1
        %v920 = vrot.slane %v749, 1
        %v921 = vsel %vm883, %v919, %v920
        %v922 = vrot.slane %v750, 1
        %v923 = vsel %vm883, %v920, %v922
        %v924 = vrot.slane %v751, 1
        %v925 = vrot.slane %v752, 1
        %v926 = vsel %vm883, %v924, %v925
        %v927 = vrot.slane %v753, 1
        %v928 = vsel %vm883, %v925, %v927
        %v929 = vrot.slane %v754, 1
        %v930 = vrot.slane %v755, 1
        %v931 = vsel %vm883, %v929, %v930
        %v932 = vrot.slane %v756, 1
        %v933 = vsel %vm883, %v930, %v932
        %v934 = vrot.slane %v757, 1
        %v935 = vrot.slane %v758, 1
        %v936 = vsel %vm883, %v934, %v935
        %v937 = vrot.slane %v759, 1
        %v938 = vsel %vm883, %v935, %v937
        %v939 = vrot.slane %v760, 1
        %v940 = vrot.slane %v761, 1
        %v941 = vsel %vm883, %v939, %v940
        %v942 = vrot.slane %v762, 1
        %v943 = vsel %vm883, %v940, %v942
        %v944 = vrot.slane %v763, 1
        %v945 = vrot.slane %v764, 1
        %v946 = vsel %vm883, %v944, %v945
        %v947 = vrot.slane %v765, 1
        %v948 = vsel %vm883, %v945, %v947
        %v949 = vrot.slane %v766, 1
        %v950 = vrot.slane %v767, 1
        %v951 = vsel %vm883, %v949, %v950
        %v952 = vrot.slane %v768, 1
        %v953 = vsel %vm883, %v950, %v952
        %v954 = vrot.slane %v769, 1
        %v955 = vrot.slane %v770, 1
        %v956 = vsel %vm883, %v954, %v955
        %v957 = vrot.slane %v771, 1
        %v958 = vsel %vm883, %v955, %v957
        %v959 = vrot.slane %v772, 1
        %v960 = vrot.slane %v773, 1
        %v961 = vsel %vm883, %v959, %v960
        %v962 = vrot.slane %v774, 1
        %v963 = vsel %vm883, %v960, %v962
        %v1012 = vrot.slane %v781, 1
        %v1013 = vrot.slane %v782, 1
        %v1014 = vsel %vm883, %v1012, %v1013
        %v1015 = vrot.slane %v783, 1
        %v1016 = vsel %vm883, %v1013, %v1015
        %v1017 = vrot.slane %v784, 1
        %v1018 = vrot.slane %v785, 1
        %v1019 = vsel %vm883, %v1017, %v1018
        %v1020 = vrot.slane %v786, 1
        %v1021 = vsel %vm883, %v1018, %v1020
        %v1022 = vrot.slane %v787, 1
        %v1023 = vrot.slane %v788, 1
        %v1024 = vsel %vm883, %v1022, %v1023
        %v1025 = vrot.slane %v789, 1
        %v1026 = vsel %vm883, %v1023, %v1025
        %v1027 = vrot.slane %v790, 1
        %v1028 = vrot.slane %v791, 1
        %v1029 = vsel %vm883, %v1027, %v1028
        %v1030 = vrot.slane %v792, 1
        %v1031 = vsel %vm883, %v1028, %v1030
        %v1032 = vrot.slane %v793, 1
        %v1033 = vrot.slane %v794, 1
        %v1034 = vsel %vm883, %v1032, %v1033
        %v1035 = vrot.slane %v795, 1
        %v1036 = vsel %vm883, %v1033, %v1035
        %v1037 = vrot.slane %v796, 1
        %v1038 = vrot.slane %v797, 1
        %v1039 = vsel %vm883, %v1037, %v1038
        %v1040 = vrot.slane %v798, 1
        %v1041 = vsel %vm883, %v1038, %v1040
        %v1042 = vrot.slane %v799, 1
        %v1043 = vrot.slane %v800, 1
        %v1044 = vsel %vm883, %v1042, %v1043
        %v1045 = vrot.slane %v801, 1
        %v1046 = vsel %vm883, %v1043, %v1045
        %v1047 = vrot.slane %v802, 1
        %v1048 = vrot.slane %v803, 1
        %v1049 = vsel %vm883, %v1047, %v1048
        %v1050 = vrot.slane %v804, 1
        %v1051 = vsel %vm883, %v1048, %v1050
        %v1052 = vrot.slane %v805, 1
        %v1053 = vrot.slane %v806, 1
        %v1054 = vsel %vm883, %v1052, %v1053
        %v1055 = vrot.slane %v807, 1
        %v1056 = vsel %vm883, %v1053, %v1055
        %v1057 = vrot.slane %v808, 1
        %v1058 = vrot.slane %v809, 1
        %v1059 = vsel %vm883, %v1057, %v1058
        %v1060 = vrot.slane %v810, 1
        %v1061 = vsel %vm883, %v1058, %v1060
        %v1062 = vrot.slane %v811, 1
        %v1063 = vrot.slane %v812, 1
        %v1064 = vsel %vm883, %v1062, %v1063
        %v1065 = vrot.slane %v813, 1
        %v1066 = vsel %vm883, %v1063, %v1065
        %v1067 = vrot.slane %v814, 1
        %v1068 = vrot.slane %v815, 1
        %v1069 = vsel %vm883, %v1067, %v1068
        %v1070 = vrot.slane %v816, 1
        %v1071 = vsel %vm883, %v1068, %v1070
        %v1072 = vrot.slane %v817, 1
        %v1073 = vrot.slane %v818, 1
        %v1074 = vsel %vm883, %v1072, %v1073
        %v1075 = vrot.slane %v819, 1
        %v1076 = vsel %vm883, %v1073, %v1075
        %v1077 = vrot.slane %v820, 1
        %v1078 = vrot.slane %v821, 1
        %v1079 = vsel %vm883, %v1077, %v1078
        %v1080 = vrot.slane %v822, 1
        %v1081 = vsel %vm883, %v1078, %v1080
        %v1082 = vrot.slane %v823, 1
        %v1083 = vrot.slane %v824, 1
        %v1084 = vsel %vm883, %v1082, %v1083
        %v1085 = vrot.slane %v825, 1
        %v1086 = vsel %vm883, %v1083, %v1085
        %v1087 = vrot.slane %v826, 1
        %v1088 = vrot.slane %v827, 1
        %v1089 = vsel %vm883, %v1087, %v1088
        %v1090 = vrot.slane %v828, 1
        %v1091 = vsel %vm883, %v1088, %v1090
        %vm1092 = vcmask 1045504
        %v1093 = vrot.slane %v727, 2
        %v1094 = vrot.slane %v728, 2
        %v1095 = vsel %vm1092, %v1093, %v1094
        %v1096 = vrot.slane %v729, 2
        %v1097 = vsel %vm1092, %v1094, %v1096
        %v1098 = vrot.slane %v730, 2
        %v1099 = vrot.slane %v731, 2
        %v1100 = vsel %vm1092, %v1098, %v1099
        %v1101 = vrot.slane %v732, 2
        %v1102 = vsel %vm1092, %v1099, %v1101
        %v1103 = vrot.slane %v733, 2
        %v1104 = vrot.slane %v734, 2
        %v1105 = vsel %vm1092, %v1103, %v1104
        %v1106 = vrot.slane %v735, 2
        %v1107 = vsel %vm1092, %v1104, %v1106
        %v1108 = vrot.slane %v736, 2
        %v1109 = vrot.slane %v737, 2
        %v1110 = vsel %vm1092, %v1108, %v1109
        %v1111 = vrot.slane %v738, 2
        %v1112 = vsel %vm1092, %v1109, %v1111
        %v1113 = vrot.slane %v739, 2
        %v1114 = vrot.slane %v740, 2
        %v1115 = vsel %vm1092, %v1113, %v1114
        %v1116 = vrot.slane %v741, 2
        %v1117 = vsel %vm1092, %v1114, %v1116
        %v1118 = vrot.slane %v742, 2
        %v1119 = vrot.slane %v743, 2
        %v1120 = vsel %vm1092, %v1118, %v1119
        %v1121 = vrot.slane %v744, 2
        %v1122 = vsel %vm1092, %v1119, %v1121
        %v1123 = vrot.slane %v745, 2
        %v1124 = vrot.slane %v746, 2
        %v1125 = vsel %vm1092, %v1123, %v1124
        %v1126 = vrot.slane %v747, 2
        %v1127 = vsel %vm1092, %v1124, %v1126
        %v1128 = vrot.slane %v748, 2
        %v1129 = vrot.slane %v749, 2
        %v1130 = vsel %vm1092, %v1128, %v1129
        %v1131 = vrot.slane %v750, 2
        %v1132 = vsel %vm1092, %v1129, %v1131
        %v1133 = vrot.slane %v751, 2
        %v1134 = vrot.slane %v752, 2
        %v1135 = vsel %vm1092, %v1133, %v1134
        %v1136 = vrot.slane %v753, 2
        %v1137 = vsel %vm1092, %v1134, %v1136
        %v1138 = vrot.slane %v754, 2
        %v1139 = vrot.slane %v755, 2
        %v1140 = vsel %vm1092, %v1138, %v1139
        %v1141 = vrot.slane %v756, 2
        %v1142 = vsel %vm1092, %v1139, %v1141
        %v1143 = vrot.slane %v757, 2
        %v1144 = vrot.slane %v758, 2
        %v1145 = vsel %vm1092, %v1143, %v1144
        %v1146 = vrot.slane %v759, 2
        %v1147 = vsel %vm1092, %v1144, %v1146
        %v1148 = vrot.slane %v760, 2
        %v1149 = vrot.slane %v761, 2
        %v1150 = vsel %vm1092, %v1148, %v1149
        %v1151 = vrot.slane %v762, 2
        %v1152 = vsel %vm1092, %v1149, %v1151
        %v1153 = vrot.slane %v763, 2
        %v1154 = vrot.slane %v764, 2
        %v1155 = vsel %vm1092, %v1153, %v1154
        %v1156 = vrot.slane %v765, 2
        %v1157 = vsel %vm1092, %v1154, %v1156
        %v1158 = vrot.slane %v766, 2
        %v1159 = vrot.slane %v767, 2
        %v1160 = vsel %vm1092, %v1158, %v1159
        %v1161 = vrot.slane %v768, 2
        %v1162 = vsel %vm1092, %v1159, %v1161
        %v1163 = vrot.slane %v769, 2
        %v1164 = vrot.slane %v770, 2
        %v1165 = vsel %vm1092, %v1163, %v1164
        %v1166 = vrot.slane %v771, 2
        %v1167 = vsel %vm1092, %v1164, %v1166
        %v1168 = vrot.slane %v772, 2
        %v1169 = vrot.slane %v773, 2
        %v1170 = vsel %vm1092, %v1168, %v1169
        %v1171 = vrot.slane %v774, 2
        %v1172 = vsel %vm1092, %v1169, %v1171
        %v1173 = vrot.slane %v781, 2
        %v1174 = vrot.slane %v782, 2
        %v1175 = vsel %vm1092, %v1173, %v1174
        %v1176 = vrot.slane %v783, 2
        %v1177 = vsel %vm1092, %v1174, %v1176
        %v1178 = vrot.slane %v784, 2
        %v1179 = vrot.slane %v785, 2
        %v1180 = vsel %vm1092, %v1178, %v1179
        %v1181 = vrot.slane %v786, 2
        %v1182 = vsel %vm1092, %v1179, %v1181
        %v1183 = vrot.slane %v787, 2
        %v1184 = vrot.slane %v788, 2
        %v1185 = vsel %vm1092, %v1183, %v1184
        %v1186 = vrot.slane %v789, 2
        %v1187 = vsel %vm1092, %v1184, %v1186
        %v1188 = vrot.slane %v790, 2
        %v1189 = vrot.slane %v791, 2
        %v1190 = vsel %vm1092, %v1188, %v1189
        %v1191 = vrot.slane %v792, 2
        %v1192 = vsel %vm1092, %v1189, %v1191
        %v1193 = vrot.slane %v793, 2
        %v1194 = vrot.slane %v794, 2
        %v1195 = vsel %vm1092, %v1193, %v1194
        %v1196 = vrot.slane %v795, 2
        %v1197 = vsel %vm1092, %v1194, %v1196
        %v1198 = vrot.slane %v796, 2
        %v1199 = vrot.slane %v797, 2
        %v1200 = vsel %vm1092, %v1198, %v1199
        %v1201 = vrot.slane %v798, 2
        %v1202 = vsel %vm1092, %v1199, %v1201
        %v1203 = vrot.slane %v799, 2
        %v1204 = vrot.slane %v800, 2
        %v1205 = vsel %vm1092, %v1203, %v1204
        %v1206 = vrot.slane %v801, 2
        %v1207 = vsel %vm1092, %v1204, %v1206
        %v1208 = vrot.slane %v802, 2
        %v1209 = vrot.slane %v803, 2
        %v1210 = vsel %vm1092, %v1208, %v1209
        %v1211 = vrot.slane %v804, 2
        %v1212 = vsel %vm1092, %v1209, %v1211
        %v1213 = vrot.slane %v805, 2
        %v1214 = vrot.slane %v806, 2
        %v1215 = vsel %vm1092, %v1213, %v1214
        %v1216 = vrot.slane %v807, 2
        %v1217 = vsel %vm1092, %v1214, %v1216
        %v1218 = vrot.slane %v808, 2
        %v1219 = vrot.slane %v809, 2
        %v1220 = vsel %vm1092, %v1218, %v1219
        %v1221 = vrot.slane %v810, 2
        %v1222 = vsel %vm1092, %v1219, %v1221
        %v1223 = vrot.slane %v811, 2
        %v1224 = vrot.slane %v812, 2
        %v1225 = vsel %vm1092, %v1223, %v1224
        %v1226 = vrot.slane %v813, 2
        %v1227 = vsel %vm1092, %v1224, %v1226
        %v1228 = vrot.slane %v814, 2
        %v1229 = vrot.slane %v815, 2
        %v1230 = vsel %vm1092, %v1228, %v1229
        %v1231 = vrot.slane %v816, 2
        %v1232 = vsel %vm1092, %v1229, %v1231
        %v1233 = vrot.slane %v817, 2
        %v1234 = vrot.slane %v818, 2
        %v1235 = vsel %vm1092, %v1233, %v1234
        %v1236 = vrot.slane %v819, 2
        %v1237 = vsel %vm1092, %v1234, %v1236
        %v1238 = vrot.slane %v820, 2
        %v1239 = vrot.slane %v821, 2
        %v1240 = vsel %vm1092, %v1238, %v1239
        %v1241 = vrot.slane %v822, 2
        %v1242 = vsel %vm1092, %v1239, %v1241
        %v1243 = vrot.slane %v823, 2
        %v1244 = vrot.slane %v824, 2
        %v1245 = vsel %vm1092, %v1243, %v1244
        %v1246 = vrot.slane %v825, 2
        %v1247 = vsel %vm1092, %v1244, %v1246
        %v1248 = vrot.slane %v826, 2
        %v1249 = vrot.slane %v827, 2
        %v1250 = vsel %vm1092, %v1248, %v1249
        %v1251 = vrot.slane %v828, 2
        %v1252 = vsel %vm1092, %v1249, %v1251
        %v1256 = vrot.slane %v775, 1
        %v1257 = vrot.slane %v776, 1
        %v1258 = vsel %vm883, %v1256, %v1257
        %v1259 = vrot.slane %v777, 1
        %v1260 = vsel %vm883, %v1257, %v1259
        %v1296 = vrot.slane %v829, 1
        %v1297 = vrot.slane %v830, 1
        %v1298 = vsel %vm883, %v1296, %v1297
        %v1299 = vrot.slane %v831, 1
        %v1300 = vsel %vm883, %v1297, %v1299
        %v1333 = vrot.slane %v775, 2
        %v1334 = vrot.slane %v776, 2
        %v1335 = vsel %vm1092, %v1333, %v1334
        %v1336 = vrot.slane %v777, 2
        %v1337 = vsel %vm1092, %v1334, %v1336
        %v1338 = vrot.slane %v829, 2
        %v1339 = vrot.slane %v830, 2
        %v1340 = vsel %vm1092, %v1338, %v1339
        %v1341 = vrot.slane %v831, 2
        %v1342 = vsel %vm1092, %v1339, %v1341
        %v1346 = vrot.slane %v778, 1
        %v1347 = vrot.slane %v779, 1
        %v1348 = vsel %vm883, %v1346, %v1347
        %v1349 = vrot.slane %v780, 1
        %v1350 = vsel %vm883, %v1347, %v1349
        %v1354 = vrot.slane %v832, 1
        %v1355 = vrot.slane %v833, 1
        %v1356 = vsel %vm883, %v1354, %v1355
        %v1357 = vrot.slane %v834, 1
        %v1358 = vsel %vm883, %v1355, %v1357
        %v1359 = vrot.slane %v778, 2
        %v1360 = vrot.slane %v779, 2
        %v1361 = vsel %vm1092, %v1359, %v1360
        %v1362 = vrot.slane %v780, 2
        %v1363 = vsel %vm1092, %v1360, %v1362
        %v1396 = vrot.slane %v832, 2
        %v1397 = vrot.slane %v833, 2
        %v1398 = vsel %vm1092, %v1396, %v1397
        %v1399 = vrot.slane %v834, 2
        %v1400 = vsel %vm1092, %v1397, %v1399
        %1433 = vrot.lane.b32.xlu0 %v886, 32
        %v1434 = vpop.permute.xlu0 %1433
        %1435 = vrot.lane.b32.xlu0 %v888, 32
        %v1436 = vpop.permute.xlu0 %1435
        %1437 = vrot.lane.b32.xlu0 %v891, 32
        %v1438 = vpop.permute.xlu0 %1437
        %1439 = vrot.lane.b32.xlu0 %v893, 32
        %v1440 = vpop.permute.xlu0 %1439
        %1441 = vrot.lane.b32.xlu0 %v896, 32
        %v1442 = vpop.permute.xlu0 %1441
        %1443 = vrot.lane.b32.xlu0 %v898, 32
        %v1444 = vpop.permute.xlu0 %1443
        %1445 = vrot.lane.b32.xlu0 %v901, 32
        %v1446 = vpop.permute.xlu0 %1445
        %1447 = vrot.lane.b32.xlu0 %v903, 32
        %v1448 = vpop.permute.xlu0 %1447
        %1449 = vrot.lane.b32.xlu0 %v906, 32
        %v1450 = vpop.permute.xlu0 %1449
        %1451 = vrot.lane.b32.xlu0 %v908, 32
        %v1452 = vpop.permute.xlu0 %1451
        %1453 = vrot.lane.b32.xlu0 %v911, 32
        %v1454 = vpop.permute.xlu0 %1453
        %1455 = vrot.lane.b32.xlu0 %v913, 32
        %v1456 = vpop.permute.xlu0 %1455
        %1457 = vrot.lane.b32.xlu0 %v916, 32
        %v1458 = vpop.permute.xlu0 %1457
        %1459 = vrot.lane.b32.xlu0 %v918, 32
        %v1460 = vpop.permute.xlu0 %1459
        %1461 = vrot.lane.b32.xlu0 %v921, 32
        %v1462 = vpop.permute.xlu0 %1461
        %1463 = vrot.lane.b32.xlu0 %v923, 32
        %v1464 = vpop.permute.xlu0 %1463
        %1465 = vrot.lane.b32.xlu0 %v926, 32
        %v1466 = vpop.permute.xlu0 %1465
        %1467 = vrot.lane.b32.xlu0 %v928, 32
        %v1468 = vpop.permute.xlu0 %1467
        %1469 = vrot.lane.b32.xlu0 %v931, 32
        %v1470 = vpop.permute.xlu0 %1469
        %1471 = vrot.lane.b32.xlu0 %v933, 32
        %v1472 = vpop.permute.xlu0 %1471
        %1473 = vrot.lane.b32.xlu0 %v936, 32
        %v1474 = vpop.permute.xlu0 %1473
        %1475 = vrot.lane.b32.xlu0 %v938, 32
        %v1476 = vpop.permute.xlu0 %1475
        %1477 = vrot.lane.b32.xlu0 %v941, 32
        %v1478 = vpop.permute.xlu0 %1477
        %1479 = vrot.lane.b32.xlu0 %v943, 32
        %v1480 = vpop.permute.xlu0 %1479
        %1481 = vrot.lane.b32.xlu0 %v946, 32
        %v1482 = vpop.permute.xlu0 %1481
        %1483 = vrot.lane.b32.xlu0 %v948, 32
        %v1484 = vpop.permute.xlu0 %1483
        %1485 = vrot.lane.b32.xlu0 %v951, 32
        %v1486 = vpop.permute.xlu0 %1485
        %1487 = vrot.lane.b32.xlu0 %v953, 32
        %v1488 = vpop.permute.xlu0 %1487
        %1489 = vrot.lane.b32.xlu0 %v956, 32
        %v1490 = vpop.permute.xlu0 %1489
        %1491 = vrot.lane.b32.xlu0 %v958, 32
        %v1492 = vpop.permute.xlu0 %1491
        %1493 = vrot.lane.b32.xlu0 %v961, 32
        %v1494 = vpop.permute.xlu0 %1493
        %1495 = vrot.lane.b32.xlu0 %v963, 32
        %v1496 = vpop.permute.xlu0 %1495
        %1529 = vrot.lane.b32.xlu0 %v1095, 64
        %v1530 = vpop.permute.xlu0 %1529
        %1531 = vrot.lane.b32.xlu0 %v1097, 64
        %v1532 = vpop.permute.xlu0 %1531
        %1533 = vrot.lane.b32.xlu0 %v1100, 64
        %v1534 = vpop.permute.xlu0 %1533
        %1535 = vrot.lane.b32.xlu0 %v1102, 64
        %v1536 = vpop.permute.xlu0 %1535
        %1537 = vrot.lane.b32.xlu0 %v1105, 64
        %v1538 = vpop.permute.xlu0 %1537
        %1539 = vrot.lane.b32.xlu0 %v1107, 64
        %v1540 = vpop.permute.xlu0 %1539
        %1541 = vrot.lane.b32.xlu0 %v1110, 64
        %v1542 = vpop.permute.xlu0 %1541
        %1543 = vrot.lane.b32.xlu0 %v1112, 64
        %v1544 = vpop.permute.xlu0 %1543
        %1545 = vrot.lane.b32.xlu0 %v1115, 64
        %v1546 = vpop.permute.xlu0 %1545
        %1547 = vrot.lane.b32.xlu0 %v1117, 64
        %v1548 = vpop.permute.xlu0 %1547
        %1549 = vrot.lane.b32.xlu0 %v1120, 64
        %v1550 = vpop.permute.xlu0 %1549
        %1551 = vrot.lane.b32.xlu0 %v1122, 64
        %v1552 = vpop.permute.xlu0 %1551
        %1553 = vrot.lane.b32.xlu0 %v1125, 64
        %v1554 = vpop.permute.xlu0 %1553
        %1555 = vrot.lane.b32.xlu0 %v1127, 64
        %v1556 = vpop.permute.xlu0 %1555
        %1557 = vrot.lane.b32.xlu0 %v1130, 64
        %v1558 = vpop.permute.xlu0 %1557
        %1559 = vrot.lane.b32.xlu0 %v1132, 64
        %v1560 = vpop.permute.xlu0 %1559
        %1561 = vrot.lane.b32.xlu0 %v1135, 64
        %v1562 = vpop.permute.xlu0 %1561
        %1563 = vrot.lane.b32.xlu0 %v1137, 64
        %v1564 = vpop.permute.xlu0 %1563
        %1565 = vrot.lane.b32.xlu0 %v1140, 64
        %v1566 = vpop.permute.xlu0 %1565
        %1567 = vrot.lane.b32.xlu0 %v1142, 64
        %v1568 = vpop.permute.xlu0 %1567
        %1569 = vrot.lane.b32.xlu0 %v1145, 64
        %v1570 = vpop.permute.xlu0 %1569
        %1571 = vrot.lane.b32.xlu0 %v1147, 64
        %v1572 = vpop.permute.xlu0 %1571
        %1573 = vrot.lane.b32.xlu0 %v1150, 64
        %v1574 = vpop.permute.xlu0 %1573
        %1575 = vrot.lane.b32.xlu0 %v1152, 64
        %v1576 = vpop.permute.xlu0 %1575
        %1577 = vrot.lane.b32.xlu0 %v1155, 64
        %v1578 = vpop.permute.xlu0 %1577
        %1579 = vrot.lane.b32.xlu0 %v1157, 64
        %v1580 = vpop.permute.xlu0 %1579
        %1581 = vrot.lane.b32.xlu0 %v1160, 64
        %v1582 = vpop.permute.xlu0 %1581
        %1583 = vrot.lane.b32.xlu0 %v1162, 64
        %v1584 = vpop.permute.xlu0 %1583
        %1585 = vrot.lane.b32.xlu0 %v1165, 64
        %v1586 = vpop.permute.xlu0 %1585
        %1587 = vrot.lane.b32.xlu0 %v1167, 64
        %v1588 = vpop.permute.xlu0 %1587
        %1589 = vrot.lane.b32.xlu0 %v1170, 64
        %v1590 = vpop.permute.xlu0 %1589
        %1591 = vrot.lane.b32.xlu0 %v1172, 64
        %v1592 = vpop.permute.xlu0 %1591
        %1625 = vrot.lane.b32.xlu0 %v730, 96
        %v1626 = vpop.permute.xlu0 %1625
        %1627 = vrot.lane.b32.xlu0 %v731, 96
        %v1628 = vpop.permute.xlu0 %1627
        %1629 = vrot.lane.b32.xlu0 %v733, 96
        %v1630 = vpop.permute.xlu0 %1629
        %1631 = vrot.lane.b32.xlu0 %v734, 96
        %v1632 = vpop.permute.xlu0 %1631
        %1633 = vrot.lane.b32.xlu0 %v736, 96
        %v1634 = vpop.permute.xlu0 %1633
        %1635 = vrot.lane.b32.xlu0 %v737, 96
        %v1636 = vpop.permute.xlu0 %1635
        %1637 = vrot.lane.b32.xlu0 %v739, 96
        %v1638 = vpop.permute.xlu0 %1637
        %1639 = vrot.lane.b32.xlu0 %v740, 96
        %v1640 = vpop.permute.xlu0 %1639
        %1641 = vrot.lane.b32.xlu0 %v742, 96
        %v1642 = vpop.permute.xlu0 %1641
        %1643 = vrot.lane.b32.xlu0 %v743, 96
        %v1644 = vpop.permute.xlu0 %1643
        %1645 = vrot.lane.b32.xlu0 %v745, 96
        %v1646 = vpop.permute.xlu0 %1645
        %1647 = vrot.lane.b32.xlu0 %v746, 96
        %v1648 = vpop.permute.xlu0 %1647
        %1649 = vrot.lane.b32.xlu0 %v748, 96
        %v1650 = vpop.permute.xlu0 %1649
        %1651 = vrot.lane.b32.xlu0 %v749, 96
        %v1652 = vpop.permute.xlu0 %1651
        %1653 = vrot.lane.b32.xlu0 %v751, 96
        %v1654 = vpop.permute.xlu0 %1653
        %1655 = vrot.lane.b32.xlu0 %v752, 96
        %v1656 = vpop.permute.xlu0 %1655
        %1657 = vrot.lane.b32.xlu0 %v754, 96
        %v1658 = vpop.permute.xlu0 %1657
        %1659 = vrot.lane.b32.xlu0 %v755, 96
        %v1660 = vpop.permute.xlu0 %1659
        %1661 = vrot.lane.b32.xlu0 %v757, 96
        %v1662 = vpop.permute.xlu0 %1661
        %1663 = vrot.lane.b32.xlu0 %v758, 96
        %v1664 = vpop.permute.xlu0 %1663
        %1665 = vrot.lane.b32.xlu0 %v760, 96
        %v1666 = vpop.permute.xlu0 %1665
        %1667 = vrot.lane.b32.xlu0 %v761, 96
        %v1668 = vpop.permute.xlu0 %1667
        %1669 = vrot.lane.b32.xlu0 %v763, 96
        %v1670 = vpop.permute.xlu0 %1669
        %1671 = vrot.lane.b32.xlu0 %v764, 96
        %v1672 = vpop.permute.xlu0 %1671
        %1673 = vrot.lane.b32.xlu0 %v766, 96
        %v1674 = vpop.permute.xlu0 %1673
        %1675 = vrot.lane.b32.xlu0 %v767, 96
        %v1676 = vpop.permute.xlu0 %1675
        %1677 = vrot.lane.b32.xlu0 %v769, 96
        %v1678 = vpop.permute.xlu0 %1677
        %1679 = vrot.lane.b32.xlu0 %v770, 96
        %v1680 = vpop.permute.xlu0 %1679
        %1681 = vrot.lane.b32.xlu0 %v772, 96
        %v1682 = vpop.permute.xlu0 %1681
        %1683 = vrot.lane.b32.xlu0 %v773, 96
        %v1684 = vpop.permute.xlu0 %1683
        %1685 = vrot.lane.b32.xlu0 %v775, 96
        %v1686 = vpop.permute.xlu0 %1685
        %1687 = vrot.lane.b32.xlu0 %v776, 96
        %v1688 = vpop.permute.xlu0 %1687
        %1721 = vrot.lane.b32.xlu0 %v1100, 32
        %v1722 = vpop.permute.xlu0 %1721
        %1723 = vrot.lane.b32.xlu0 %v1102, 32
        %v1724 = vpop.permute.xlu0 %1723
        %1725 = vrot.lane.b32.xlu0 %v1105, 32
        %v1726 = vpop.permute.xlu0 %1725
        %1727 = vrot.lane.b32.xlu0 %v1107, 32
        %v1728 = vpop.permute.xlu0 %1727
        %1729 = vrot.lane.b32.xlu0 %v1110, 32
        %v1730 = vpop.permute.xlu0 %1729
        %1731 = vrot.lane.b32.xlu0 %v1112, 32
        %v1732 = vpop.permute.xlu0 %1731
        %1733 = vrot.lane.b32.xlu0 %v1115, 32
        %v1734 = vpop.permute.xlu0 %1733
        %1735 = vrot.lane.b32.xlu0 %v1117, 32
        %v1736 = vpop.permute.xlu0 %1735
        %1737 = vrot.lane.b32.xlu0 %v1120, 32
        %v1738 = vpop.permute.xlu0 %1737
        %1739 = vrot.lane.b32.xlu0 %v1122, 32
        %v1740 = vpop.permute.xlu0 %1739
        %1741 = vrot.lane.b32.xlu0 %v1125, 32
        %v1742 = vpop.permute.xlu0 %1741
        %1743 = vrot.lane.b32.xlu0 %v1127, 32
        %v1744 = vpop.permute.xlu0 %1743
        %1745 = vrot.lane.b32.xlu0 %v1130, 32
        %v1746 = vpop.permute.xlu0 %1745
        %1747 = vrot.lane.b32.xlu0 %v1132, 32
        %v1748 = vpop.permute.xlu0 %1747
        %1749 = vrot.lane.b32.xlu0 %v1135, 32
        %v1750 = vpop.permute.xlu0 %1749
        %1751 = vrot.lane.b32.xlu0 %v1137, 32
        %v1752 = vpop.permute.xlu0 %1751
        %1753 = vrot.lane.b32.xlu0 %v1140, 32
        %v1754 = vpop.permute.xlu0 %1753
        %1755 = vrot.lane.b32.xlu0 %v1142, 32
        %v1756 = vpop.permute.xlu0 %1755
        %1757 = vrot.lane.b32.xlu0 %v1145, 32
        %v1758 = vpop.permute.xlu0 %1757
        %1759 = vrot.lane.b32.xlu0 %v1147, 32
        %v1760 = vpop.permute.xlu0 %1759
        %1761 = vrot.lane.b32.xlu0 %v1150, 32
        %v1762 = vpop.permute.xlu0 %1761
        %1763 = vrot.lane.b32.xlu0 %v1152, 32
        %v1764 = vpop.permute.xlu0 %1763
        %1765 = vrot.lane.b32.xlu0 %v1155, 32
        %v1766 = vpop.permute.xlu0 %1765
        %1767 = vrot.lane.b32.xlu0 %v1157, 32
        %v1768 = vpop.permute.xlu0 %1767
        %1769 = vrot.lane.b32.xlu0 %v1160, 32
        %v1770 = vpop.permute.xlu0 %1769
        %1771 = vrot.lane.b32.xlu0 %v1162, 32
        %v1772 = vpop.permute.xlu0 %1771
        %1773 = vrot.lane.b32.xlu0 %v1165, 32
        %v1774 = vpop.permute.xlu0 %1773
        %1775 = vrot.lane.b32.xlu0 %v1167, 32
        %v1776 = vpop.permute.xlu0 %1775
        %1777 = vrot.lane.b32.xlu0 %v1170, 32
        %v1778 = vpop.permute.xlu0 %1777
        %1779 = vrot.lane.b32.xlu0 %v1172, 32
        %v1780 = vpop.permute.xlu0 %1779
        %1781 = vrot.lane.b32.xlu0 %v1335, 32
        %v1782 = vpop.permute.xlu0 %1781
        %1783 = vrot.lane.b32.xlu0 %v1337, 32
        %v1784 = vpop.permute.xlu0 %1783
        %1817 = vrot.lane.b32.xlu0 %v733, 64
        %v1818 = vpop.permute.xlu0 %1817
        %1819 = vrot.lane.b32.xlu0 %v734, 64
        %v1820 = vpop.permute.xlu0 %1819
        %1821 = vrot.lane.b32.xlu0 %v736, 64
        %v1822 = vpop.permute.xlu0 %1821
        %1823 = vrot.lane.b32.xlu0 %v737, 64
        %v1824 = vpop.permute.xlu0 %1823
        %1825 = vrot.lane.b32.xlu0 %v739, 64
        %v1826 = vpop.permute.xlu0 %1825
        %1827 = vrot.lane.b32.xlu0 %v740, 64
        %v1828 = vpop.permute.xlu0 %1827
        %1829 = vrot.lane.b32.xlu0 %v742, 64
        %v1830 = vpop.permute.xlu0 %1829
        %1831 = vrot.lane.b32.xlu0 %v743, 64
        %v1832 = vpop.permute.xlu0 %1831
        %1833 = vrot.lane.b32.xlu0 %v745, 64
        %v1834 = vpop.permute.xlu0 %1833
        %1835 = vrot.lane.b32.xlu0 %v746, 64
        %v1836 = vpop.permute.xlu0 %1835
        %1837 = vrot.lane.b32.xlu0 %v748, 64
        %v1838 = vpop.permute.xlu0 %1837
        %1839 = vrot.lane.b32.xlu0 %v749, 64
        %v1840 = vpop.permute.xlu0 %1839
        %1841 = vrot.lane.b32.xlu0 %v751, 64
        %v1842 = vpop.permute.xlu0 %1841
        %1843 = vrot.lane.b32.xlu0 %v752, 64
        %v1844 = vpop.permute.xlu0 %1843
        %1845 = vrot.lane.b32.xlu0 %v754, 64
        %v1846 = vpop.permute.xlu0 %1845
        %1847 = vrot.lane.b32.xlu0 %v755, 64
        %v1848 = vpop.permute.xlu0 %1847
        %1849 = vrot.lane.b32.xlu0 %v757, 64
        %v1850 = vpop.permute.xlu0 %1849
        %1851 = vrot.lane.b32.xlu0 %v758, 64
        %v1852 = vpop.permute.xlu0 %1851
        %1853 = vrot.lane.b32.xlu0 %v760, 64
        %v1854 = vpop.permute.xlu0 %1853
        %1855 = vrot.lane.b32.xlu0 %v761, 64
        %v1856 = vpop.permute.xlu0 %1855
        %1857 = vrot.lane.b32.xlu0 %v763, 64
        %v1858 = vpop.permute.xlu0 %1857
        %1859 = vrot.lane.b32.xlu0 %v764, 64
        %v1860 = vpop.permute.xlu0 %1859
        %1861 = vrot.lane.b32.xlu0 %v766, 64
        %v1862 = vpop.permute.xlu0 %1861
        %1863 = vrot.lane.b32.xlu0 %v767, 64
        %v1864 = vpop.permute.xlu0 %1863
        %1865 = vrot.lane.b32.xlu0 %v769, 64
        %v1866 = vpop.permute.xlu0 %1865
        %1867 = vrot.lane.b32.xlu0 %v770, 64
        %v1868 = vpop.permute.xlu0 %1867
        %1869 = vrot.lane.b32.xlu0 %v772, 64
        %v1870 = vpop.permute.xlu0 %1869
        %1871 = vrot.lane.b32.xlu0 %v773, 64
        %v1872 = vpop.permute.xlu0 %1871
        %1873 = vrot.lane.b32.xlu0 %v775, 64
        %v1874 = vpop.permute.xlu0 %1873
        %1875 = vrot.lane.b32.xlu0 %v776, 64
        %v1876 = vpop.permute.xlu0 %1875
        %1877 = vrot.lane.b32.xlu0 %v778, 64
        %v1878 = vpop.permute.xlu0 %1877
        %1879 = vrot.lane.b32.xlu0 %v779, 64
        %v1880 = vpop.permute.xlu0 %1879
        %1913 = vrot.lane.b32.xlu0 %v896, 96
        %v1914 = vpop.permute.xlu0 %1913
        %1915 = vrot.lane.b32.xlu0 %v898, 96
        %v1916 = vpop.permute.xlu0 %1915
        %1917 = vrot.lane.b32.xlu0 %v901, 96
        %v1918 = vpop.permute.xlu0 %1917
        %1919 = vrot.lane.b32.xlu0 %v903, 96
        %v1920 = vpop.permute.xlu0 %1919
        %1921 = vrot.lane.b32.xlu0 %v906, 96
        %v1922 = vpop.permute.xlu0 %1921
        %1923 = vrot.lane.b32.xlu0 %v908, 96
        %v1924 = vpop.permute.xlu0 %1923
        %1925 = vrot.lane.b32.xlu0 %v911, 96
        %v1926 = vpop.permute.xlu0 %1925
        %1927 = vrot.lane.b32.xlu0 %v913, 96
        %v1928 = vpop.permute.xlu0 %1927
        %1929 = vrot.lane.b32.xlu0 %v916, 96
        %v1930 = vpop.permute.xlu0 %1929
        %1931 = vrot.lane.b32.xlu0 %v918, 96
        %v1932 = vpop.permute.xlu0 %1931
        %1933 = vrot.lane.b32.xlu0 %v921, 96
        %v1934 = vpop.permute.xlu0 %1933
        %1935 = vrot.lane.b32.xlu0 %v923, 96
        %v1936 = vpop.permute.xlu0 %1935
        %1937 = vrot.lane.b32.xlu0 %v926, 96
        %v1938 = vpop.permute.xlu0 %1937
        %1939 = vrot.lane.b32.xlu0 %v928, 96
        %v1940 = vpop.permute.xlu0 %1939
        %1941 = vrot.lane.b32.xlu0 %v931, 96
        %v1942 = vpop.permute.xlu0 %1941
        %1943 = vrot.lane.b32.xlu0 %v933, 96
        %v1944 = vpop.permute.xlu0 %1943
        %1945 = vrot.lane.b32.xlu0 %v936, 96
        %v1946 = vpop.permute.xlu0 %1945
        %1947 = vrot.lane.b32.xlu0 %v938, 96
        %v1948 = vpop.permute.xlu0 %1947
        %1949 = vrot.lane.b32.xlu0 %v941, 96
        %v1950 = vpop.permute.xlu0 %1949
        %1951 = vrot.lane.b32.xlu0 %v943, 96
        %v1952 = vpop.permute.xlu0 %1951
        %1953 = vrot.lane.b32.xlu0 %v946, 96
        %v1954 = vpop.permute.xlu0 %1953
        %1955 = vrot.lane.b32.xlu0 %v948, 96
        %v1956 = vpop.permute.xlu0 %1955
        %1957 = vrot.lane.b32.xlu0 %v951, 96
        %v1958 = vpop.permute.xlu0 %1957
        %1959 = vrot.lane.b32.xlu0 %v953, 96
        %v1960 = vpop.permute.xlu0 %1959
        %1961 = vrot.lane.b32.xlu0 %v956, 96
        %v1962 = vpop.permute.xlu0 %1961
        %1963 = vrot.lane.b32.xlu0 %v958, 96
        %v1964 = vpop.permute.xlu0 %1963
        %1965 = vrot.lane.b32.xlu0 %v961, 96
        %v1966 = vpop.permute.xlu0 %1965
        %1967 = vrot.lane.b32.xlu0 %v963, 96
        %v1968 = vpop.permute.xlu0 %1967
        %1969 = vrot.lane.b32.xlu0 %v1258, 96
        %v1970 = vpop.permute.xlu0 %1969
        %1971 = vrot.lane.b32.xlu0 %v1260, 96
        %v1972 = vpop.permute.xlu0 %1971
        %1973 = vrot.lane.b32.xlu0 %v1348, 96
        %v1974 = vpop.permute.xlu0 %1973
        %1975 = vrot.lane.b32.xlu0 %v1350, 96
        %v1976 = vpop.permute.xlu0 %1975
        %v2009 = vsel %vm501, %v727, %v1434
        %v2010 = vsel %vm501, %v728, %v1436
        %v2011 = vsel %vm501, %v730, %v1438
        %v2012 = vsel %vm501, %v731, %v1440
        %v2013 = vsel %vm501, %v733, %v1442
        %v2014 = vsel %vm501, %v734, %v1444
        %v2015 = vsel %vm501, %v736, %v1446
        %v2016 = vsel %vm501, %v737, %v1448
        %v2017 = vsel %vm501, %v739, %v1450
        %v2018 = vsel %vm501, %v740, %v1452
        %v2019 = vsel %vm501, %v742, %v1454
        %v2020 = vsel %vm501, %v743, %v1456
        %v2021 = vsel %vm501, %v745, %v1458
        %v2022 = vsel %vm501, %v746, %v1460
        %v2023 = vsel %vm501, %v748, %v1462
        %v2024 = vsel %vm501, %v749, %v1464
        %v2025 = vsel %vm501, %v751, %v1466
        %v2026 = vsel %vm501, %v752, %v1468
        %v2027 = vsel %vm501, %v754, %v1470
        %v2028 = vsel %vm501, %v755, %v1472
        %v2029 = vsel %vm501, %v757, %v1474
        %v2030 = vsel %vm501, %v758, %v1476
        %v2031 = vsel %vm501, %v760, %v1478
        %v2032 = vsel %vm501, %v761, %v1480
        %v2033 = vsel %vm501, %v763, %v1482
        %v2034 = vsel %vm501, %v764, %v1484
        %v2035 = vsel %vm501, %v766, %v1486
        %v2036 = vsel %vm501, %v767, %v1488
        %v2037 = vsel %vm501, %v769, %v1490
        %v2038 = vsel %vm501, %v770, %v1492
        %v2039 = vsel %vm501, %v772, %v1494
        %v2040 = vsel %vm501, %v773, %v1496
        %vm2041 = vcmask 523264
        %v2042 = vsel %vm2041, %v2009, %v1530
        %v2043 = vsel %vm2041, %v2010, %v1532
        %v2044 = vsel %vm2041, %v2011, %v1534
        %v2045 = vsel %vm2041, %v2012, %v1536
        %v2046 = vsel %vm2041, %v2013, %v1538
        %v2047 = vsel %vm2041, %v2014, %v1540
        %v2048 = vsel %vm2041, %v2015, %v1542
        %v2049 = vsel %vm2041, %v2016, %v1544
        %v2050 = vsel %vm2041, %v2017, %v1546
        %v2051 = vsel %vm2041, %v2018, %v1548
        %v2052 = vsel %vm2041, %v2019, %v1550
        %v2053 = vsel %vm2041, %v2020, %v1552
        %v2054 = vsel %vm2041, %v2021, %v1554
        %v2055 = vsel %vm2041, %v2022, %v1556
        %v2056 = vsel %vm2041, %v2023, %v1558
        %v2057 = vsel %vm2041, %v2024, %v1560
        %v2058 = vsel %vm2041, %v2025, %v1562
        %v2059 = vsel %vm2041, %v2026, %v1564
        %v2060 = vsel %vm2041, %v2027, %v1566
        %v2061 = vsel %vm2041, %v2028, %v1568
        %v2062 = vsel %vm2041, %v2029, %v1570
        %v2063 = vsel %vm2041, %v2030, %v1572
        %v2064 = vsel %vm2041, %v2031, %v1574
        %v2065 = vsel %vm2041, %v2032, %v1576
        %v2066 = vsel %vm2041, %v2033, %v1578
        %v2067 = vsel %vm2041, %v2034, %v1580
        %v2068 = vsel %vm2041, %v2035, %v1582
        %v2069 = vsel %vm2041, %v2036, %v1584
        %v2070 = vsel %vm2041, %v2037, %v1586
        %v2071 = vsel %vm2041, %v2038, %v1588
        %v2072 = vsel %vm2041, %v2039, %v1590
        %v2073 = vsel %vm2041, %v2040, %v1592
        %vm2074 = vcmask 785408
        %v2075 = vsel %vm2074, %v2042, %v1626
        %v2076 = vsel %vm2074, %v2043, %v1628
        %v2077 = vsel %vm2074, %v2044, %v1630
        %v2078 = vsel %vm2074, %v2045, %v1632
        %v2079 = vsel %vm2074, %v2046, %v1634
        %v2080 = vsel %vm2074, %v2047, %v1636
        %v2081 = vsel %vm2074, %v2048, %v1638
        %v2082 = vsel %vm2074, %v2049, %v1640
        %v2083 = vsel %vm2074, %v2050, %v1642
        %v2084 = vsel %vm2074, %v2051, %v1644
        %v2085 = vsel %vm2074, %v2052, %v1646
        %v2086 = vsel %vm2074, %v2053, %v1648
        %v2087 = vsel %vm2074, %v2054, %v1650
        %v2088 = vsel %vm2074, %v2055, %v1652
        %v2089 = vsel %vm2074, %v2056, %v1654
        %v2090 = vsel %vm2074, %v2057, %v1656
        %v2091 = vsel %vm2074, %v2058, %v1658
        %v2092 = vsel %vm2074, %v2059, %v1660
        %v2093 = vsel %vm2074, %v2060, %v1662
        %v2094 = vsel %vm2074, %v2061, %v1664
        %v2095 = vsel %vm2074, %v2062, %v1666
        %v2096 = vsel %vm2074, %v2063, %v1668
        %v2097 = vsel %vm2074, %v2064, %v1670
        %v2098 = vsel %vm2074, %v2065, %v1672
        %v2099 = vsel %vm2074, %v2066, %v1674
        %v2100 = vsel %vm2074, %v2067, %v1676
        %v2101 = vsel %vm2074, %v2068, %v1678
        %v2102 = vsel %vm2074, %v2069, %v1680
        %v2103 = vsel %vm2074, %v2070, %v1682
        %v2104 = vsel %vm2074, %v2071, %v1684
        %v2105 = vsel %vm2074, %v2072, %v1686
        %v2106 = vsel %vm2074, %v2073, %v1688
        %v2107 = vsel %vm501, %v891, %v1722
        %v2108 = vsel %vm501, %v893, %v1724
        %v2109 = vsel %vm501, %v896, %v1726
        %v2110 = vsel %vm501, %v898, %v1728
        %v2111 = vsel %vm501, %v901, %v1730
        %v2112 = vsel %vm501, %v903, %v1732
        %v2113 = vsel %vm501, %v906, %v1734
        %v2114 = vsel %vm501, %v908, %v1736
        %v2115 = vsel %vm501, %v911, %v1738
        %v2116 = vsel %vm501, %v913, %v1740
        %v2117 = vsel %vm501, %v916, %v1742
        %v2118 = vsel %vm501, %v918, %v1744
        %v2119 = vsel %vm501, %v921, %v1746
        %v2120 = vsel %vm501, %v923, %v1748
        %v2121 = vsel %vm501, %v926, %v1750
        %v2122 = vsel %vm501, %v928, %v1752
        %v2123 = vsel %vm501, %v931, %v1754
        %v2124 = vsel %vm501, %v933, %v1756
        %v2125 = vsel %vm501, %v936, %v1758
        %v2126 = vsel %vm501, %v938, %v1760
        %v2127 = vsel %vm501, %v941, %v1762
        %v2128 = vsel %vm501, %v943, %v1764
        %v2129 = vsel %vm501, %v946, %v1766
        %v2130 = vsel %vm501, %v948, %v1768
        %v2131 = vsel %vm501, %v951, %v1770
        %v2132 = vsel %vm501, %v953, %v1772
        %v2133 = vsel %vm501, %v956, %v1774
        %v2134 = vsel %vm501, %v958, %v1776
        %v2135 = vsel %vm501, %v961, %v1778
        %v2136 = vsel %vm501, %v963, %v1780
        %v2137 = vsel %vm501, %v1258, %v1782
        %v2138 = vsel %vm501, %v1260, %v1784
        %v2139 = vsel %vm2041, %v2107, %v1818
        %v2140 = vsel %vm2041, %v2108, %v1820
        %v2141 = vsel %vm2041, %v2109, %v1822
        %v2142 = vsel %vm2041, %v2110, %v1824
        %v2143 = vsel %vm2041, %v2111, %v1826
        %v2144 = vsel %vm2041, %v2112, %v1828
        %v2145 = vsel %vm2041, %v2113, %v1830
        %v2146 = vsel %vm2041, %v2114, %v1832
        %v2147 = vsel %vm2041, %v2115, %v1834
        %v2148 = vsel %vm2041, %v2116, %v1836
        %v2149 = vsel %vm2041, %v2117, %v1838
        %v2150 = vsel %vm2041, %v2118, %v1840
        %v2151 = vsel %vm2041, %v2119, %v1842
        %v2152 = vsel %vm2041, %v2120, %v1844
        %v2153 = vsel %vm2041, %v2121, %v1846
        %v2154 = vsel %vm2041, %v2122, %v1848
        %v2155 = vsel %vm2041, %v2123, %v1850
        %v2156 = vsel %vm2041, %v2124, %v1852
        %v2157 = vsel %vm2041, %v2125, %v1854
        %v2158 = vsel %vm2041, %v2126, %v1856
        %v2159 = vsel %vm2041, %v2127, %v1858
        %v2160 = vsel %vm2041, %v2128, %v1860
        %v2161 = vsel %vm2041, %v2129, %v1862
        %v2162 = vsel %vm2041, %v2130, %v1864
        %v2163 = vsel %vm2041, %v2131, %v1866
        %v2164 = vsel %vm2041, %v2132, %v1868
        %v2165 = vsel %vm2041, %v2133, %v1870
        %v2166 = vsel %vm2041, %v2134, %v1872
        %v2167 = vsel %vm2041, %v2135, %v1874
        %v2168 = vsel %vm2041, %v2136, %v1876
        %v2169 = vsel %vm2041, %v2137, %v1878
        %v2170 = vsel %vm2041, %v2138, %v1880
        %v2171 = vsel %vm2074, %v2139, %v1914
        %v2172 = vsel %vm2074, %v2140, %v1916
        %v2173 = vsel %vm2074, %v2141, %v1918
        %v2174 = vsel %vm2074, %v2142, %v1920
        %v2175 = vsel %vm2074, %v2143, %v1922
        %v2176 = vsel %vm2074, %v2144, %v1924
        %v2177 = vsel %vm2074, %v2145, %v1926
        %v2178 = vsel %vm2074, %v2146, %v1928
        %v2179 = vsel %vm2074, %v2147, %v1930
        %v2180 = vsel %vm2074, %v2148, %v1932
        %v2181 = vsel %vm2074, %v2149, %v1934
        %v2182 = vsel %vm2074, %v2150, %v1936
        %v2183 = vsel %vm2074, %v2151, %v1938
        %v2184 = vsel %vm2074, %v2152, %v1940
        %v2185 = vsel %vm2074, %v2153, %v1942
        %v2186 = vsel %vm2074, %v2154, %v1944
        %v2187 = vsel %vm2074, %v2155, %v1946
        %v2188 = vsel %vm2074, %v2156, %v1948
        %v2189 = vsel %vm2074, %v2157, %v1950
        %v2190 = vsel %vm2074, %v2158, %v1952
        %v2191 = vsel %vm2074, %v2159, %v1954
        %v2192 = vsel %vm2074, %v2160, %v1956
        %v2193 = vsel %vm2074, %v2161, %v1958
        %v2194 = vsel %vm2074, %v2162, %v1960
        %v2195 = vsel %vm2074, %v2163, %v1962
        %v2196 = vsel %vm2074, %v2164, %v1964
        %v2197 = vsel %vm2074, %v2165, %v1966
        %v2198 = vsel %vm2074, %v2166, %v1968
        %v2199 = vsel %vm2074, %v2167, %v1970
        %v2200 = vsel %vm2074, %v2168, %v1972
        %v2201 = vsel %vm2074, %v2169, %v1974
        %v2202 = vsel %vm2074, %v2170, %v1976
        %2203 = vrot.lane.b32.xlu0 %v1014, 32
        %v2204 = vpop.permute.xlu0 %2203
        %2205 = vrot.lane.b32.xlu0 %v1016, 32
        %v2206 = vpop.permute.xlu0 %2205
        %2207 = vrot.lane.b32.xlu0 %v1019, 32
        %v2208 = vpop.permute.xlu0 %2207
        %2209 = vrot.lane.b32.xlu0 %v1021, 32
        %v2210 = vpop.permute.xlu0 %2209
        %2211 = vrot.lane.b32.xlu0 %v1024, 32
        %v2212 = vpop.permute.xlu0 %2211
        %2213 = vrot.lane.b32.xlu0 %v1026, 32
        %v2214 = vpop.permute.xlu0 %2213
        %2215 = vrot.lane.b32.xlu0 %v1029, 32
        %v2216 = vpop.permute.xlu0 %2215
        %2217 = vrot.lane.b32.xlu0 %v1031, 32
        %v2218 = vpop.permute.xlu0 %2217
        %2219 = vrot.lane.b32.xlu0 %v1034, 32
        %v2220 = vpop.permute.xlu0 %2219
        %2221 = vrot.lane.b32.xlu0 %v1036, 32
        %v2222 = vpop.permute.xlu0 %2221
        %2223 = vrot.lane.b32.xlu0 %v1039, 32
        %v2224 = vpop.permute.xlu0 %2223
        %2225 = vrot.lane.b32.xlu0 %v1041, 32
        %v2226 = vpop.permute.xlu0 %2225
        %2227 = vrot.lane.b32.xlu0 %v1044, 32
        %v2228 = vpop.permute.xlu0 %2227
        %2229 = vrot.lane.b32.xlu0 %v1046, 32
        %v2230 = vpop.permute.xlu0 %2229
        %2231 = vrot.lane.b32.xlu0 %v1049, 32
        %v2232 = vpop.permute.xlu0 %2231
        %2233 = vrot.lane.b32.xlu0 %v1051, 32
        %v2234 = vpop.permute.xlu0 %2233
        %2235 = vrot.lane.b32.xlu0 %v1054, 32
        %v2236 = vpop.permute.xlu0 %2235
        %2237 = vrot.lane.b32.xlu0 %v1056, 32
        %v2238 = vpop.permute.xlu0 %2237
        %2239 = vrot.lane.b32.xlu0 %v1059, 32
        %v2240 = vpop.permute.xlu0 %2239
        %2241 = vrot.lane.b32.xlu0 %v1061, 32
        %v2242 = vpop.permute.xlu0 %2241
        %2243 = vrot.lane.b32.xlu0 %v1064, 32
        %v2244 = vpop.permute.xlu0 %2243
        %2245 = vrot.lane.b32.xlu0 %v1066, 32
        %v2246 = vpop.permute.xlu0 %2245
        %2247 = vrot.lane.b32.xlu0 %v1069, 32
        %v2248 = vpop.permute.xlu0 %2247
        %2249 = vrot.lane.b32.xlu0 %v1071, 32
        %v2250 = vpop.permute.xlu0 %2249
        %2251 = vrot.lane.b32.xlu0 %v1074, 32
        %v2252 = vpop.permute.xlu0 %2251
        %2253 = vrot.lane.b32.xlu0 %v1076, 32
        %v2254 = vpop.permute.xlu0 %2253
        %2255 = vrot.lane.b32.xlu0 %v1079, 32
        %v2256 = vpop.permute.xlu0 %2255
        %2257 = vrot.lane.b32.xlu0 %v1081, 32
        %v2258 = vpop.permute.xlu0 %2257
        %2259 = vrot.lane.b32.xlu0 %v1084, 32
        %v2260 = vpop.permute.xlu0 %2259
        %2261 = vrot.lane.b32.xlu0 %v1086, 32
        %v2262 = vpop.permute.xlu0 %2261
        %2263 = vrot.lane.b32.xlu0 %v1089, 32
        %v2264 = vpop.permute.xlu0 %2263
        %2265 = vrot.lane.b32.xlu0 %v1091, 32
        %v2266 = vpop.permute.xlu0 %2265
        %2299 = vrot.lane.b32.xlu0 %v1175, 64
        %v2300 = vpop.permute.xlu0 %2299
        %2301 = vrot.lane.b32.xlu0 %v1177, 64
        %v2302 = vpop.permute.xlu0 %2301
        %2303 = vrot.lane.b32.xlu0 %v1180, 64
        %v2304 = vpop.permute.xlu0 %2303
        %2305 = vrot.lane.b32.xlu0 %v1182, 64
        %v2306 = vpop.permute.xlu0 %2305
        %2307 = vrot.lane.b32.xlu0 %v1185, 64
        %v2308 = vpop.permute.xlu0 %2307
        %2309 = vrot.lane.b32.xlu0 %v1187, 64
        %v2310 = vpop.permute.xlu0 %2309
        %2311 = vrot.lane.b32.xlu0 %v1190, 64
        %v2312 = vpop.permute.xlu0 %2311
        %2313 = vrot.lane.b32.xlu0 %v1192, 64
        %v2314 = vpop.permute.xlu0 %2313
        %2315 = vrot.lane.b32.xlu0 %v1195, 64
        %v2316 = vpop.permute.xlu0 %2315
        %2317 = vrot.lane.b32.xlu0 %v1197, 64
        %v2318 = vpop.permute.xlu0 %2317
        %2319 = vrot.lane.b32.xlu0 %v1200, 64
        %v2320 = vpop.permute.xlu0 %2319
        %2321 = vrot.lane.b32.xlu0 %v1202, 64
        %v2322 = vpop.permute.xlu0 %2321
        %2323 = vrot.lane.b32.xlu0 %v1205, 64
        %v2324 = vpop.permute.xlu0 %2323
        %2325 = vrot.lane.b32.xlu0 %v1207, 64
        %v2326 = vpop.permute.xlu0 %2325
        %2327 = vrot.lane.b32.xlu0 %v1210, 64
        %v2328 = vpop.permute.xlu0 %2327
        %2329 = vrot.lane.b32.xlu0 %v1212, 64
        %v2330 = vpop.permute.xlu0 %2329
        %2331 = vrot.lane.b32.xlu0 %v1215, 64
        %v2332 = vpop.permute.xlu0 %2331
        %2333 = vrot.lane.b32.xlu0 %v1217, 64
        %v2334 = vpop.permute.xlu0 %2333
        %2335 = vrot.lane.b32.xlu0 %v1220, 64
        %v2336 = vpop.permute.xlu0 %2335
        %2337 = vrot.lane.b32.xlu0 %v1222, 64
        %v2338 = vpop.permute.xlu0 %2337
        %2339 = vrot.lane.b32.xlu0 %v1225, 64
        %v2340 = vpop.permute.xlu0 %2339
        %2341 = vrot.lane.b32.xlu0 %v1227, 64
        %v2342 = vpop.permute.xlu0 %2341
        %2343 = vrot.lane.b32.xlu0 %v1230, 64
        %v2344 = vpop.permute.xlu0 %2343
        %2345 = vrot.lane.b32.xlu0 %v1232, 64
        %v2346 = vpop.permute.xlu0 %2345
        %2347 = vrot.lane.b32.xlu0 %v1235, 64
        %v2348 = vpop.permute.xlu0 %2347
        %2349 = vrot.lane.b32.xlu0 %v1237, 64
        %v2350 = vpop.permute.xlu0 %2349
        %2351 = vrot.lane.b32.xlu0 %v1240, 64
        %v2352 = vpop.permute.xlu0 %2351
        %2353 = vrot.lane.b32.xlu0 %v1242, 64
        %v2354 = vpop.permute.xlu0 %2353
        %2355 = vrot.lane.b32.xlu0 %v1245, 64
        %v2356 = vpop.permute.xlu0 %2355
        %2357 = vrot.lane.b32.xlu0 %v1247, 64
        %v2358 = vpop.permute.xlu0 %2357
        %2359 = vrot.lane.b32.xlu0 %v1250, 64
        %v2360 = vpop.permute.xlu0 %2359
        %2361 = vrot.lane.b32.xlu0 %v1252, 64
        %v2362 = vpop.permute.xlu0 %2361
        %2395 = vrot.lane.b32.xlu0 %v784, 96
        %v2396 = vpop.permute.xlu0 %2395
        %2397 = vrot.lane.b32.xlu0 %v785, 96
        %v2398 = vpop.permute.xlu0 %2397
        %2399 = vrot.lane.b32.xlu0 %v787, 96
        %v2400 = vpop.permute.xlu0 %2399
        %2401 = vrot.lane.b32.xlu0 %v788, 96
        %v2402 = vpop.permute.xlu0 %2401
        %2403 = vrot.lane.b32.xlu0 %v790, 96
        %v2404 = vpop.permute.xlu0 %2403
        %2405 = vrot.lane.b32.xlu0 %v791, 96
        %v2406 = vpop.permute.xlu0 %2405
        %2407 = vrot.lane.b32.xlu0 %v793, 96
        %v2408 = vpop.permute.xlu0 %2407
        %2409 = vrot.lane.b32.xlu0 %v794, 96
        %v2410 = vpop.permute.xlu0 %2409
        %2411 = vrot.lane.b32.xlu0 %v796, 96
        %v2412 = vpop.permute.xlu0 %2411
        %2413 = vrot.lane.b32.xlu0 %v797, 96
        %v2414 = vpop.permute.xlu0 %2413
        %2415 = vrot.lane.b32.xlu0 %v799, 96
        %v2416 = vpop.permute.xlu0 %2415
        %2417 = vrot.lane.b32.xlu0 %v800, 96
        %v2418 = vpop.permute.xlu0 %2417
        %2419 = vrot.lane.b32.xlu0 %v802, 96
        %v2420 = vpop.permute.xlu0 %2419
        %2421 = vrot.lane.b32.xlu0 %v803, 96
        %v2422 = vpop.permute.xlu0 %2421
        %2423 = vrot.lane.b32.xlu0 %v805, 96
        %v2424 = vpop.permute.xlu0 %2423
        %2425 = vrot.lane.b32.xlu0 %v806, 96
        %v2426 = vpop.permute.xlu0 %2425
        %2427 = vrot.lane.b32.xlu0 %v808, 96
        %v2428 = vpop.permute.xlu0 %2427
        %2429 = vrot.lane.b32.xlu0 %v809, 96
        %v2430 = vpop.permute.xlu0 %2429
        %2431 = vrot.lane.b32.xlu0 %v811, 96
        %v2432 = vpop.permute.xlu0 %2431
        %2433 = vrot.lane.b32.xlu0 %v812, 96
        %v2434 = vpop.permute.xlu0 %2433
        %2435 = vrot.lane.b32.xlu0 %v814, 96
        %v2436 = vpop.permute.xlu0 %2435
        %2437 = vrot.lane.b32.xlu0 %v815, 96
        %v2438 = vpop.permute.xlu0 %2437
        %2439 = vrot.lane.b32.xlu0 %v817, 96
        %v2440 = vpop.permute.xlu0 %2439
        %2441 = vrot.lane.b32.xlu0 %v818, 96
        %v2442 = vpop.permute.xlu0 %2441
        %2443 = vrot.lane.b32.xlu0 %v820, 96
        %v2444 = vpop.permute.xlu0 %2443
        %2445 = vrot.lane.b32.xlu0 %v821, 96
        %v2446 = vpop.permute.xlu0 %2445
        %2447 = vrot.lane.b32.xlu0 %v823, 96
        %v2448 = vpop.permute.xlu0 %2447
        %2449 = vrot.lane.b32.xlu0 %v824, 96
        %v2450 = vpop.permute.xlu0 %2449
        %2451 = vrot.lane.b32.xlu0 %v826, 96
        %v2452 = vpop.permute.xlu0 %2451
        %2453 = vrot.lane.b32.xlu0 %v827, 96
        %v2454 = vpop.permute.xlu0 %2453
        %2455 = vrot.lane.b32.xlu0 %v829, 96
        %v2456 = vpop.permute.xlu0 %2455
        %2457 = vrot.lane.b32.xlu0 %v830, 96
        %v2458 = vpop.permute.xlu0 %2457
        %2491 = vrot.lane.b32.xlu0 %v1180, 32
        %v2492 = vpop.permute.xlu0 %2491
        %2493 = vrot.lane.b32.xlu0 %v1182, 32
        %v2494 = vpop.permute.xlu0 %2493
        %2495 = vrot.lane.b32.xlu0 %v1185, 32
        %v2496 = vpop.permute.xlu0 %2495
        %2497 = vrot.lane.b32.xlu0 %v1187, 32
        %v2498 = vpop.permute.xlu0 %2497
        %2499 = vrot.lane.b32.xlu0 %v1190, 32
        %v2500 = vpop.permute.xlu0 %2499
        %2501 = vrot.lane.b32.xlu0 %v1192, 32
        %v2502 = vpop.permute.xlu0 %2501
        %2503 = vrot.lane.b32.xlu0 %v1195, 32
        %v2504 = vpop.permute.xlu0 %2503
        %2505 = vrot.lane.b32.xlu0 %v1197, 32
        %v2506 = vpop.permute.xlu0 %2505
        %2507 = vrot.lane.b32.xlu0 %v1200, 32
        %v2508 = vpop.permute.xlu0 %2507
        %2509 = vrot.lane.b32.xlu0 %v1202, 32
        %v2510 = vpop.permute.xlu0 %2509
        %2511 = vrot.lane.b32.xlu0 %v1205, 32
        %v2512 = vpop.permute.xlu0 %2511
        %2513 = vrot.lane.b32.xlu0 %v1207, 32
        %v2514 = vpop.permute.xlu0 %2513
        %2515 = vrot.lane.b32.xlu0 %v1210, 32
        %v2516 = vpop.permute.xlu0 %2515
        %2517 = vrot.lane.b32.xlu0 %v1212, 32
        %v2518 = vpop.permute.xlu0 %2517
        %2519 = vrot.lane.b32.xlu0 %v1215, 32
        %v2520 = vpop.permute.xlu0 %2519
        %2521 = vrot.lane.b32.xlu0 %v1217, 32
        %v2522 = vpop.permute.xlu0 %2521
        %2523 = vrot.lane.b32.xlu0 %v1220, 32
        %v2524 = vpop.permute.xlu0 %2523
        %2525 = vrot.lane.b32.xlu0 %v1222, 32
        %v2526 = vpop.permute.xlu0 %2525
        %2527 = vrot.lane.b32.xlu0 %v1225, 32
        %v2528 = vpop.permute.xlu0 %2527
        %2529 = vrot.lane.b32.xlu0 %v1227, 32
        %v2530 = vpop.permute.xlu0 %2529
        %2531 = vrot.lane.b32.xlu0 %v1230, 32
        %v2532 = vpop.permute.xlu0 %2531
        %2533 = vrot.lane.b32.xlu0 %v1232, 32
        %v2534 = vpop.permute.xlu0 %2533
        %2535 = vrot.lane.b32.xlu0 %v1235, 32
        %v2536 = vpop.permute.xlu0 %2535
        %2537 = vrot.lane.b32.xlu0 %v1237, 32
        %v2538 = vpop.permute.xlu0 %2537
        %2539 = vrot.lane.b32.xlu0 %v1240, 32
        %v2540 = vpop.permute.xlu0 %2539
        %2541 = vrot.lane.b32.xlu0 %v1242, 32
        %v2542 = vpop.permute.xlu0 %2541
        %2543 = vrot.lane.b32.xlu0 %v1245, 32
        %v2544 = vpop.permute.xlu0 %2543
        %2545 = vrot.lane.b32.xlu0 %v1247, 32
        %v2546 = vpop.permute.xlu0 %2545
        %2547 = vrot.lane.b32.xlu0 %v1250, 32
        %v2548 = vpop.permute.xlu0 %2547
        %2549 = vrot.lane.b32.xlu0 %v1252, 32
        %v2550 = vpop.permute.xlu0 %2549
        %2551 = vrot.lane.b32.xlu0 %v1340, 32
        %v2552 = vpop.permute.xlu0 %2551
        %2553 = vrot.lane.b32.xlu0 %v1342, 32
        %v2554 = vpop.permute.xlu0 %2553
        %2587 = vrot.lane.b32.xlu0 %v787, 64
        %v2588 = vpop.permute.xlu0 %2587
        %2589 = vrot.lane.b32.xlu0 %v788, 64
        %v2590 = vpop.permute.xlu0 %2589
        %2591 = vrot.lane.b32.xlu0 %v790, 64
        %v2592 = vpop.permute.xlu0 %2591
        %2593 = vrot.lane.b32.xlu0 %v791, 64
        %v2594 = vpop.permute.xlu0 %2593
        %2595 = vrot.lane.b32.xlu0 %v793, 64
        %v2596 = vpop.permute.xlu0 %2595
        %2597 = vrot.lane.b32.xlu0 %v794, 64
        %v2598 = vpop.permute.xlu0 %2597
        %2599 = vrot.lane.b32.xlu0 %v796, 64
        %v2600 = vpop.permute.xlu0 %2599
        %2601 = vrot.lane.b32.xlu0 %v797, 64
        %v2602 = vpop.permute.xlu0 %2601
        %2603 = vrot.lane.b32.xlu0 %v799, 64
        %v2604 = vpop.permute.xlu0 %2603
        %2605 = vrot.lane.b32.xlu0 %v800, 64
        %v2606 = vpop.permute.xlu0 %2605
        %2607 = vrot.lane.b32.xlu0 %v802, 64
        %v2608 = vpop.permute.xlu0 %2607
        %2609 = vrot.lane.b32.xlu0 %v803, 64
        %v2610 = vpop.permute.xlu0 %2609
        %2611 = vrot.lane.b32.xlu0 %v805, 64
        %v2612 = vpop.permute.xlu0 %2611
        %2613 = vrot.lane.b32.xlu0 %v806, 64
        %v2614 = vpop.permute.xlu0 %2613
        %2615 = vrot.lane.b32.xlu0 %v808, 64
        %v2616 = vpop.permute.xlu0 %2615
        %2617 = vrot.lane.b32.xlu0 %v809, 64
        %v2618 = vpop.permute.xlu0 %2617
        %2619 = vrot.lane.b32.xlu0 %v811, 64
        %v2620 = vpop.permute.xlu0 %2619
        %2621 = vrot.lane.b32.xlu0 %v812, 64
        %v2622 = vpop.permute.xlu0 %2621
        %2623 = vrot.lane.b32.xlu0 %v814, 64
        %v2624 = vpop.permute.xlu0 %2623
        %2625 = vrot.lane.b32.xlu0 %v815, 64
        %v2626 = vpop.permute.xlu0 %2625
        %2627 = vrot.lane.b32.xlu0 %v817, 64
        %v2628 = vpop.permute.xlu0 %2627
        %2629 = vrot.lane.b32.xlu0 %v818, 64
        %v2630 = vpop.permute.xlu0 %2629
        %2631 = vrot.lane.b32.xlu0 %v820, 64
        %v2632 = vpop.permute.xlu0 %2631
        %2633 = vrot.lane.b32.xlu0 %v821, 64
        %v2634 = vpop.permute.xlu0 %2633
        %2635 = vrot.lane.b32.xlu0 %v823, 64
        %v2636 = vpop.permute.xlu0 %2635
        %2637 = vrot.lane.b32.xlu0 %v824, 64
        %v2638 = vpop.permute.xlu0 %2637
        %2639 = vrot.lane.b32.xlu0 %v826, 64
        %v2640 = vpop.permute.xlu0 %2639
        %2641 = vrot.lane.b32.xlu0 %v827, 64
        %v2642 = vpop.permute.xlu0 %2641
        %2643 = vrot.lane.b32.xlu0 %v829, 64
        %v2644 = vpop.permute.xlu0 %2643
        %2645 = vrot.lane.b32.xlu0 %v830, 64
        %v2646 = vpop.permute.xlu0 %2645
        %2647 = vrot.lane.b32.xlu0 %v832, 64
        %v2648 = vpop.permute.xlu0 %2647
        %2649 = vrot.lane.b32.xlu0 %v833, 64
        %v2650 = vpop.permute.xlu0 %2649
        %2683 = vrot.lane.b32.xlu0 %v1024, 96
        %v2684 = vpop.permute.xlu0 %2683
        %2685 = vrot.lane.b32.xlu0 %v1026, 96
        %v2686 = vpop.permute.xlu0 %2685
        %2687 = vrot.lane.b32.xlu0 %v1029, 96
        %v2688 = vpop.permute.xlu0 %2687
        %2689 = vrot.lane.b32.xlu0 %v1031, 96
        %v2690 = vpop.permute.xlu0 %2689
        %2691 = vrot.lane.b32.xlu0 %v1034, 96
        %v2692 = vpop.permute.xlu0 %2691
        %2693 = vrot.lane.b32.xlu0 %v1036, 96
        %v2694 = vpop.permute.xlu0 %2693
        %2695 = vrot.lane.b32.xlu0 %v1039, 96
        %v2696 = vpop.permute.xlu0 %2695
        %2697 = vrot.lane.b32.xlu0 %v1041, 96
        %v2698 = vpop.permute.xlu0 %2697
        %2699 = vrot.lane.b32.xlu0 %v1044, 96
        %v2700 = vpop.permute.xlu0 %2699
        %2701 = vrot.lane.b32.xlu0 %v1046, 96
        %v2702 = vpop.permute.xlu0 %2701
        %2703 = vrot.lane.b32.xlu0 %v1049, 96
        %v2704 = vpop.permute.xlu0 %2703
        %2705 = vrot.lane.b32.xlu0 %v1051, 96
        %v2706 = vpop.permute.xlu0 %2705
        %2707 = vrot.lane.b32.xlu0 %v1054, 96
        %v2708 = vpop.permute.xlu0 %2707
        %2709 = vrot.lane.b32.xlu0 %v1056, 96
        %v2710 = vpop.permute.xlu0 %2709
        %2711 = vrot.lane.b32.xlu0 %v1059, 96
        %v2712 = vpop.permute.xlu0 %2711
        %2713 = vrot.lane.b32.xlu0 %v1061, 96
        %v2714 = vpop.permute.xlu0 %2713
        %2715 = vrot.lane.b32.xlu0 %v1064, 96
        %v2716 = vpop.permute.xlu0 %2715
        %2717 = vrot.lane.b32.xlu0 %v1066, 96
        %v2718 = vpop.permute.xlu0 %2717
        %2719 = vrot.lane.b32.xlu0 %v1069, 96
        %v2720 = vpop.permute.xlu0 %2719
        %2721 = vrot.lane.b32.xlu0 %v1071, 96
        %v2722 = vpop.permute.xlu0 %2721
        %2723 = vrot.lane.b32.xlu0 %v1074, 96
        %v2724 = vpop.permute.xlu0 %2723
        %2725 = vrot.lane.b32.xlu0 %v1076, 96
        %v2726 = vpop.permute.xlu0 %2725
        %2727 = vrot.lane.b32.xlu0 %v1079, 96
        %v2728 = vpop.permute.xlu0 %2727
        %2729 = vrot.lane.b32.xlu0 %v1081, 96
        %v2730 = vpop.permute.xlu0 %2729
        %2731 = vrot.lane.b32.xlu0 %v1084, 96
        %v2732 = vpop.permute.xlu0 %2731
        %2733 = vrot.lane.b32.xlu0 %v1086, 96
        %v2734 = vpop.permute.xlu0 %2733
        %2735 = vrot.lane.b32.xlu0 %v1089, 96
        %v2736 = vpop.permute.xlu0 %2735
        %2737 = vrot.lane.b32.xlu0 %v1091, 96
        %v2738 = vpop.permute.xlu0 %2737
        %2739 = vrot.lane.b32.xlu0 %v1298, 96
        %v2740 = vpop.permute.xlu0 %2739
        %2741 = vrot.lane.b32.xlu0 %v1300, 96
        %v2742 = vpop.permute.xlu0 %2741
        %2743 = vrot.lane.b32.xlu0 %v1356, 96
        %v2744 = vpop.permute.xlu0 %2743
        %2745 = vrot.lane.b32.xlu0 %v1358, 96
        %v2746 = vpop.permute.xlu0 %2745
        %v2779 = vsel %vm501, %v781, %v2204
        %v2780 = vsel %vm501, %v782, %v2206
        %v2781 = vsel %vm501, %v784, %v2208
        %v2782 = vsel %vm501, %v785, %v2210
        %v2783 = vsel %vm501, %v787, %v2212
        %v2784 = vsel %vm501, %v788, %v2214
        %v2785 = vsel %vm501, %v790, %v2216
        %v2786 = vsel %vm501, %v791, %v2218
        %v2787 = vsel %vm501, %v793, %v2220
        %v2788 = vsel %vm501, %v794, %v2222
        %v2789 = vsel %vm501, %v796, %v2224
        %v2790 = vsel %vm501, %v797, %v2226
        %v2791 = vsel %vm501, %v799, %v2228
        %v2792 = vsel %vm501, %v800, %v2230
        %v2793 = vsel %vm501, %v802, %v2232
        %v2794 = vsel %vm501, %v803, %v2234
        %v2795 = vsel %vm501, %v805, %v2236
        %v2796 = vsel %vm501, %v806, %v2238
        %v2797 = vsel %vm501, %v808, %v2240
        %v2798 = vsel %vm501, %v809, %v2242
        %v2799 = vsel %vm501, %v811, %v2244
        %v2800 = vsel %vm501, %v812, %v2246
        %v2801 = vsel %vm501, %v814, %v2248
        %v2802 = vsel %vm501, %v815, %v2250
        %v2803 = vsel %vm501, %v817, %v2252
        %v2804 = vsel %vm501, %v818, %v2254
        %v2805 = vsel %vm501, %v820, %v2256
        %v2806 = vsel %vm501, %v821, %v2258
        %v2807 = vsel %vm501, %v823, %v2260
        %v2808 = vsel %vm501, %v824, %v2262
        %v2809 = vsel %vm501, %v826, %v2264
        %v2810 = vsel %vm501, %v827, %v2266
        %v2811 = vsel %vm2041, %v2779, %v2300
        %v2812 = vsel %vm2041, %v2780, %v2302
        %v2813 = vsel %vm2041, %v2781, %v2304
        %v2814 = vsel %vm2041, %v2782, %v2306
        %v2815 = vsel %vm2041, %v2783, %v2308
        %v2816 = vsel %vm2041, %v2784, %v2310
        %v2817 = vsel %vm2041, %v2785, %v2312
        %v2818 = vsel %vm2041, %v2786, %v2314
        %v2819 = vsel %vm2041, %v2787, %v2316
        %v2820 = vsel %vm2041, %v2788, %v2318
        %v2821 = vsel %vm2041, %v2789, %v2320
        %v2822 = vsel %vm2041, %v2790, %v2322
        %v2823 = vsel %vm2041, %v2791, %v2324
        %v2824 = vsel %vm2041, %v2792, %v2326
        %v2825 = vsel %vm2041, %v2793, %v2328
        %v2826 = vsel %vm2041, %v2794, %v2330
        %v2827 = vsel %vm2041, %v2795, %v2332
        %v2828 = vsel %vm2041, %v2796, %v2334
        %v2829 = vsel %vm2041, %v2797, %v2336
        %v2830 = vsel %vm2041, %v2798, %v2338
        %v2831 = vsel %vm2041, %v2799, %v2340
        %v2832 = vsel %vm2041, %v2800, %v2342
        %v2833 = vsel %vm2041, %v2801, %v2344
        %v2834 = vsel %vm2041, %v2802, %v2346
        %v2835 = vsel %vm2041, %v2803, %v2348
        %v2836 = vsel %vm2041, %v2804, %v2350
        %v2837 = vsel %vm2041, %v2805, %v2352
        %v2838 = vsel %vm2041, %v2806, %v2354
        %v2839 = vsel %vm2041, %v2807, %v2356
        %v2840 = vsel %vm2041, %v2808, %v2358
        %v2841 = vsel %vm2041, %v2809, %v2360
        %v2842 = vsel %vm2041, %v2810, %v2362
        %v2843 = vsel %vm2074, %v2811, %v2396
        %v2844 = vsel %vm2074, %v2812, %v2398
        %v2845 = vsel %vm2074, %v2813, %v2400
        %v2846 = vsel %vm2074, %v2814, %v2402
        %v2847 = vsel %vm2074, %v2815, %v2404
        %v2848 = vsel %vm2074, %v2816, %v2406
        %v2849 = vsel %vm2074, %v2817, %v2408
        %v2850 = vsel %vm2074, %v2818, %v2410
        %v2851 = vsel %vm2074, %v2819, %v2412
        %v2852 = vsel %vm2074, %v2820, %v2414
        %v2853 = vsel %vm2074, %v2821, %v2416
        %v2854 = vsel %vm2074, %v2822, %v2418
        %v2855 = vsel %vm2074, %v2823, %v2420
        %v2856 = vsel %vm2074, %v2824, %v2422
        %v2857 = vsel %vm2074, %v2825, %v2424
        %v2858 = vsel %vm2074, %v2826, %v2426
        %v2859 = vsel %vm2074, %v2827, %v2428
        %v2860 = vsel %vm2074, %v2828, %v2430
        %v2861 = vsel %vm2074, %v2829, %v2432
        %v2862 = vsel %vm2074, %v2830, %v2434
        %v2863 = vsel %vm2074, %v2831, %v2436
        %v2864 = vsel %vm2074, %v2832, %v2438
        %v2865 = vsel %vm2074, %v2833, %v2440
        %v2866 = vsel %vm2074, %v2834, %v2442
        %v2867 = vsel %vm2074, %v2835, %v2444
        %v2868 = vsel %vm2074, %v2836, %v2446
        %v2869 = vsel %vm2074, %v2837, %v2448
        %v2870 = vsel %vm2074, %v2838, %v2450
        %v2871 = vsel %vm2074, %v2839, %v2452
        %v2872 = vsel %vm2074, %v2840, %v2454
        %v2873 = vsel %vm2074, %v2841, %v2456
        %v2874 = vsel %vm2074, %v2842, %v2458
        %v2875 = vsel %vm501, %v1019, %v2492
        %v2876 = vsel %vm501, %v1021, %v2494
        %v2877 = vsel %vm501, %v1024, %v2496
        %v2878 = vsel %vm501, %v1026, %v2498
        %v2879 = vsel %vm501, %v1029, %v2500
        %v2880 = vsel %vm501, %v1031, %v2502
        %v2881 = vsel %vm501, %v1034, %v2504
        %v2882 = vsel %vm501, %v1036, %v2506
        %v2883 = vsel %vm501, %v1039, %v2508
        %v2884 = vsel %vm501, %v1041, %v2510
        %v2885 = vsel %vm501, %v1044, %v2512
        %v2886 = vsel %vm501, %v1046, %v2514
        %v2887 = vsel %vm501, %v1049, %v2516
        %v2888 = vsel %vm501, %v1051, %v2518
        %v2889 = vsel %vm501, %v1054, %v2520
        %v2890 = vsel %vm501, %v1056, %v2522
        %v2891 = vsel %vm501, %v1059, %v2524
        %v2892 = vsel %vm501, %v1061, %v2526
        %v2893 = vsel %vm501, %v1064, %v2528
        %v2894 = vsel %vm501, %v1066, %v2530
        %v2895 = vsel %vm501, %v1069, %v2532
        %v2896 = vsel %vm501, %v1071, %v2534
        %v2897 = vsel %vm501, %v1074, %v2536
        %v2898 = vsel %vm501, %v1076, %v2538
        %v2899 = vsel %vm501, %v1079, %v2540
        %v2900 = vsel %vm501, %v1081, %v2542
        %v2901 = vsel %vm501, %v1084, %v2544
        %v2902 = vsel %vm501, %v1086, %v2546
        %v2903 = vsel %vm501, %v1089, %v2548
        %v2904 = vsel %vm501, %v1091, %v2550
        %v2905 = vsel %vm501, %v1298, %v2552
        %v2906 = vsel %vm501, %v1300, %v2554
        %v2907 = vsel %vm2041, %v2875, %v2588
        %v2908 = vsel %vm2041, %v2876, %v2590
        %v2909 = vsel %vm2041, %v2877, %v2592
        %v2910 = vsel %vm2041, %v2878, %v2594
        %v2911 = vsel %vm2041, %v2879, %v2596
        %v2912 = vsel %vm2041, %v2880, %v2598
        %v2913 = vsel %vm2041, %v2881, %v2600
        %v2914 = vsel %vm2041, %v2882, %v2602
        %v2915 = vsel %vm2041, %v2883, %v2604
        %v2916 = vsel %vm2041, %v2884, %v2606
        %v2917 = vsel %vm2041, %v2885, %v2608
        %v2918 = vsel %vm2041, %v2886, %v2610
        %v2919 = vsel %vm2041, %v2887, %v2612
        %v2920 = vsel %vm2041, %v2888, %v2614
        %v2921 = vsel %vm2041, %v2889, %v2616
        %v2922 = vsel %vm2041, %v2890, %v2618
        %v2923 = vsel %vm2041, %v2891, %v2620
        %v2924 = vsel %vm2041, %v2892, %v2622
        %v2925 = vsel %vm2041, %v2893, %v2624
        %v2926 = vsel %vm2041, %v2894, %v2626
        %v2927 = vsel %vm2041, %v2895, %v2628
        %v2928 = vsel %vm2041, %v2896, %v2630
        %v2929 = vsel %vm2041, %v2897, %v2632
        %v2930 = vsel %vm2041, %v2898, %v2634
        %v2931 = vsel %vm2041, %v2899, %v2636
        %v2932 = vsel %vm2041, %v2900, %v2638
        %v2933 = vsel %vm2041, %v2901, %v2640
        %v2934 = vsel %vm2041, %v2902, %v2642
        %v2935 = vsel %vm2041, %v2903, %v2644
        %v2936 = vsel %vm2041, %v2904, %v2646
        %v2937 = vsel %vm2041, %v2905, %v2648
        %v2938 = vsel %vm2041, %v2906, %v2650
        %v2939 = vsel %vm2074, %v2907, %v2684
        %v2940 = vsel %vm2074, %v2908, %v2686
        %v2941 = vsel %vm2074, %v2909, %v2688
        %v2942 = vsel %vm2074, %v2910, %v2690
        %v2943 = vsel %vm2074, %v2911, %v2692
        %v2944 = vsel %vm2074, %v2912, %v2694
        %v2945 = vsel %vm2074, %v2913, %v2696
        %v2946 = vsel %vm2074, %v2914, %v2698
        %v2947 = vsel %vm2074, %v2915, %v2700
        %v2948 = vsel %vm2074, %v2916, %v2702
        %v2949 = vsel %vm2074, %v2917, %v2704
        %v2950 = vsel %vm2074, %v2918, %v2706
        %v2951 = vsel %vm2074, %v2919, %v2708
        %v2952 = vsel %vm2074, %v2920, %v2710
        %v2953 = vsel %vm2074, %v2921, %v2712
        %v2954 = vsel %vm2074, %v2922, %v2714
        %v2955 = vsel %vm2074, %v2923, %v2716
        %v2956 = vsel %vm2074, %v2924, %v2718
        %v2957 = vsel %vm2074, %v2925, %v2720
        %v2958 = vsel %vm2074, %v2926, %v2722
        %v2959 = vsel %vm2074, %v2927, %v2724
        %v2960 = vsel %vm2074, %v2928, %v2726
        %v2961 = vsel %vm2074, %v2929, %v2728
        %v2962 = vsel %vm2074, %v2930, %v2730
        %v2963 = vsel %vm2074, %v2931, %v2732
        %v2964 = vsel %vm2074, %v2932, %v2734
        %v2965 = vsel %vm2074, %v2933, %v2736
        %v2966 = vsel %vm2074, %v2934, %v2738
        %v2967 = vsel %vm2074, %v2935, %v2740
        %v2968 = vsel %vm2074, %v2936, %v2742
        %v2969 = vsel %vm2074, %v2937, %v2744
        %v2970 = vsel %vm2074, %v2938, %v2746
        %v2971 = vpack.c.bf16 %v2076, %v2075
        %v2972 = vpack.c.bf16 %v2172, %v2171
        %v2973 = vpack.c.bf16 %v1107, %v1105
        %v2974 = vpack.c.bf16 %v2078, %v2077
        %v2975 = vpack.c.bf16 %v2174, %v2173
        %v2976 = vpack.c.bf16 %v1112, %v1110
        %v2977 = vpack.c.bf16 %v2080, %v2079
        %v2978 = vpack.c.bf16 %v2176, %v2175
        %v2979 = vpack.c.bf16 %v1117, %v1115
        %v2980 = vpack.c.bf16 %v2082, %v2081
        %v2981 = vpack.c.bf16 %v2178, %v2177
        %v2982 = vpack.c.bf16 %v1122, %v1120
        %v2983 = vpack.c.bf16 %v2084, %v2083
        %v2984 = vpack.c.bf16 %v2180, %v2179
        %v2985 = vpack.c.bf16 %v1127, %v1125
        %v2986 = vpack.c.bf16 %v2086, %v2085
        %v2987 = vpack.c.bf16 %v2182, %v2181
        %v2988 = vpack.c.bf16 %v1132, %v1130
        %v2989 = vpack.c.bf16 %v2088, %v2087
        %v2990 = vpack.c.bf16 %v2184, %v2183
        %v2991 = vpack.c.bf16 %v1137, %v1135
        %v2992 = vpack.c.bf16 %v2090, %v2089
        %v2993 = vpack.c.bf16 %v2186, %v2185
        %v2994 = vpack.c.bf16 %v1142, %v1140
        %v2995 = vpack.c.bf16 %v2092, %v2091
        %v2996 = vpack.c.bf16 %v2188, %v2187
        %v2997 = vpack.c.bf16 %v1147, %v1145
        %v2998 = vpack.c.bf16 %v2094, %v2093
        %v2999 = vpack.c.bf16 %v2190, %v2189
        %v3000 = vpack.c.bf16 %v1152, %v1150
        %v3001 = vpack.c.bf16 %v2096, %v2095
        %v3002 = vpack.c.bf16 %v2192, %v2191
        %v3003 = vpack.c.bf16 %v1157, %v1155
        %v3004 = vpack.c.bf16 %v2098, %v2097
        %v3005 = vpack.c.bf16 %v2194, %v2193
        %v3006 = vpack.c.bf16 %v1162, %v1160
        %v3007 = vpack.c.bf16 %v2100, %v2099
        %v3008 = vpack.c.bf16 %v2196, %v2195
        %v3009 = vpack.c.bf16 %v1167, %v1165
        %v3010 = vpack.c.bf16 %v2102, %v2101
        %v3011 = vpack.c.bf16 %v2198, %v2197
        %v3012 = vpack.c.bf16 %v1172, %v1170
        %v3013 = vpack.c.bf16 %v2104, %v2103
        %v3014 = vpack.c.bf16 %v2200, %v2199
        %v3015 = vpack.c.bf16 %v1337, %v1335
        %v3016 = vpack.c.bf16 %v2106, %v2105
        %v3017 = vpack.c.bf16 %v2202, %v2201
        %v3018 = vpack.c.bf16 %v1363, %v1361
        %v3019 = vld [vmem:[%s4] sm:$0xf]
        %v3020 = vld [vmem:[%s4 + $0x4] sm:$0xf]
        %v3021 = vld [vmem:[%s4 + $0x8] sm:$0xf]
        %v3022 = vld [vmem:[%s4 + $0xc] sm:$0xf]
        %v3023 = vld [vmem:[%s4 + $0x10] sm:$0xf]
        %v3024 = vld [vmem:[%s4 + $0x14] sm:$0xf]
        %v3025 = vld [vmem:[%s4 + $0x18] sm:$0xf]
        %v3026 = vld [vmem:[%s4 + $0x1c] sm:$0xf]
        %v3027 = vld [vmem:[%s4 + $0x20] sm:$0xf]
        %v3028 = vld [vmem:[%s4 + $0x24] sm:$0xf]
        %v3029 = vld [vmem:[%s4 + $0x28] sm:$0xf]
        %v3030 = vld [vmem:[%s4 + $0x2c] sm:$0xf]
        %v3031 = vld [vmem:[%s4 + $0x30] sm:$0xf]
        %v3032 = vld [vmem:[%s4 + $0x34] sm:$0xf]
        %v3033 = vld [vmem:[%s4 + $0x38] sm:$0xf]
        %v3034 = vld [vmem:[%s4 + $0x3c] sm:$0xf]
        %v3035 = vld [vmem:[%s4 + $0x40] sm:$0xf]
        %v3036 = vld [vmem:[%s4 + $0x44] sm:$0xf]
        %v3037 = vld [vmem:[%s4 + $0x48] sm:$0xf]
        %v3038 = vld [vmem:[%s4 + $0x4c] sm:$0xf]
        %v3039 = vld [vmem:[%s4 + $0x50] sm:$0xf]
        %v3040 = vld [vmem:[%s4 + $0x54] sm:$0xf]
        %v3041 = vld [vmem:[%s4 + $0x58] sm:$0xf]
        %v3042 = vld [vmem:[%s4 + $0x5c] sm:$0xf]
        %v3043 = vld [vmem:[%s4 + $0x60] sm:$0xf]
        %v3044 = vld [vmem:[%s4 + $0x64] sm:$0xf]
        %v3045 = vld [vmem:[%s4 + $0x68] sm:$0xf]
        %v3046 = vld [vmem:[%s4 + $0x6c] sm:$0xf]
        %v3047 = vld [vmem:[%s4 + $0x70] sm:$0xf]
        %v3048 = vld [vmem:[%s4 + $0x74] sm:$0xf]
        %v3049 = vld [vmem:[%s4 + $0x78] sm:$0xf]
        %v3050 = vld [vmem:[%s4 + $0x7c] sm:$0xf]
        %v3051 = vld [vmem:[%s4 + $0x80] sm:$0xf]
        %v3052 = vld [vmem:[%s4 + $0x84] sm:$0xf]
        %v3053 = vld [vmem:[%s4 + $0x88] sm:$0xf]
        %v3054 = vld [vmem:[%s4 + $0x8c] sm:$0xf]
        %v3055 = vpack.c.bf16 %v2844, %v2843
        %v3056 = vpack.c.bf16 %v2940, %v2939
        %v3057 = vpack.c.bf16 %v1187, %v1185
        %v3058 = vpack.c.bf16 %v2846, %v2845
        %v3059 = vpack.c.bf16 %v2942, %v2941
        %v3060 = vpack.c.bf16 %v1192, %v1190
        %v3061 = vpack.c.bf16 %v2848, %v2847
        %v3062 = vpack.c.bf16 %v2944, %v2943
        %v3063 = vpack.c.bf16 %v1197, %v1195
        %v3064 = vpack.c.bf16 %v2850, %v2849
        %v3065 = vpack.c.bf16 %v2946, %v2945
        %v3066 = vpack.c.bf16 %v1202, %v1200
        %v3067 = vpack.c.bf16 %v2852, %v2851
        %v3068 = vpack.c.bf16 %v2948, %v2947
        %v3069 = vpack.c.bf16 %v1207, %v1205
        %v3070 = vpack.c.bf16 %v2854, %v2853
        %v3071 = vpack.c.bf16 %v2950, %v2949
        %v3072 = vpack.c.bf16 %v1212, %v1210
        %v3073 = vpack.c.bf16 %v2856, %v2855
        %v3074 = vpack.c.bf16 %v2952, %v2951
        %v3075 = vpack.c.bf16 %v1217, %v1215
        %v3076 = vpack.c.bf16 %v2858, %v2857
        %v3077 = vpack.c.bf16 %v2954, %v2953
        %v3078 = vpack.c.bf16 %v1222, %v1220
        %v3079 = vpack.c.bf16 %v2860, %v2859
        %v3080 = vpack.c.bf16 %v2956, %v2955
        %v3081 = vpack.c.bf16 %v1227, %v1225
        %v3082 = vpack.c.bf16 %v2862, %v2861
        %v3083 = vpack.c.bf16 %v2958, %v2957
        %v3084 = vpack.c.bf16 %v1232, %v1230
        %v3085 = vpack.c.bf16 %v2864, %v2863
        %v3086 = vpack.c.bf16 %v2960, %v2959
        %v3087 = vpack.c.bf16 %v1237, %v1235
        %v3088 = vpack.c.bf16 %v2866, %v2865
        %v3089 = vpack.c.bf16 %v2962, %v2961
        %v3090 = vpack.c.bf16 %v1242, %v1240
        %v3091 = vpack.c.bf16 %v2868, %v2867
        %v3092 = vpack.c.bf16 %v2964, %v2963
        %v3093 = vpack.c.bf16 %v1247, %v1245
        %v3094 = vpack.c.bf16 %v2870, %v2869
        %v3095 = vpack.c.bf16 %v2966, %v2965
        %v3096 = vpack.c.bf16 %v1252, %v1250
        %v3097 = vpack.c.bf16 %v2872, %v2871
        %v3098 = vpack.c.bf16 %v2968, %v2967
        %v3099 = vpack.c.bf16 %v1342, %v1340
        %v3100 = vpack.c.bf16 %v2874, %v2873
        %v3101 = vpack.c.bf16 %v2970, %v2969
        %v3102 = vpack.c.bf16 %v1400, %v1398
        %v3103 = vld [vmem:[%s5] sm:$0xf]
        %v3104 = vld [vmem:[%s5 + $0x4] sm:$0xf]
        %v3105 = vld [vmem:[%s5 + $0x8] sm:$0xf]
        %v3106 = vld [vmem:[%s5 + $0xc] sm:$0xf]
        %v3107 = vld [vmem:[%s5 + $0x10] sm:$0xf]
        %v3108 = vld [vmem:[%s5 + $0x14] sm:$0xf]
        %v3109 = vld [vmem:[%s5 + $0x18] sm:$0xf]
        %v3110 = vld [vmem:[%s5 + $0x1c] sm:$0xf]
        %v3111 = vld [vmem:[%s5 + $0x20] sm:$0xf]
        %v3112 = vld [vmem:[%s5 + $0x24] sm:$0xf]
        %v3113 = vld [vmem:[%s5 + $0x28] sm:$0xf]
        %v3114 = vld [vmem:[%s5 + $0x2c] sm:$0xf]
        %v3115 = vld [vmem:[%s5 + $0x30] sm:$0xf]
        %v3116 = vld [vmem:[%s5 + $0x34] sm:$0xf]
        %v3117 = vld [vmem:[%s5 + $0x38] sm:$0xf]
        %v3118 = vld [vmem:[%s5 + $0x3c] sm:$0xf]
        %v3119 = vld [vmem:[%s5 + $0x40] sm:$0xf]
        %v3120 = vld [vmem:[%s5 + $0x44] sm:$0xf]
        %v3121 = vld [vmem:[%s5 + $0x48] sm:$0xf]
        %v3122 = vld [vmem:[%s5 + $0x4c] sm:$0xf]
        %v3123 = vld [vmem:[%s5 + $0x50] sm:$0xf]
        %v3124 = vld [vmem:[%s5 + $0x54] sm:$0xf]
        %v3125 = vld [vmem:[%s5 + $0x58] sm:$0xf]
        %v3126 = vld [vmem:[%s5 + $0x5c] sm:$0xf]
        %v3127 = vld [vmem:[%s5 + $0x60] sm:$0xf]
        %v3128 = vld [vmem:[%s5 + $0x64] sm:$0xf]
        %v3129 = vld [vmem:[%s5 + $0x68] sm:$0xf]
        %v3130 = vld [vmem:[%s5 + $0x6c] sm:$0xf]
        %v3131 = vld [vmem:[%s5 + $0x70] sm:$0xf]
        %v3132 = vld [vmem:[%s5 + $0x74] sm:$0xf]
        %v3133 = vld [vmem:[%s5 + $0x78] sm:$0xf]
        %v3134 = vld [vmem:[%s5 + $0x7c] sm:$0xf]
        %v3135 = vld [vmem:[%s5 + $0x80] sm:$0xf]
        %v3136 = vld [vmem:[%s5 + $0x84] sm:$0xf]
        %v3137 = vld [vmem:[%s5 + $0x88] sm:$0xf]
        %v3138 = vld [vmem:[%s5 + $0x8c] sm:$0xf]
        %v3175 = vunpack.c.l.b16 %v3103
        %v3176 = vunpack.c.l.b16 %v3104
        %v3177 = vunpack.c.l.b16 %v3105
        %v3178 = vunpack.c.l.b16 %v3106
        %v3179 = vunpack.c.l.b16 %v3107
        %v3180 = vunpack.c.l.b16 %v3108
        %v3181 = vunpack.c.l.b16 %v3109
        %v3182 = vunpack.c.l.b16 %v3110
        %v3183 = vunpack.c.l.b16 %v3111
        %v3184 = vunpack.c.l.b16 %v3112
        %v3185 = vunpack.c.l.b16 %v3113
        %v3186 = vunpack.c.l.b16 %v3114
        %v3187 = vunpack.c.l.b16 %v3115
        %v3188 = vunpack.c.l.b16 %v3116
        %v3189 = vunpack.c.l.b16 %v3117
        %v3190 = vunpack.c.l.b16 %v3118
        %v3191 = vunpack.c.l.b16 %v3119
        %v3192 = vunpack.c.l.b16 %v3120
        %v3193 = vunpack.c.l.b16 %v3121
        %v3194 = vunpack.c.l.b16 %v3122
        %v3195 = vunpack.c.l.b16 %v3123
        %v3196 = vunpack.c.l.b16 %v3124
        %v3197 = vunpack.c.l.b16 %v3125
        %v3198 = vunpack.c.l.b16 %v3126
        %v3199 = vunpack.c.l.b16 %v3127
        %v3200 = vunpack.c.l.b16 %v3128
        %v3201 = vunpack.c.l.b16 %v3129
        %v3202 = vunpack.c.l.b16 %v3130
        %v3203 = vunpack.c.l.b16 %v3131
        %v3204 = vunpack.c.l.b16 %v3132
        %v3205 = vunpack.c.l.b16 %v3133
        %v3206 = vunpack.c.l.b16 %v3134
        %v3207 = vunpack.c.l.b16 %v3135
        %v3208 = vunpack.c.l.b16 %v3136
        %v3209 = vunpack.c.l.b16 %v3137
        %v3210 = vunpack.c.l.b16 %v3138
        %v3211 = vpack.c.b16 %v3176, %v3175
        %v3212 = vpack.c.b16 %v3178, %v3177
        %v3213 = vpack.c.b16 %v3180, %v3179
        %v3214 = vpack.c.b16 %v3182, %v3181
        %v3215 = vpack.c.b16 %v3184, %v3183
        %v3216 = vpack.c.b16 %v3186, %v3185
        %v3217 = vpack.c.b16 %v3188, %v3187
        %v3218 = vpack.c.b16 %v3190, %v3189
        %v3219 = vpack.c.b16 %v3192, %v3191
        %v3220 = vpack.c.b16 %v3194, %v3193
        %v3221 = vpack.c.b16 %v3196, %v3195
        %v3222 = vpack.c.b16 %v3198, %v3197
        %v3223 = vpack.c.b16 %v3200, %v3199
        %v3224 = vpack.c.b16 %v3202, %v3201
        %v3225 = vpack.c.b16 %v3204, %v3203
        %v3226 = vpack.c.b16 %v3206, %v3205
        %v3227 = vpack.c.b16 %v3208, %v3207
        %v3228 = vpack.c.b16 %v3210, %v3209
        %v3248 = vsel %vm501, %v3057, 0
        %v3251 = vsel %vm501, %v3060, 0
        %v3254 = vsel %vm501, %v3063, 0
        %v3257 = vsel %vm501, %v3066, 0
        %v3260 = vsel %vm501, %v3069, 0
        %v3263 = vsel %vm501, %v3072, 0
        %v3266 = vsel %vm501, %v3075, 0
        %v3269 = vsel %vm501, %v3078, 0
        %v3272 = vsel %vm501, %v3081, 0
        %v3275 = vsel %vm501, %v3084, 0
        %v3278 = vsel %vm501, %v3087, 0
        %v3281 = vsel %vm501, %v3090, 0
        %v3284 = vsel %vm501, %v3093, 0
        %v3287 = vsel %vm501, %v3096, 0
        %v3290 = vsel %vm501, %v3099, 0
        %v3293 = vsel %vm501, %v3102, 0
        %3295 = vmatpush.bf16.msra.mxu0 %v3218
        %3296 = vmatpush.bf16.msra.mxu0 %v3217
        %3297 = vmatpush.bf16.msra.mxu0 %v3216
        %3298 = vmatpush.bf16.msra.mxu0 %v3215
        %3299 = vmatpush.bf16.msra.mxu0 %v3214
        %3300 = vmatpush.bf16.msra.mxu0 %v3213
        %3301 = vmatpush.bf16.msra.mxu0 %v3212
        %3302 = vmatpush.bf16.msra.mxu0 %v3211
        %3303 = vmatmul.bf16.gmra.mxu0 %v3055
        %v3304 = vpop.f32.mrf.mxu0
        %v3305 = vadd.f32 0.0, %v3304
        %v3306 = vpop.f32.mrf.mxu0
        %v3307 = vadd.f32 0.0, %v3306
        %3308 = vmatmul.bf16.gmra.mxu0 %v3058
        %v3309 = vpop.f32.mrf.mxu0
        %v3310 = vadd.f32 0.0, %v3309
        %v3311 = vpop.f32.mrf.mxu0
        %v3312 = vadd.f32 0.0, %v3311
        %3313 = vmatmul.bf16.gmra.mxu0 %v3061
        %v3314 = vpop.f32.mrf.mxu0
        %v3315 = vadd.f32 0.0, %v3314
        %v3316 = vpop.f32.mrf.mxu0
        %v3317 = vadd.f32 0.0, %v3316
        %3318 = vmatmul.bf16.gmra.mxu0 %v3064
        %v3319 = vpop.f32.mrf.mxu0
        %v3320 = vadd.f32 0.0, %v3319
        %v3321 = vpop.f32.mrf.mxu0
        %v3322 = vadd.f32 0.0, %v3321
        %3323 = vmatmul.bf16.gmra.mxu0 %v3067
        %v3324 = vpop.f32.mrf.mxu0
        %v3325 = vadd.f32 0.0, %v3324
        %v3326 = vpop.f32.mrf.mxu0
        %v3327 = vadd.f32 0.0, %v3326
        %3328 = vmatmul.bf16.gmra.mxu0 %v3070
        %v3329 = vpop.f32.mrf.mxu0
        %v3330 = vadd.f32 0.0, %v3329
        %v3331 = vpop.f32.mrf.mxu0
        %v3332 = vadd.f32 0.0, %v3331
        %3333 = vmatmul.bf16.gmra.mxu0 %v3073
        %v3334 = vpop.f32.mrf.mxu0
        %v3335 = vadd.f32 0.0, %v3334
        %v3336 = vpop.f32.mrf.mxu0
        %v3337 = vadd.f32 0.0, %v3336
        %3338 = vmatmul.bf16.gmra.mxu0 %v3076
        %v3339 = vpop.f32.mrf.mxu0
        %v3340 = vadd.f32 0.0, %v3339
        %v3341 = vpop.f32.mrf.mxu0
        %v3342 = vadd.f32 0.0, %v3341
        %3343 = vmatmul.bf16.gmra.mxu0 %v3079
        %v3344 = vpop.f32.mrf.mxu0
        %v3345 = vadd.f32 0.0, %v3344
        %v3346 = vpop.f32.mrf.mxu0
        %v3347 = vadd.f32 0.0, %v3346
        %3348 = vmatmul.bf16.gmra.mxu0 %v3082
        %v3349 = vpop.f32.mrf.mxu0
        %v3350 = vadd.f32 0.0, %v3349
        %v3351 = vpop.f32.mrf.mxu0
        %v3352 = vadd.f32 0.0, %v3351
        %3353 = vmatmul.bf16.gmra.mxu0 %v3085
        %v3354 = vpop.f32.mrf.mxu0
        %v3355 = vadd.f32 0.0, %v3354
        %v3356 = vpop.f32.mrf.mxu0
        %v3357 = vadd.f32 0.0, %v3356
        %3358 = vmatmul.bf16.gmra.mxu0 %v3088
        %v3359 = vpop.f32.mrf.mxu0
        %v3360 = vadd.f32 0.0, %v3359
        %v3361 = vpop.f32.mrf.mxu0
        %v3362 = vadd.f32 0.0, %v3361
        %3363 = vmatmul.bf16.gmra.mxu0 %v3091
        %v3364 = vpop.f32.mrf.mxu0
        %v3365 = vadd.f32 0.0, %v3364
        %v3366 = vpop.f32.mrf.mxu0
        %v3367 = vadd.f32 0.0, %v3366
        %3368 = vmatmul.bf16.gmra.mxu0 %v3094
        %v3369 = vpop.f32.mrf.mxu0
        %v3370 = vadd.f32 0.0, %v3369
        %v3371 = vpop.f32.mrf.mxu0
        %v3372 = vadd.f32 0.0, %v3371
        %3373 = vmatmul.bf16.gmra.mxu0 %v3097
        %v3374 = vpop.f32.mrf.mxu0
        %v3375 = vadd.f32 0.0, %v3374
        %v3376 = vpop.f32.mrf.mxu0
        %v3377 = vadd.f32 0.0, %v3376
        %3378 = vmatmul.bf16.gmra.mxu0 %v3100
        %v3379 = vpop.f32.mrf.mxu0
        %v3380 = vadd.f32 0.0, %v3379
        %v3381 = vpop.f32.mrf.mxu0
        %v3382 = vadd.f32 0.0, %v3381
        %3383 = vdwg.mxu0
        %3384 = vmatpush.bf16.msra.mxu0 %v3226
        %3385 = vmatpush.bf16.msra.mxu0 %v3225
        %3386 = vmatpush.bf16.msra.mxu0 %v3224
        %3387 = vmatpush.bf16.msra.mxu0 %v3223
        %3388 = vmatpush.bf16.msra.mxu0 %v3222
        %3389 = vmatpush.bf16.msra.mxu0 %v3221
        %3390 = vmatpush.bf16.msra.mxu0 %v3220
        %3391 = vmatpush.bf16.msra.mxu0 %v3219
        %3392 = vmatmul.bf16.gmra.mxu0 %v3056
        %v3393 = vpop.f32.mrf.mxu0
        %v3394 = vadd.f32 %v3305, %v3393
        %v3395 = vpop.f32.mrf.mxu0
        %v3396 = vadd.f32 %v3307, %v3395
        %3397 = vmatmul.bf16.gmra.mxu0 %v3059
        %v3398 = vpop.f32.mrf.mxu0
        %v3399 = vadd.f32 %v3310, %v3398
        %v3400 = vpop.f32.mrf.mxu0
        %v3401 = vadd.f32 %v3312, %v3400
        %3402 = vmatmul.bf16.gmra.mxu0 %v3062
        %v3403 = vpop.f32.mrf.mxu0
        %v3404 = vadd.f32 %v3315, %v3403
        %v3405 = vpop.f32.mrf.mxu0
        %v3406 = vadd.f32 %v3317, %v3405
        %3407 = vmatmul.bf16.gmra.mxu0 %v3065
        %v3408 = vpop.f32.mrf.mxu0
        %v3409 = vadd.f32 %v3320, %v3408
        %v3410 = vpop.f32.mrf.mxu0
        %v3411 = vadd.f32 %v3322, %v3410
        %3412 = vmatmul.bf16.gmra.mxu0 %v3068
        %v3413 = vpop.f32.mrf.mxu0
        %v3414 = vadd.f32 %v3325, %v3413
        %v3415 = vpop.f32.mrf.mxu0
        %v3416 = vadd.f32 %v3327, %v3415
        %3417 = vmatmul.bf16.gmra.mxu0 %v3071
        %v3418 = vpop.f32.mrf.mxu0
        %v3419 = vadd.f32 %v3330, %v3418
        %v3420 = vpop.f32.mrf.mxu0
        %v3421 = vadd.f32 %v3332, %v3420
        %3422 = vmatmul.bf16.gmra.mxu0 %v3074
        %v3423 = vpop.f32.mrf.mxu0
        %v3424 = vadd.f32 %v3335, %v3423
        %v3425 = vpop.f32.mrf.mxu0
        %v3426 = vadd.f32 %v3337, %v3425
        %3427 = vmatmul.bf16.gmra.mxu0 %v3077
        %v3428 = vpop.f32.mrf.mxu0
        %v3429 = vadd.f32 %v3340, %v3428
        %v3430 = vpop.f32.mrf.mxu0
        %v3431 = vadd.f32 %v3342, %v3430
        %3432 = vmatmul.bf16.gmra.mxu0 %v3080
        %v3433 = vpop.f32.mrf.mxu0
        %v3434 = vadd.f32 %v3345, %v3433
        %v3435 = vpop.f32.mrf.mxu0
        %v3436 = vadd.f32 %v3347, %v3435
        %3437 = vmatmul.bf16.gmra.mxu0 %v3083
        %v3438 = vpop.f32.mrf.mxu0
        %v3439 = vadd.f32 %v3350, %v3438
        %v3440 = vpop.f32.mrf.mxu0
        %v3441 = vadd.f32 %v3352, %v3440
        %3442 = vmatmul.bf16.gmra.mxu0 %v3086
        %v3443 = vpop.f32.mrf.mxu0
        %v3444 = vadd.f32 %v3355, %v3443
        %v3445 = vpop.f32.mrf.mxu0
        %v3446 = vadd.f32 %v3357, %v3445
        %3447 = vmatmul.bf16.gmra.mxu0 %v3089
        %v3448 = vpop.f32.mrf.mxu0
        %v3449 = vadd.f32 %v3360, %v3448
        %v3450 = vpop.f32.mrf.mxu0
        %v3451 = vadd.f32 %v3362, %v3450
        %3452 = vmatmul.bf16.gmra.mxu0 %v3092
        %v3453 = vpop.f32.mrf.mxu0
        %v3454 = vadd.f32 %v3365, %v3453
        %v3455 = vpop.f32.mrf.mxu0
        %v3456 = vadd.f32 %v3367, %v3455
        %3457 = vmatmul.bf16.gmra.mxu0 %v3095
        %v3458 = vpop.f32.mrf.mxu0
        %v3459 = vadd.f32 %v3370, %v3458
        %v3460 = vpop.f32.mrf.mxu0
        %v3461 = vadd.f32 %v3372, %v3460
        %3462 = vmatmul.bf16.gmra.mxu0 %v3098
        %v3463 = vpop.f32.mrf.mxu0
        %v3464 = vadd.f32 %v3375, %v3463
        %v3465 = vpop.f32.mrf.mxu0
        %v3466 = vadd.f32 %v3377, %v3465
        %3467 = vmatmul.bf16.gmra.mxu0 %v3101
        %v3468 = vpop.f32.mrf.mxu0
        %v3469 = vadd.f32 %v3380, %v3468
        %v3470 = vpop.f32.mrf.mxu0
        %v3471 = vadd.f32 %v3382, %v3470
        %3472 = vdwg.mxu0
        %3473 = vmatpush.bf16.msra.mxu0 0
        %3474 = vmatpush.bf16.msra.mxu0 0
        %3475 = vmatpush.bf16.msra.mxu0 0
        %3476 = vmatpush.bf16.msra.mxu0 0
        %3477 = vmatpush.bf16.msra.mxu0 0
        %3478 = vmatpush.bf16.msra.mxu0 0
        %3479 = vmatpush.bf16.msra.mxu0 %v3228
        %3480 = vmatpush.bf16.msra.mxu0 %v3227
        %3481 = vmatmul.bf16.gmra.mxu0 %v3248
        %v3482 = vpop.f32.mrf.mxu0
        %v3483 = vadd.f32 %v3394, %v3482
        %v3484 = vpop.f32.mrf.mxu0
        %v3485 = vadd.f32 %v3396, %v3484
        %3486 = vmatmul.bf16.gmra.mxu0 %v3251
        %v3487 = vpop.f32.mrf.mxu0
        %v3488 = vadd.f32 %v3399, %v3487
        %v3489 = vpop.f32.mrf.mxu0
        %v3490 = vadd.f32 %v3401, %v3489
        %3491 = vmatmul.bf16.gmra.mxu0 %v3254
        %v3492 = vpop.f32.mrf.mxu0
        %v3493 = vadd.f32 %v3404, %v3492
        %v3494 = vpop.f32.mrf.mxu0
        %v3495 = vadd.f32 %v3406, %v3494
        %3496 = vmatmul.bf16.gmra.mxu0 %v3257
        %v3497 = vpop.f32.mrf.mxu0
        %v3498 = vadd.f32 %v3409, %v3497
        %v3499 = vpop.f32.mrf.mxu0
        %v3500 = vadd.f32 %v3411, %v3499
        %3501 = vmatmul.bf16.gmra.mxu0 %v3260
        %v3502 = vpop.f32.mrf.mxu0
        %v3503 = vadd.f32 %v3414, %v3502
        %v3504 = vpop.f32.mrf.mxu0
        %v3505 = vadd.f32 %v3416, %v3504
        %3506 = vmatmul.bf16.gmra.mxu0 %v3263
        %v3507 = vpop.f32.mrf.mxu0
        %v3508 = vadd.f32 %v3419, %v3507
        %v3509 = vpop.f32.mrf.mxu0
        %v3510 = vadd.f32 %v3421, %v3509
        %3511 = vmatmul.bf16.gmra.mxu0 %v3266
        %v3512 = vpop.f32.mrf.mxu0
        %v3513 = vadd.f32 %v3424, %v3512
        %v3514 = vpop.f32.mrf.mxu0
        %v3515 = vadd.f32 %v3426, %v3514
        %3516 = vmatmul.bf16.gmra.mxu0 %v3269
        %v3517 = vpop.f32.mrf.mxu0
        %v3518 = vadd.f32 %v3429, %v3517
        %v3519 = vpop.f32.mrf.mxu0
        %v3520 = vadd.f32 %v3431, %v3519
        %3521 = vmatmul.bf16.gmra.mxu0 %v3272
        %v3522 = vpop.f32.mrf.mxu0
        %v3523 = vadd.f32 %v3434, %v3522
        %v3524 = vpop.f32.mrf.mxu0
        %v3525 = vadd.f32 %v3436, %v3524
        %3526 = vmatmul.bf16.gmra.mxu0 %v3275
        %v3527 = vpop.f32.mrf.mxu0
        %v3528 = vadd.f32 %v3439, %v3527
        %v3529 = vpop.f32.mrf.mxu0
        %v3530 = vadd.f32 %v3441, %v3529
        %3531 = vmatmul.bf16.gmra.mxu0 %v3278
        %v3532 = vpop.f32.mrf.mxu0
        %v3533 = vadd.f32 %v3444, %v3532
        %v3534 = vpop.f32.mrf.mxu0
        %v3535 = vadd.f32 %v3446, %v3534
        %3536 = vmatmul.bf16.gmra.mxu0 %v3281
        %v3537 = vpop.f32.mrf.mxu0
        %v3538 = vadd.f32 %v3449, %v3537
        %v3539 = vpop.f32.mrf.mxu0
        %v3540 = vadd.f32 %v3451, %v3539
        %3541 = vmatmul.bf16.gmra.mxu0 %v3284
        %v3542 = vpop.f32.mrf.mxu0
        %v3543 = vadd.f32 %v3454, %v3542
        %v3544 = vpop.f32.mrf.mxu0
        %v3545 = vadd.f32 %v3456, %v3544
        %3546 = vmatmul.bf16.gmra.mxu0 %v3287
        %v3547 = vpop.f32.mrf.mxu0
        %v3548 = vadd.f32 %v3459, %v3547
        %v3549 = vpop.f32.mrf.mxu0
        %v3550 = vadd.f32 %v3461, %v3549
        %3551 = vmatmul.bf16.gmra.mxu0 %v3290
        %v3552 = vpop.f32.mrf.mxu0
        %v3553 = vadd.f32 %v3464, %v3552
        %v3554 = vpop.f32.mrf.mxu0
        %v3555 = vadd.f32 %v3466, %v3554
        %3556 = vmatmul.bf16.gmra.mxu0 %v3293
        %v3557 = vpop.f32.mrf.mxu0
        %v3558 = vadd.f32 %v3469, %v3557
        %v3559 = vpop.f32.mrf.mxu0
        %v3560 = vadd.f32 %v3471, %v3559
        %3561 = vdwg.mxu0
        %v3598 = vunpack.c.l.b16 %v3019
        %v3599 = vunpack.c.l.b16 %v3020
        %v3600 = vunpack.c.l.b16 %v3021
        %v3601 = vunpack.c.l.b16 %v3022
        %v3602 = vunpack.c.l.b16 %v3023
        %v3603 = vunpack.c.l.b16 %v3024
        %v3604 = vunpack.c.l.b16 %v3025
        %v3605 = vunpack.c.l.b16 %v3026
        %v3606 = vunpack.c.l.b16 %v3027
        %v3607 = vunpack.c.l.b16 %v3028
        %v3608 = vunpack.c.l.b16 %v3029
        %v3609 = vunpack.c.l.b16 %v3030
        %v3610 = vunpack.c.l.b16 %v3031
        %v3611 = vunpack.c.l.b16 %v3032
        %v3612 = vunpack.c.l.b16 %v3033
        %v3613 = vunpack.c.l.b16 %v3034
        %v3614 = vunpack.c.l.b16 %v3035
        %v3615 = vunpack.c.l.b16 %v3036
        %v3616 = vunpack.c.l.b16 %v3037
        %v3617 = vunpack.c.l.b16 %v3038
        %v3618 = vunpack.c.l.b16 %v3039
        %v3619 = vunpack.c.l.b16 %v3040
        %v3620 = vunpack.c.l.b16 %v3041
        %v3621 = vunpack.c.l.b16 %v3042
        %v3622 = vunpack.c.l.b16 %v3043
        %v3623 = vunpack.c.l.b16 %v3044
        %v3624 = vunpack.c.l.b16 %v3045
        %v3625 = vunpack.c.l.b16 %v3046
        %v3626 = vunpack.c.l.b16 %v3047
        %v3627 = vunpack.c.l.b16 %v3048
        %v3628 = vunpack.c.l.b16 %v3049
        %v3629 = vunpack.c.l.b16 %v3050
        %v3630 = vunpack.c.l.b16 %v3051
        %v3631 = vunpack.c.l.b16 %v3052
        %v3632 = vunpack.c.l.b16 %v3053
        %v3633 = vunpack.c.l.b16 %v3054
        %v3634 = vpack.c.b16 %v3599, %v3598
        %v3635 = vpack.c.b16 %v3601, %v3600
        %v3636 = vpack.c.b16 %v3603, %v3602
        %v3637 = vpack.c.b16 %v3605, %v3604
        %v3638 = vpack.c.b16 %v3607, %v3606
        %v3639 = vpack.c.b16 %v3609, %v3608
        %v3640 = vpack.c.b16 %v3611, %v3610
        %v3641 = vpack.c.b16 %v3613, %v3612
        %v3642 = vpack.c.b16 %v3615, %v3614
        %v3643 = vpack.c.b16 %v3617, %v3616
        %v3644 = vpack.c.b16 %v3619, %v3618
        %v3645 = vpack.c.b16 %v3621, %v3620
        %v3646 = vpack.c.b16 %v3623, %v3622
        %v3647 = vpack.c.b16 %v3625, %v3624
        %v3648 = vpack.c.b16 %v3627, %v3626
        %v3649 = vpack.c.b16 %v3629, %v3628
        %v3650 = vpack.c.b16 %v3631, %v3630
        %v3651 = vpack.c.b16 %v3633, %v3632
        %v3671 = vsel %vm501, %v2973, 0
        %v3674 = vsel %vm501, %v2976, 0
        %v3677 = vsel %vm501, %v2979, 0
        %v3680 = vsel %vm501, %v2982, 0
        %v3683 = vsel %vm501, %v2985, 0
        %v3686 = vsel %vm501, %v2988, 0
        %v3689 = vsel %vm501, %v2991, 0
        %v3692 = vsel %vm501, %v2994, 0
        %v3695 = vsel %vm501, %v2997, 0
        %v3698 = vsel %vm501, %v3000, 0
        %v3701 = vsel %vm501, %v3003, 0
        %v3704 = vsel %vm501, %v3006, 0
        %v3707 = vsel %vm501, %v3009, 0
        %v3710 = vsel %vm501, %v3012, 0
        %v3713 = vsel %vm501, %v3015, 0
        %v3716 = vsel %vm501, %v3018, 0
        %3718 = vmatpush.bf16.msra.mxu0 %v3641
        %3719 = vmatpush.bf16.msra.mxu0 %v3640
        %3720 = vmatpush.bf16.msra.mxu0 %v3639
        %3721 = vmatpush.bf16.msra.mxu0 %v3638
        %3722 = vmatpush.bf16.msra.mxu0 %v3637
        %3723 = vmatpush.bf16.msra.mxu0 %v3636
        %3724 = vmatpush.bf16.msra.mxu0 %v3635
        %3725 = vmatpush.bf16.msra.mxu0 %v3634
        %3726 = vmatmul.bf16.gmra.mxu0 %v2971
        %v3727 = vpop.f32.mrf.mxu0
        %v3728 = vadd.f32 %v3483, %v3727
        %v3729 = vpop.f32.mrf.mxu0
        %v3730 = vadd.f32 %v3485, %v3729
        %3731 = vmatmul.bf16.gmra.mxu0 %v2974
        %v3732 = vpop.f32.mrf.mxu0
        %v3733 = vadd.f32 %v3488, %v3732
        %v3734 = vpop.f32.mrf.mxu0
        %v3735 = vadd.f32 %v3490, %v3734
        %3736 = vmatmul.bf16.gmra.mxu0 %v2977
        %v3737 = vpop.f32.mrf.mxu0
        %v3738 = vadd.f32 %v3493, %v3737
        %v3739 = vpop.f32.mrf.mxu0
        %v3740 = vadd.f32 %v3495, %v3739
        %3741 = vmatmul.bf16.gmra.mxu0 %v2980
        %v3742 = vpop.f32.mrf.mxu0
        %v3743 = vadd.f32 %v3498, %v3742
        %v3744 = vpop.f32.mrf.mxu0
        %v3745 = vadd.f32 %v3500, %v3744
        %3746 = vmatmul.bf16.gmra.mxu0 %v2983
        %v3747 = vpop.f32.mrf.mxu0
        %v3748 = vadd.f32 %v3503, %v3747
        %v3749 = vpop.f32.mrf.mxu0
        %v3750 = vadd.f32 %v3505, %v3749
        %3751 = vmatmul.bf16.gmra.mxu0 %v2986
        %v3752 = vpop.f32.mrf.mxu0
        %v3753 = vadd.f32 %v3508, %v3752
        %v3754 = vpop.f32.mrf.mxu0
        %v3755 = vadd.f32 %v3510, %v3754
        %3756 = vmatmul.bf16.gmra.mxu0 %v2989
        %v3757 = vpop.f32.mrf.mxu0
        %v3758 = vadd.f32 %v3513, %v3757
        %v3759 = vpop.f32.mrf.mxu0
        %v3760 = vadd.f32 %v3515, %v3759
        %3761 = vmatmul.bf16.gmra.mxu0 %v2992
        %v3762 = vpop.f32.mrf.mxu0
        %v3763 = vadd.f32 %v3518, %v3762
        %v3764 = vpop.f32.mrf.mxu0
        %v3765 = vadd.f32 %v3520, %v3764
        %3766 = vmatmul.bf16.gmra.mxu0 %v2995
        %v3767 = vpop.f32.mrf.mxu0
        %v3768 = vadd.f32 %v3523, %v3767
        %v3769 = vpop.f32.mrf.mxu0
        %v3770 = vadd.f32 %v3525, %v3769
        %3771 = vmatmul.bf16.gmra.mxu0 %v2998
        %v3772 = vpop.f32.mrf.mxu0
        %v3773 = vadd.f32 %v3528, %v3772
        %v3774 = vpop.f32.mrf.mxu0
        %v3775 = vadd.f32 %v3530, %v3774
        %3776 = vmatmul.bf16.gmra.mxu0 %v3001
        %v3777 = vpop.f32.mrf.mxu0
        %v3778 = vadd.f32 %v3533, %v3777
        %v3779 = vpop.f32.mrf.mxu0
        %v3780 = vadd.f32 %v3535, %v3779
        %3781 = vmatmul.bf16.gmra.mxu0 %v3004
        %v3782 = vpop.f32.mrf.mxu0
        %v3783 = vadd.f32 %v3538, %v3782
        %v3784 = vpop.f32.mrf.mxu0
        %v3785 = vadd.f32 %v3540, %v3784
        %3786 = vmatmul.bf16.gmra.mxu0 %v3007
        %v3787 = vpop.f32.mrf.mxu0
        %v3788 = vadd.f32 %v3543, %v3787
        %v3789 = vpop.f32.mrf.mxu0
        %v3790 = vadd.f32 %v3545, %v3789
        %3791 = vmatmul.bf16.gmra.mxu0 %v3010
        %v3792 = vpop.f32.mrf.mxu0
        %v3793 = vadd.f32 %v3548, %v3792
        %v3794 = vpop.f32.mrf.mxu0
        %v3795 = vadd.f32 %v3550, %v3794
        %3796 = vmatmul.bf16.gmra.mxu0 %v3013
        %v3797 = vpop.f32.mrf.mxu0
        %v3798 = vadd.f32 %v3553, %v3797
        %v3799 = vpop.f32.mrf.mxu0
        %v3800 = vadd.f32 %v3555, %v3799
        %3801 = vmatmul.bf16.gmra.mxu0 %v3016
        %v3802 = vpop.f32.mrf.mxu0
        %v3803 = vadd.f32 %v3558, %v3802
        %v3804 = vpop.f32.mrf.mxu0
        %v3805 = vadd.f32 %v3560, %v3804
        %3806 = vdwg.mxu0
        %3807 = vmatpush.bf16.msra.mxu0 %v3649
        %3808 = vmatpush.bf16.msra.mxu0 %v3648
        %3809 = vmatpush.bf16.msra.mxu0 %v3647
        %3810 = vmatpush.bf16.msra.mxu0 %v3646
        %3811 = vmatpush.bf16.msra.mxu0 %v3645
        %3812 = vmatpush.bf16.msra.mxu0 %v3644
        %3813 = vmatpush.bf16.msra.mxu0 %v3643
        %3814 = vmatpush.bf16.msra.mxu0 %v3642
        %3815 = vmatmul.bf16.gmra.mxu0 %v2972
        %v3816 = vpop.f32.mrf.mxu0
        %v3817 = vadd.f32 %v3728, %v3816
        %v3818 = vpop.f32.mrf.mxu0
        %v3819 = vadd.f32 %v3730, %v3818
        %3820 = vmatmul.bf16.gmra.mxu0 %v2975
        %v3821 = vpop.f32.mrf.mxu0
        %v3822 = vadd.f32 %v3733, %v3821
        %v3823 = vpop.f32.mrf.mxu0
        %v3824 = vadd.f32 %v3735, %v3823
        %3825 = vmatmul.bf16.gmra.mxu0 %v2978
        %v3826 = vpop.f32.mrf.mxu0
        %v3827 = vadd.f32 %v3738, %v3826
        %v3828 = vpop.f32.mrf.mxu0
        %v3829 = vadd.f32 %v3740, %v3828
        %3830 = vmatmul.bf16.gmra.mxu0 %v2981
        %v3831 = vpop.f32.mrf.mxu0
        %v3832 = vadd.f32 %v3743, %v3831
        %v3833 = vpop.f32.mrf.mxu0
        %v3834 = vadd.f32 %v3745, %v3833
        %3835 = vmatmul.bf16.gmra.mxu0 %v2984
        %v3836 = vpop.f32.mrf.mxu0
        %v3837 = vadd.f32 %v3748, %v3836
        %v3838 = vpop.f32.mrf.mxu0
        %v3839 = vadd.f32 %v3750, %v3838
        %3840 = vmatmul.bf16.gmra.mxu0 %v2987
        %v3841 = vpop.f32.mrf.mxu0
        %v3842 = vadd.f32 %v3753, %v3841
        %v3843 = vpop.f32.mrf.mxu0
        %v3844 = vadd.f32 %v3755, %v3843
        %3845 = vmatmul.bf16.gmra.mxu0 %v2990
        %v3846 = vpop.f32.mrf.mxu0
        %v3847 = vadd.f32 %v3758, %v3846
        %v3848 = vpop.f32.mrf.mxu0
        %v3849 = vadd.f32 %v3760, %v3848
        %3850 = vmatmul.bf16.gmra.mxu0 %v2993
        %v3851 = vpop.f32.mrf.mxu0
        %v3852 = vadd.f32 %v3763, %v3851
        %v3853 = vpop.f32.mrf.mxu0
        %v3854 = vadd.f32 %v3765, %v3853
        %3855 = vmatmul.bf16.gmra.mxu0 %v2996
        %v3856 = vpop.f32.mrf.mxu0
        %v3857 = vadd.f32 %v3768, %v3856
        %v3858 = vpop.f32.mrf.mxu0
        %v3859 = vadd.f32 %v3770, %v3858
        %3860 = vmatmul.bf16.gmra.mxu0 %v2999
        %v3861 = vpop.f32.mrf.mxu0
        %v3862 = vadd.f32 %v3773, %v3861
        %v3863 = vpop.f32.mrf.mxu0
        %v3864 = vadd.f32 %v3775, %v3863
        %3865 = vmatmul.bf16.gmra.mxu0 %v3002
        %v3866 = vpop.f32.mrf.mxu0
        %v3867 = vadd.f32 %v3778, %v3866
        %v3868 = vpop.f32.mrf.mxu0
        %v3869 = vadd.f32 %v3780, %v3868
        %3870 = vmatmul.bf16.gmra.mxu0 %v3005
        %v3871 = vpop.f32.mrf.mxu0
        %v3872 = vadd.f32 %v3783, %v3871
        %v3873 = vpop.f32.mrf.mxu0
        %v3874 = vadd.f32 %v3785, %v3873
        %3875 = vmatmul.bf16.gmra.mxu0 %v3008
        %v3876 = vpop.f32.mrf.mxu0
        %v3877 = vadd.f32 %v3788, %v3876
        %v3878 = vpop.f32.mrf.mxu0
        %v3879 = vadd.f32 %v3790, %v3878
        %3880 = vmatmul.bf16.gmra.mxu0 %v3011
        %v3881 = vpop.f32.mrf.mxu0
        %v3882 = vadd.f32 %v3793, %v3881
        %v3883 = vpop.f32.mrf.mxu0
        %v3884 = vadd.f32 %v3795, %v3883
        %3885 = vmatmul.bf16.gmra.mxu0 %v3014
        %v3886 = vpop.f32.mrf.mxu0
        %v3887 = vadd.f32 %v3798, %v3886
        %v3888 = vpop.f32.mrf.mxu0
        %v3889 = vadd.f32 %v3800, %v3888
        %3890 = vmatmul.bf16.gmra.mxu0 %v3017
        %v3891 = vpop.f32.mrf.mxu0
        %v3892 = vadd.f32 %v3803, %v3891
        %v3893 = vpop.f32.mrf.mxu0
        %v3894 = vadd.f32 %v3805, %v3893
        %3895 = vdwg.mxu0
        %3896 = vmatpush.bf16.msra.mxu0 0
        %3897 = vmatpush.bf16.msra.mxu0 0
        %3898 = vmatpush.bf16.msra.mxu0 0
        %3899 = vmatpush.bf16.msra.mxu0 0
        %3900 = vmatpush.bf16.msra.mxu0 0
        %3901 = vmatpush.bf16.msra.mxu0 0
        %3902 = vmatpush.bf16.msra.mxu0 %v3651
        %3903 = vmatpush.bf16.msra.mxu0 %v3650
        %3904 = vmatmul.bf16.gmra.mxu0 %v3671
        %v3905 = vpop.f32.mrf.mxu0
        %v3906 = vadd.f32 %v3817, %v3905
        %v3907 = vpop.f32.mrf.mxu0
        %v3908 = vadd.f32 %v3819, %v3907
        %3909 = vmatmul.bf16.gmra.mxu0 %v3674
        %v3910 = vpop.f32.mrf.mxu0
        %v3911 = vadd.f32 %v3822, %v3910
        %v3912 = vpop.f32.mrf.mxu0
        %v3913 = vadd.f32 %v3824, %v3912
        %3914 = vmatmul.bf16.gmra.mxu0 %v3677
        %v3915 = vpop.f32.mrf.mxu0
        %v3916 = vadd.f32 %v3827, %v3915
        %v3917 = vpop.f32.mrf.mxu0
        %v3918 = vadd.f32 %v3829, %v3917
        %3919 = vmatmul.bf16.gmra.mxu0 %v3680
        %v3920 = vpop.f32.mrf.mxu0
        %v3921 = vadd.f32 %v3832, %v3920
        %v3922 = vpop.f32.mrf.mxu0
        %v3923 = vadd.f32 %v3834, %v3922
        %3924 = vmatmul.bf16.gmra.mxu0 %v3683
        %v3925 = vpop.f32.mrf.mxu0
        %v3926 = vadd.f32 %v3837, %v3925
        %v3927 = vpop.f32.mrf.mxu0
        %v3928 = vadd.f32 %v3839, %v3927
        %3929 = vmatmul.bf16.gmra.mxu0 %v3686
        %v3930 = vpop.f32.mrf.mxu0
        %v3931 = vadd.f32 %v3842, %v3930
        %v3932 = vpop.f32.mrf.mxu0
        %v3933 = vadd.f32 %v3844, %v3932
        %3934 = vmatmul.bf16.gmra.mxu0 %v3689
        %v3935 = vpop.f32.mrf.mxu0
        %v3936 = vadd.f32 %v3847, %v3935
        %v3937 = vpop.f32.mrf.mxu0
        %v3938 = vadd.f32 %v3849, %v3937
        %3939 = vmatmul.bf16.gmra.mxu0 %v3692
        %v3940 = vpop.f32.mrf.mxu0
        %v3941 = vadd.f32 %v3852, %v3940
        %v3942 = vpop.f32.mrf.mxu0
        %v3943 = vadd.f32 %v3854, %v3942
        %3944 = vmatmul.bf16.gmra.mxu0 %v3695
        %v3945 = vpop.f32.mrf.mxu0
        %v3946 = vadd.f32 %v3857, %v3945
        %v3947 = vpop.f32.mrf.mxu0
        %v3948 = vadd.f32 %v3859, %v3947
        %3949 = vmatmul.bf16.gmra.mxu0 %v3698
        %v3950 = vpop.f32.mrf.mxu0
        %v3951 = vadd.f32 %v3862, %v3950
        %v3952 = vpop.f32.mrf.mxu0
        %v3953 = vadd.f32 %v3864, %v3952
        %3954 = vmatmul.bf16.gmra.mxu0 %v3701
        %v3955 = vpop.f32.mrf.mxu0
        %v3956 = vadd.f32 %v3867, %v3955
        %v3957 = vpop.f32.mrf.mxu0
        %v3958 = vadd.f32 %v3869, %v3957
        %3959 = vmatmul.bf16.gmra.mxu0 %v3704
        %v3960 = vpop.f32.mrf.mxu0
        %v3961 = vadd.f32 %v3872, %v3960
        %v3962 = vpop.f32.mrf.mxu0
        %v3963 = vadd.f32 %v3874, %v3962
        %3964 = vmatmul.bf16.gmra.mxu0 %v3707
        %v3965 = vpop.f32.mrf.mxu0
        %v3966 = vadd.f32 %v3877, %v3965
        %v3967 = vpop.f32.mrf.mxu0
        %v3968 = vadd.f32 %v3879, %v3967
        %3969 = vmatmul.bf16.gmra.mxu0 %v3710
        %v3970 = vpop.f32.mrf.mxu0
        %v3971 = vadd.f32 %v3882, %v3970
        %v3972 = vpop.f32.mrf.mxu0
        %v3973 = vadd.f32 %v3884, %v3972
        %3974 = vmatmul.bf16.gmra.mxu0 %v3713
        %v3975 = vpop.f32.mrf.mxu0
        %v3976 = vadd.f32 %v3887, %v3975
        %v3977 = vpop.f32.mrf.mxu0
        %v3978 = vadd.f32 %v3889, %v3977
        %3979 = vmatmul.bf16.gmra.mxu0 %v3716
        %v3980 = vpop.f32.mrf.mxu0
        %v3981 = vadd.f32 %v3892, %v3980
        %v3982 = vpop.f32.mrf.mxu0
        %v3983 = vadd.f32 %v3894, %v3982
        %3984 = vdwg.mxu0
        %v3985 = vld [vmem:[%s6] sm:$0x1]
        %v3987 = vperm.slane %v3985, 0
        %v3989 = vadd.f32 %v3906, %v3987
        %v3990 = vadd.f32 %v3908, %v3987
        %v3991 = vadd.f32 %v3911, %v3987
        %v3992 = vadd.f32 %v3913, %v3987
        %v3993 = vadd.f32 %v3916, %v3987
        %v3994 = vadd.f32 %v3918, %v3987
        %v3995 = vadd.f32 %v3921, %v3987
        %v3996 = vadd.f32 %v3923, %v3987
        %v3997 = vadd.f32 %v3926, %v3987
        %v3998 = vadd.f32 %v3928, %v3987
        %v3999 = vadd.f32 %v3931, %v3987
        %v4000 = vadd.f32 %v3933, %v3987
        %v4001 = vadd.f32 %v3936, %v3987
        %v4002 = vadd.f32 %v3938, %v3987
        %v4003 = vadd.f32 %v3941, %v3987
        %v4004 = vadd.f32 %v3943, %v3987
        %v4005 = vadd.f32 %v3946, %v3987
        %v4006 = vadd.f32 %v3948, %v3987
        %v4007 = vadd.f32 %v3951, %v3987
        %v4008 = vadd.f32 %v3953, %v3987
        %v4009 = vadd.f32 %v3956, %v3987
        %v4010 = vadd.f32 %v3958, %v3987
        %v4011 = vadd.f32 %v3961, %v3987
        %v4012 = vadd.f32 %v3963, %v3987
        %v4013 = vadd.f32 %v3966, %v3987
        %v4014 = vadd.f32 %v3968, %v3987
        %v4015 = vadd.f32 %v3971, %v3987
        %v4016 = vadd.f32 %v3973, %v3987
        %v4017 = vadd.f32 %v3976, %v3987
        %v4018 = vadd.f32 %v3978, %v3987
        %v4019 = vadd.f32 %v3981, %v3987
        %v4020 = vadd.f32 %v3983, %v3987
        %v4021 = vxor.u32 %v3989, 2147483648
        %v4022 = vxor.u32 %v3990, 2147483648
        %v4023 = vxor.u32 %v3991, 2147483648
        %v4024 = vxor.u32 %v3992, 2147483648
        %v4025 = vxor.u32 %v3993, 2147483648
        %v4026 = vxor.u32 %v3994, 2147483648
        %v4027 = vxor.u32 %v3995, 2147483648
        %v4028 = vxor.u32 %v3996, 2147483648
        %v4029 = vxor.u32 %v3997, 2147483648
        %v4030 = vxor.u32 %v3998, 2147483648
        %v4031 = vxor.u32 %v3999, 2147483648
        %v4032 = vxor.u32 %v4000, 2147483648
        %v4033 = vxor.u32 %v4001, 2147483648
        %v4034 = vxor.u32 %v4002, 2147483648
        %v4035 = vxor.u32 %v4003, 2147483648
        %v4036 = vxor.u32 %v4004, 2147483648
        %v4037 = vxor.u32 %v4005, 2147483648
        %v4038 = vxor.u32 %v4006, 2147483648
        %v4039 = vxor.u32 %v4007, 2147483648
        %v4040 = vxor.u32 %v4008, 2147483648
        %v4041 = vxor.u32 %v4009, 2147483648
        %v4042 = vxor.u32 %v4010, 2147483648
        %v4043 = vxor.u32 %v4011, 2147483648
        %v4044 = vxor.u32 %v4012, 2147483648
        %v4045 = vxor.u32 %v4013, 2147483648
        %v4046 = vxor.u32 %v4014, 2147483648
        %v4047 = vxor.u32 %v4015, 2147483648
        %v4048 = vxor.u32 %v4016, 2147483648
        %v4049 = vxor.u32 %v4017, 2147483648
        %v4050 = vxor.u32 %v4018, 2147483648
        %v4051 = vxor.u32 %v4019, 2147483648
        %v4052 = vxor.u32 %v4020, 2147483648
        %v4053 = vmul.f32 %v4021, 1.442695
        %v4054 = vpow.pop %v4053
        %v4055 = vmul.f32 %v4022, 1.442695
        %v4056 = vpow.pop %v4055
        %v4057 = vmul.f32 %v4023, 1.442695
        %v4058 = vpow.pop %v4057
        %v4059 = vmul.f32 %v4024, 1.442695
        %v4060 = vpow.pop %v4059
        %v4061 = vmul.f32 %v4025, 1.442695
        %v4062 = vpow.pop %v4061
        %v4063 = vmul.f32 %v4026, 1.442695
        %v4064 = vpow.pop %v4063
        %v4065 = vmul.f32 %v4027, 1.442695
        %v4066 = vpow.pop %v4065
        %v4067 = vmul.f32 %v4028, 1.442695
        %v4068 = vpow.pop %v4067
        %v4069 = vmul.f32 %v4029, 1.442695
        %v4070 = vpow.pop %v4069
        %v4071 = vmul.f32 %v4030, 1.442695
        %v4072 = vpow.pop %v4071
        %v4073 = vmul.f32 %v4031, 1.442695
        %v4074 = vpow.pop %v4073
        %v4075 = vmul.f32 %v4032, 1.442695
        %v4076 = vpow.pop %v4075
        %v4077 = vmul.f32 %v4033, 1.442695
        %v4078 = vpow.pop %v4077
        %v4079 = vmul.f32 %v4034, 1.442695
        %v4080 = vpow.pop %v4079
        %v4081 = vmul.f32 %v4035, 1.442695
        %v4082 = vpow.pop %v4081
        %v4083 = vmul.f32 %v4036, 1.442695
        %v4084 = vpow.pop %v4083
        %v4085 = vmul.f32 %v4037, 1.442695
        %v4086 = vpow.pop %v4085
        %v4087 = vmul.f32 %v4038, 1.442695
        %v4088 = vpow.pop %v4087
        %v4089 = vmul.f32 %v4039, 1.442695
        %v4090 = vpow.pop %v4089
        %v4091 = vmul.f32 %v4040, 1.442695
        %v4092 = vpow.pop %v4091
        %v4093 = vmul.f32 %v4041, 1.442695
        %v4094 = vpow.pop %v4093
        %v4095 = vmul.f32 %v4042, 1.442695
        %v4096 = vpow.pop %v4095
        %v4097 = vmul.f32 %v4043, 1.442695
        %v4098 = vpow.pop %v4097
        %v4099 = vmul.f32 %v4044, 1.442695
        %v4100 = vpow.pop %v4099
        %v4101 = vmul.f32 %v4045, 1.442695
        %v4102 = vpow.pop %v4101
        %v4103 = vmul.f32 %v4046, 1.442695
        %v4104 = vpow.pop %v4103
        %v4105 = vmul.f32 %v4047, 1.442695
        %v4106 = vpow.pop %v4105
        %v4107 = vmul.f32 %v4048, 1.442695
        %v4108 = vpow.pop %v4107
        %v4109 = vmul.f32 %v4049, 1.442695
        %v4110 = vpow.pop %v4109
        %v4111 = vmul.f32 %v4050, 1.442695
        %v4112 = vpow.pop %v4111
        %v4113 = vmul.f32 %v4051, 1.442695
        %v4114 = vpow.pop %v4113
        %v4115 = vmul.f32 %v4052, 1.442695
        %v4116 = vpow.pop %v4115
        %v4117 = vadd.f32 %v4054, 1.0
        %v4118 = vadd.f32 %v4056, 1.0
        %v4119 = vadd.f32 %v4058, 1.0
        %v4120 = vadd.f32 %v4060, 1.0
        %v4121 = vadd.f32 %v4062, 1.0
        %v4122 = vadd.f32 %v4064, 1.0
        %v4123 = vadd.f32 %v4066, 1.0
        %v4124 = vadd.f32 %v4068, 1.0
        %v4125 = vadd.f32 %v4070, 1.0
        %v4126 = vadd.f32 %v4072, 1.0
        %v4127 = vadd.f32 %v4074, 1.0
        %v4128 = vadd.f32 %v4076, 1.0
        %v4129 = vadd.f32 %v4078, 1.0
        %v4130 = vadd.f32 %v4080, 1.0
        %v4131 = vadd.f32 %v4082, 1.0
        %v4132 = vadd.f32 %v4084, 1.0
        %v4133 = vadd.f32 %v4086, 1.0
        %v4134 = vadd.f32 %v4088, 1.0
        %v4135 = vadd.f32 %v4090, 1.0
        %v4136 = vadd.f32 %v4092, 1.0
        %v4137 = vadd.f32 %v4094, 1.0
        %v4138 = vadd.f32 %v4096, 1.0
        %v4139 = vadd.f32 %v4098, 1.0
        %v4140 = vadd.f32 %v4100, 1.0
        %v4141 = vadd.f32 %v4102, 1.0
        %v4142 = vadd.f32 %v4104, 1.0
        %v4143 = vadd.f32 %v4106, 1.0
        %v4144 = vadd.f32 %v4108, 1.0
        %v4145 = vadd.f32 %v4110, 1.0
        %v4146 = vadd.f32 %v4112, 1.0
        %v4147 = vadd.f32 %v4114, 1.0
        %v4148 = vadd.f32 %v4116, 1.0
        %v4149 = vrcp.pop %v4117
        %v4150 = vmul.f32 %v4117, %v4149
        %v4151 = vsub.f32 1.0, %v4150
        %v4152 = vmul.f32 %v4149, %v4151
        %v4153 = vadd.f32 %v4149, %v4152
        %vm4154 = vweird.f32 %v4117
        %vm4155 = vweird.f32 %v4149
        %vm4156 = vmor %vm4154, %vm4155
        %v4157 = vsel %vm4156, %v4149, %v4153
        %v4158 = vand.u32 2147483647, %v4117
        %vm4159 = vcmp.eq.f32.partialorder %v4158, 8.507059e+37
        %v4160 = vand.u32 %v4117, 2147483648
        %v4161 = vor.u32 1.1754944e-38, %v4160
        %v4162 = vsel %vm4159, %v4161, %v4157
        %v4163 = vmul.f32 1.0, %v4162
        %v4164 = vrcp.pop %v4118
        %v4165 = vmul.f32 %v4118, %v4164
        %v4166 = vsub.f32 1.0, %v4165
        %v4167 = vmul.f32 %v4164, %v4166
        %v4168 = vadd.f32 %v4164, %v4167
        %vm4169 = vweird.f32 %v4118
        %vm4170 = vweird.f32 %v4164
        %vm4171 = vmor %vm4169, %vm4170
        %v4172 = vsel %vm4171, %v4164, %v4168
        %v4173 = vand.u32 2147483647, %v4118
        %vm4174 = vcmp.eq.f32.partialorder %v4173, 8.507059e+37
        %v4175 = vand.u32 %v4118, 2147483648
        %v4176 = vor.u32 1.1754944e-38, %v4175
        %v4177 = vsel %vm4174, %v4176, %v4172
        %v4178 = vmul.f32 1.0, %v4177
        %v4179 = vrcp.pop %v4119
        %v4180 = vmul.f32 %v4119, %v4179
        %v4181 = vsub.f32 1.0, %v4180
        %v4182 = vmul.f32 %v4179, %v4181
        %v4183 = vadd.f32 %v4179, %v4182
        %vm4184 = vweird.f32 %v4119
        %vm4185 = vweird.f32 %v4179
        %vm4186 = vmor %vm4184, %vm4185
        %v4187 = vsel %vm4186, %v4179, %v4183
        %v4188 = vand.u32 2147483647, %v4119
        %vm4189 = vcmp.eq.f32.partialorder %v4188, 8.507059e+37
        %v4190 = vand.u32 %v4119, 2147483648
        %v4191 = vor.u32 1.1754944e-38, %v4190
        %v4192 = vsel %vm4189, %v4191, %v4187
        %v4193 = vmul.f32 1.0, %v4192
        %v4194 = vrcp.pop %v4120
        %v4195 = vmul.f32 %v4120, %v4194
        %v4196 = vsub.f32 1.0, %v4195
        %v4197 = vmul.f32 %v4194, %v4196
        %v4198 = vadd.f32 %v4194, %v4197
        %vm4199 = vweird.f32 %v4120
        %vm4200 = vweird.f32 %v4194
        %vm4201 = vmor %vm4199, %vm4200
        %v4202 = vsel %vm4201, %v4194, %v4198
        %v4203 = vand.u32 2147483647, %v4120
        %vm4204 = vcmp.eq.f32.partialorder %v4203, 8.507059e+37
        %v4205 = vand.u32 %v4120, 2147483648
        %v4206 = vor.u32 1.1754944e-38, %v4205
        %v4207 = vsel %vm4204, %v4206, %v4202
        %v4208 = vmul.f32 1.0, %v4207
        %v4209 = vrcp.pop %v4121
        %v4210 = vmul.f32 %v4121, %v4209
        %v4211 = vsub.f32 1.0, %v4210
        %v4212 = vmul.f32 %v4209, %v4211
        %v4213 = vadd.f32 %v4209, %v4212
        %vm4214 = vweird.f32 %v4121
        %vm4215 = vweird.f32 %v4209
        %vm4216 = vmor %vm4214, %vm4215
        %v4217 = vsel %vm4216, %v4209, %v4213
        %v4218 = vand.u32 2147483647, %v4121
        %vm4219 = vcmp.eq.f32.partialorder %v4218, 8.507059e+37
        %v4220 = vand.u32 %v4121, 2147483648
        %v4221 = vor.u32 1.1754944e-38, %v4220
        %v4222 = vsel %vm4219, %v4221, %v4217
        %v4223 = vmul.f32 1.0, %v4222
        %v4224 = vrcp.pop %v4122
        %v4225 = vmul.f32 %v4122, %v4224
        %v4226 = vsub.f32 1.0, %v4225
        %v4227 = vmul.f32 %v4224, %v4226
        %v4228 = vadd.f32 %v4224, %v4227
        %vm4229 = vweird.f32 %v4122
        %vm4230 = vweird.f32 %v4224
        %vm4231 = vmor %vm4229, %vm4230
        %v4232 = vsel %vm4231, %v4224, %v4228
        %v4233 = vand.u32 2147483647, %v4122
        %vm4234 = vcmp.eq.f32.partialorder %v4233, 8.507059e+37
        %v4235 = vand.u32 %v4122, 2147483648
        %v4236 = vor.u32 1.1754944e-38, %v4235
        %v4237 = vsel %vm4234, %v4236, %v4232
        %v4238 = vmul.f32 1.0, %v4237
        %v4239 = vrcp.pop %v4123
        %v4240 = vmul.f32 %v4123, %v4239
        %v4241 = vsub.f32 1.0, %v4240
        %v4242 = vmul.f32 %v4239, %v4241
        %v4243 = vadd.f32 %v4239, %v4242
        %vm4244 = vweird.f32 %v4123
        %vm4245 = vweird.f32 %v4239
        %vm4246 = vmor %vm4244, %vm4245
        %v4247 = vsel %vm4246, %v4239, %v4243
        %v4248 = vand.u32 2147483647, %v4123
        %vm4249 = vcmp.eq.f32.partialorder %v4248, 8.507059e+37
        %v4250 = vand.u32 %v4123, 2147483648
        %v4251 = vor.u32 1.1754944e-38, %v4250
        %v4252 = vsel %vm4249, %v4251, %v4247
        %v4253 = vmul.f32 1.0, %v4252
        %v4254 = vrcp.pop %v4124
        %v4255 = vmul.f32 %v4124, %v4254
        %v4256 = vsub.f32 1.0, %v4255
        %v4257 = vmul.f32 %v4254, %v4256
        %v4258 = vadd.f32 %v4254, %v4257
        %vm4259 = vweird.f32 %v4124
        %vm4260 = vweird.f32 %v4254
        %vm4261 = vmor %vm4259, %vm4260
        %v4262 = vsel %vm4261, %v4254, %v4258
        %v4263 = vand.u32 2147483647, %v4124
        %vm4264 = vcmp.eq.f32.partialorder %v4263, 8.507059e+37
        %v4265 = vand.u32 %v4124, 2147483648
        %v4266 = vor.u32 1.1754944e-38, %v4265
        %v4267 = vsel %vm4264, %v4266, %v4262
        %v4268 = vmul.f32 1.0, %v4267
        %v4269 = vrcp.pop %v4125
        %v4270 = vmul.f32 %v4125, %v4269
        %v4271 = vsub.f32 1.0, %v4270
        %v4272 = vmul.f32 %v4269, %v4271
        %v4273 = vadd.f32 %v4269, %v4272
        %vm4274 = vweird.f32 %v4125
        %vm4275 = vweird.f32 %v4269
        %vm4276 = vmor %vm4274, %vm4275
        %v4277 = vsel %vm4276, %v4269, %v4273
        %v4278 = vand.u32 2147483647, %v4125
        %vm4279 = vcmp.eq.f32.partialorder %v4278, 8.507059e+37
        %v4280 = vand.u32 %v4125, 2147483648
        %v4281 = vor.u32 1.1754944e-38, %v4280
        %v4282 = vsel %vm4279, %v4281, %v4277
        %v4283 = vmul.f32 1.0, %v4282
        %v4284 = vrcp.pop %v4126
        %v4285 = vmul.f32 %v4126, %v4284
        %v4286 = vsub.f32 1.0, %v4285
        %v4287 = vmul.f32 %v4284, %v4286
        %v4288 = vadd.f32 %v4284, %v4287
        %vm4289 = vweird.f32 %v4126
        %vm4290 = vweird.f32 %v4284
        %vm4291 = vmor %vm4289, %vm4290
        %v4292 = vsel %vm4291, %v4284, %v4288
        %v4293 = vand.u32 2147483647, %v4126
        %vm4294 = vcmp.eq.f32.partialorder %v4293, 8.507059e+37
        %v4295 = vand.u32 %v4126, 2147483648
        %v4296 = vor.u32 1.1754944e-38, %v4295
        %v4297 = vsel %vm4294, %v4296, %v4292
        %v4298 = vmul.f32 1.0, %v4297
        %v4299 = vrcp.pop %v4127
        %v4300 = vmul.f32 %v4127, %v4299
        %v4301 = vsub.f32 1.0, %v4300
        %v4302 = vmul.f32 %v4299, %v4301
        %v4303 = vadd.f32 %v4299, %v4302
        %vm4304 = vweird.f32 %v4127
        %vm4305 = vweird.f32 %v4299
        %vm4306 = vmor %vm4304, %vm4305
        %v4307 = vsel %vm4306, %v4299, %v4303
        %v4308 = vand.u32 2147483647, %v4127
        %vm4309 = vcmp.eq.f32.partialorder %v4308, 8.507059e+37
        %v4310 = vand.u32 %v4127, 2147483648
        %v4311 = vor.u32 1.1754944e-38, %v4310
        %v4312 = vsel %vm4309, %v4311, %v4307
        %v4313 = vmul.f32 1.0, %v4312
        %v4314 = vrcp.pop %v4128
        %v4315 = vmul.f32 %v4128, %v4314
        %v4316 = vsub.f32 1.0, %v4315
        %v4317 = vmul.f32 %v4314, %v4316
        %v4318 = vadd.f32 %v4314, %v4317
        %vm4319 = vweird.f32 %v4128
        %vm4320 = vweird.f32 %v4314
        %vm4321 = vmor %vm4319, %vm4320
        %v4322 = vsel %vm4321, %v4314, %v4318
        %v4323 = vand.u32 2147483647, %v4128
        %vm4324 = vcmp.eq.f32.partialorder %v4323, 8.507059e+37
        %v4325 = vand.u32 %v4128, 2147483648
        %v4326 = vor.u32 1.1754944e-38, %v4325
        %v4327 = vsel %vm4324, %v4326, %v4322
        %v4328 = vmul.f32 1.0, %v4327
        %v4329 = vrcp.pop %v4129
        %v4330 = vmul.f32 %v4129, %v4329
        %v4331 = vsub.f32 1.0, %v4330
        %v4332 = vmul.f32 %v4329, %v4331
        %v4333 = vadd.f32 %v4329, %v4332
        %vm4334 = vweird.f32 %v4129
        %vm4335 = vweird.f32 %v4329
        %vm4336 = vmor %vm4334, %vm4335
        %v4337 = vsel %vm4336, %v4329, %v4333
        %v4338 = vand.u32 2147483647, %v4129
        %vm4339 = vcmp.eq.f32.partialorder %v4338, 8.507059e+37
        %v4340 = vand.u32 %v4129, 2147483648
        %v4341 = vor.u32 1.1754944e-38, %v4340
        %v4342 = vsel %vm4339, %v4341, %v4337
        %v4343 = vmul.f32 1.0, %v4342
        %v4344 = vrcp.pop %v4130
        %v4345 = vmul.f32 %v4130, %v4344
        %v4346 = vsub.f32 1.0, %v4345
        %v4347 = vmul.f32 %v4344, %v4346
        %v4348 = vadd.f32 %v4344, %v4347
        %vm4349 = vweird.f32 %v4130
        %vm4350 = vweird.f32 %v4344
        %vm4351 = vmor %vm4349, %vm4350
        %v4352 = vsel %vm4351, %v4344, %v4348
        %v4353 = vand.u32 2147483647, %v4130
        %vm4354 = vcmp.eq.f32.partialorder %v4353, 8.507059e+37
        %v4355 = vand.u32 %v4130, 2147483648
        %v4356 = vor.u32 1.1754944e-38, %v4355
        %v4357 = vsel %vm4354, %v4356, %v4352
        %v4358 = vmul.f32 1.0, %v4357
        %v4359 = vrcp.pop %v4131
        %v4360 = vmul.f32 %v4131, %v4359
        %v4361 = vsub.f32 1.0, %v4360
        %v4362 = vmul.f32 %v4359, %v4361
        %v4363 = vadd.f32 %v4359, %v4362
        %vm4364 = vweird.f32 %v4131
        %vm4365 = vweird.f32 %v4359
        %vm4366 = vmor %vm4364, %vm4365
        %v4367 = vsel %vm4366, %v4359, %v4363
        %v4368 = vand.u32 2147483647, %v4131
        %vm4369 = vcmp.eq.f32.partialorder %v4368, 8.507059e+37
        %v4370 = vand.u32 %v4131, 2147483648
        %v4371 = vor.u32 1.1754944e-38, %v4370
        %v4372 = vsel %vm4369, %v4371, %v4367
        %v4373 = vmul.f32 1.0, %v4372
        %v4374 = vrcp.pop %v4132
        %v4375 = vmul.f32 %v4132, %v4374
        %v4376 = vsub.f32 1.0, %v4375
        %v4377 = vmul.f32 %v4374, %v4376
        %v4378 = vadd.f32 %v4374, %v4377
        %vm4379 = vweird.f32 %v4132
        %vm4380 = vweird.f32 %v4374
        %vm4381 = vmor %vm4379, %vm4380
        %v4382 = vsel %vm4381, %v4374, %v4378
        %v4383 = vand.u32 2147483647, %v4132
        %vm4384 = vcmp.eq.f32.partialorder %v4383, 8.507059e+37
        %v4385 = vand.u32 %v4132, 2147483648
        %v4386 = vor.u32 1.1754944e-38, %v4385
        %v4387 = vsel %vm4384, %v4386, %v4382
        %v4388 = vmul.f32 1.0, %v4387
        %v4389 = vrcp.pop %v4133
        %v4390 = vmul.f32 %v4133, %v4389
        %v4391 = vsub.f32 1.0, %v4390
        %v4392 = vmul.f32 %v4389, %v4391
        %v4393 = vadd.f32 %v4389, %v4392
        %vm4394 = vweird.f32 %v4133
        %vm4395 = vweird.f32 %v4389
        %vm4396 = vmor %vm4394, %vm4395
        %v4397 = vsel %vm4396, %v4389, %v4393
        %v4398 = vand.u32 2147483647, %v4133
        %vm4399 = vcmp.eq.f32.partialorder %v4398, 8.507059e+37
        %v4400 = vand.u32 %v4133, 2147483648
        %v4401 = vor.u32 1.1754944e-38, %v4400
        %v4402 = vsel %vm4399, %v4401, %v4397
        %v4403 = vmul.f32 1.0, %v4402
        %v4404 = vrcp.pop %v4134
        %v4405 = vmul.f32 %v4134, %v4404
        %v4406 = vsub.f32 1.0, %v4405
        %v4407 = vmul.f32 %v4404, %v4406
        %v4408 = vadd.f32 %v4404, %v4407
        %vm4409 = vweird.f32 %v4134
        %vm4410 = vweird.f32 %v4404
        %vm4411 = vmor %vm4409, %vm4410
        %v4412 = vsel %vm4411, %v4404, %v4408
        %v4413 = vand.u32 2147483647, %v4134
        %vm4414 = vcmp.eq.f32.partialorder %v4413, 8.507059e+37
        %v4415 = vand.u32 %v4134, 2147483648
        %v4416 = vor.u32 1.1754944e-38, %v4415
        %v4417 = vsel %vm4414, %v4416, %v4412
        %v4418 = vmul.f32 1.0, %v4417
        %v4419 = vrcp.pop %v4135
        %v4420 = vmul.f32 %v4135, %v4419
        %v4421 = vsub.f32 1.0, %v4420
        %v4422 = vmul.f32 %v4419, %v4421
        %v4423 = vadd.f32 %v4419, %v4422
        %vm4424 = vweird.f32 %v4135
        %vm4425 = vweird.f32 %v4419
        %vm4426 = vmor %vm4424, %vm4425
        %v4427 = vsel %vm4426, %v4419, %v4423
        %v4428 = vand.u32 2147483647, %v4135
        %vm4429 = vcmp.eq.f32.partialorder %v4428, 8.507059e+37
        %v4430 = vand.u32 %v4135, 2147483648
        %v4431 = vor.u32 1.1754944e-38, %v4430
        %v4432 = vsel %vm4429, %v4431, %v4427
        %v4433 = vmul.f32 1.0, %v4432
        %v4434 = vrcp.pop %v4136
        %v4435 = vmul.f32 %v4136, %v4434
        %v4436 = vsub.f32 1.0, %v4435
        %v4437 = vmul.f32 %v4434, %v4436
        %v4438 = vadd.f32 %v4434, %v4437
        %vm4439 = vweird.f32 %v4136
        %vm4440 = vweird.f32 %v4434
        %vm4441 = vmor %vm4439, %vm4440
        %v4442 = vsel %vm4441, %v4434, %v4438
        %v4443 = vand.u32 2147483647, %v4136
        %vm4444 = vcmp.eq.f32.partialorder %v4443, 8.507059e+37
        %v4445 = vand.u32 %v4136, 2147483648
        %v4446 = vor.u32 1.1754944e-38, %v4445
        %v4447 = vsel %vm4444, %v4446, %v4442
        %v4448 = vmul.f32 1.0, %v4447
        %v4449 = vrcp.pop %v4137
        %v4450 = vmul.f32 %v4137, %v4449
        %v4451 = vsub.f32 1.0, %v4450
        %v4452 = vmul.f32 %v4449, %v4451
        %v4453 = vadd.f32 %v4449, %v4452
        %vm4454 = vweird.f32 %v4137
        %vm4455 = vweird.f32 %v4449
        %vm4456 = vmor %vm4454, %vm4455
        %v4457 = vsel %vm4456, %v4449, %v4453
        %v4458 = vand.u32 2147483647, %v4137
        %vm4459 = vcmp.eq.f32.partialorder %v4458, 8.507059e+37
        %v4460 = vand.u32 %v4137, 2147483648
        %v4461 = vor.u32 1.1754944e-38, %v4460
        %v4462 = vsel %vm4459, %v4461, %v4457
        %v4463 = vmul.f32 1.0, %v4462
        %v4464 = vrcp.pop %v4138
        %v4465 = vmul.f32 %v4138, %v4464
        %v4466 = vsub.f32 1.0, %v4465
        %v4467 = vmul.f32 %v4464, %v4466
        %v4468 = vadd.f32 %v4464, %v4467
        %vm4469 = vweird.f32 %v4138
        %vm4470 = vweird.f32 %v4464
        %vm4471 = vmor %vm4469, %vm4470
        %v4472 = vsel %vm4471, %v4464, %v4468
        %v4473 = vand.u32 2147483647, %v4138
        %vm4474 = vcmp.eq.f32.partialorder %v4473, 8.507059e+37
        %v4475 = vand.u32 %v4138, 2147483648
        %v4476 = vor.u32 1.1754944e-38, %v4475
        %v4477 = vsel %vm4474, %v4476, %v4472
        %v4478 = vmul.f32 1.0, %v4477
        %v4479 = vrcp.pop %v4139
        %v4480 = vmul.f32 %v4139, %v4479
        %v4481 = vsub.f32 1.0, %v4480
        %v4482 = vmul.f32 %v4479, %v4481
        %v4483 = vadd.f32 %v4479, %v4482
        %vm4484 = vweird.f32 %v4139
        %vm4485 = vweird.f32 %v4479
        %vm4486 = vmor %vm4484, %vm4485
        %v4487 = vsel %vm4486, %v4479, %v4483
        %v4488 = vand.u32 2147483647, %v4139
        %vm4489 = vcmp.eq.f32.partialorder %v4488, 8.507059e+37
        %v4490 = vand.u32 %v4139, 2147483648
        %v4491 = vor.u32 1.1754944e-38, %v4490
        %v4492 = vsel %vm4489, %v4491, %v4487
        %v4493 = vmul.f32 1.0, %v4492
        %v4494 = vrcp.pop %v4140
        %v4495 = vmul.f32 %v4140, %v4494
        %v4496 = vsub.f32 1.0, %v4495
        %v4497 = vmul.f32 %v4494, %v4496
        %v4498 = vadd.f32 %v4494, %v4497
        %vm4499 = vweird.f32 %v4140
        %vm4500 = vweird.f32 %v4494
        %vm4501 = vmor %vm4499, %vm4500
        %v4502 = vsel %vm4501, %v4494, %v4498
        %v4503 = vand.u32 2147483647, %v4140
        %vm4504 = vcmp.eq.f32.partialorder %v4503, 8.507059e+37
        %v4505 = vand.u32 %v4140, 2147483648
        %v4506 = vor.u32 1.1754944e-38, %v4505
        %v4507 = vsel %vm4504, %v4506, %v4502
        %v4508 = vmul.f32 1.0, %v4507
        %v4509 = vrcp.pop %v4141
        %v4510 = vmul.f32 %v4141, %v4509
        %v4511 = vsub.f32 1.0, %v4510
        %v4512 = vmul.f32 %v4509, %v4511
        %v4513 = vadd.f32 %v4509, %v4512
        %vm4514 = vweird.f32 %v4141
        %vm4515 = vweird.f32 %v4509
        %vm4516 = vmor %vm4514, %vm4515
        %v4517 = vsel %vm4516, %v4509, %v4513
        %v4518 = vand.u32 2147483647, %v4141
        %vm4519 = vcmp.eq.f32.partialorder %v4518, 8.507059e+37
        %v4520 = vand.u32 %v4141, 2147483648
        %v4521 = vor.u32 1.1754944e-38, %v4520
        %v4522 = vsel %vm4519, %v4521, %v4517
        %v4523 = vmul.f32 1.0, %v4522
        %v4524 = vrcp.pop %v4142
        %v4525 = vmul.f32 %v4142, %v4524
        %v4526 = vsub.f32 1.0, %v4525
        %v4527 = vmul.f32 %v4524, %v4526
        %v4528 = vadd.f32 %v4524, %v4527
        %vm4529 = vweird.f32 %v4142
        %vm4530 = vweird.f32 %v4524
        %vm4531 = vmor %vm4529, %vm4530
        %v4532 = vsel %vm4531, %v4524, %v4528
        %v4533 = vand.u32 2147483647, %v4142
        %vm4534 = vcmp.eq.f32.partialorder %v4533, 8.507059e+37
        %v4535 = vand.u32 %v4142, 2147483648
        %v4536 = vor.u32 1.1754944e-38, %v4535
        %v4537 = vsel %vm4534, %v4536, %v4532
        %v4538 = vmul.f32 1.0, %v4537
        %v4539 = vrcp.pop %v4143
        %v4540 = vmul.f32 %v4143, %v4539
        %v4541 = vsub.f32 1.0, %v4540
        %v4542 = vmul.f32 %v4539, %v4541
        %v4543 = vadd.f32 %v4539, %v4542
        %vm4544 = vweird.f32 %v4143
        %vm4545 = vweird.f32 %v4539
        %vm4546 = vmor %vm4544, %vm4545
        %v4547 = vsel %vm4546, %v4539, %v4543
        %v4548 = vand.u32 2147483647, %v4143
        %vm4549 = vcmp.eq.f32.partialorder %v4548, 8.507059e+37
        %v4550 = vand.u32 %v4143, 2147483648
        %v4551 = vor.u32 1.1754944e-38, %v4550
        %v4552 = vsel %vm4549, %v4551, %v4547
        %v4553 = vmul.f32 1.0, %v4552
        %v4554 = vrcp.pop %v4144
        %v4555 = vmul.f32 %v4144, %v4554
        %v4556 = vsub.f32 1.0, %v4555
        %v4557 = vmul.f32 %v4554, %v4556
        %v4558 = vadd.f32 %v4554, %v4557
        %vm4559 = vweird.f32 %v4144
        %vm4560 = vweird.f32 %v4554
        %vm4561 = vmor %vm4559, %vm4560
        %v4562 = vsel %vm4561, %v4554, %v4558
        %v4563 = vand.u32 2147483647, %v4144
        %vm4564 = vcmp.eq.f32.partialorder %v4563, 8.507059e+37
        %v4565 = vand.u32 %v4144, 2147483648
        %v4566 = vor.u32 1.1754944e-38, %v4565
        %v4567 = vsel %vm4564, %v4566, %v4562
        %v4568 = vmul.f32 1.0, %v4567
        %v4569 = vrcp.pop %v4145
        %v4570 = vmul.f32 %v4145, %v4569
        %v4571 = vsub.f32 1.0, %v4570
        %v4572 = vmul.f32 %v4569, %v4571
        %v4573 = vadd.f32 %v4569, %v4572
        %vm4574 = vweird.f32 %v4145
        %vm4575 = vweird.f32 %v4569
        %vm4576 = vmor %vm4574, %vm4575
        %v4577 = vsel %vm4576, %v4569, %v4573
        %v4578 = vand.u32 2147483647, %v4145
        %vm4579 = vcmp.eq.f32.partialorder %v4578, 8.507059e+37
        %v4580 = vand.u32 %v4145, 2147483648
        %v4581 = vor.u32 1.1754944e-38, %v4580
        %v4582 = vsel %vm4579, %v4581, %v4577
        %v4583 = vmul.f32 1.0, %v4582
        %v4584 = vrcp.pop %v4146
        %v4585 = vmul.f32 %v4146, %v4584
        %v4586 = vsub.f32 1.0, %v4585
        %v4587 = vmul.f32 %v4584, %v4586
        %v4588 = vadd.f32 %v4584, %v4587
        %vm4589 = vweird.f32 %v4146
        %vm4590 = vweird.f32 %v4584
        %vm4591 = vmor %vm4589, %vm4590
        %v4592 = vsel %vm4591, %v4584, %v4588
        %v4593 = vand.u32 2147483647, %v4146
        %vm4594 = vcmp.eq.f32.partialorder %v4593, 8.507059e+37
        %v4595 = vand.u32 %v4146, 2147483648
        %v4596 = vor.u32 1.1754944e-38, %v4595
        %v4597 = vsel %vm4594, %v4596, %v4592
        %v4598 = vmul.f32 1.0, %v4597
        %v4599 = vrcp.pop %v4147
        %v4600 = vmul.f32 %v4147, %v4599
        %v4601 = vsub.f32 1.0, %v4600
        %v4602 = vmul.f32 %v4599, %v4601
        %v4603 = vadd.f32 %v4599, %v4602
        %vm4604 = vweird.f32 %v4147
        %vm4605 = vweird.f32 %v4599
        %vm4606 = vmor %vm4604, %vm4605
        %v4607 = vsel %vm4606, %v4599, %v4603
        %v4608 = vand.u32 2147483647, %v4147
        %vm4609 = vcmp.eq.f32.partialorder %v4608, 8.507059e+37
        %v4610 = vand.u32 %v4147, 2147483648
        %v4611 = vor.u32 1.1754944e-38, %v4610
        %v4612 = vsel %vm4609, %v4611, %v4607
        %v4613 = vmul.f32 1.0, %v4612
        %v4614 = vrcp.pop %v4148
        %v4615 = vmul.f32 %v4148, %v4614
        %v4616 = vsub.f32 1.0, %v4615
        %v4617 = vmul.f32 %v4614, %v4616
        %v4618 = vadd.f32 %v4614, %v4617
        %vm4619 = vweird.f32 %v4148
        %vm4620 = vweird.f32 %v4614
        %vm4621 = vmor %vm4619, %vm4620
        %v4622 = vsel %vm4621, %v4614, %v4618
        %v4623 = vand.u32 2147483647, %v4148
        %vm4624 = vcmp.eq.f32.partialorder %v4623, 8.507059e+37
        %v4625 = vand.u32 %v4148, 2147483648
        %v4626 = vor.u32 1.1754944e-38, %v4625
        %v4627 = vsel %vm4624, %v4626, %v4622
        %v4628 = vmul.f32 1.0, %v4627
        %v4629 = vld [vmem:[%s9] sm:$0xff]
        %v4630 = vld [vmem:[%s9 + $0x8] sm:$0xff]
        %v4631 = vld [vmem:[%s9 + $0x10] sm:$0xff]
        %v4632 = vld [vmem:[%s9 + $0x18] sm:$0x1]
        %v4633 = vld [vmem:[%s9 + $0x20] sm:$0x1]
        %v4634 = vld [vmem:[%s9 + $0x28] sm:$0x1]
        %vm4635 = vcmask 72704
        %v4637 = vsel %vm4635, %v4163, 0
        %v4640 = vsel %vm4635, %v4178, 0
        %v4643 = vsel %vm4635, %v4193, 0
        %v4646 = vsel %vm4635, %v4208, 0
        %v4649 = vsel %vm4635, %v4223, 0
        %v4652 = vsel %vm4635, %v4238, 0
        %v4655 = vsel %vm4635, %v4253, 0
        %v4658 = vsel %vm4635, %v4268, 0
        %v4661 = vsel %vm4635, %v4283, 0
        %v4664 = vsel %vm4635, %v4298, 0
        %v4667 = vsel %vm4635, %v4313, 0
        %v4670 = vsel %vm4635, %v4328, 0
        %v4673 = vsel %vm4635, %v4343, 0
        %v4676 = vsel %vm4635, %v4358, 0
        %v4679 = vsel %vm4635, %v4373, 0
        %v4682 = vsel %vm4635, %v4388, 0
        %v4685 = vsel %vm4635, %v4403, 0
        %v4688 = vsel %vm4635, %v4418, 0
        %v4691 = vsel %vm4635, %v4433, 0
        %v4694 = vsel %vm4635, %v4448, 0
        %v4697 = vsel %vm4635, %v4463, 0
        %v4700 = vsel %vm4635, %v4478, 0
        %v4703 = vsel %vm4635, %v4493, 0
        %v4706 = vsel %vm4635, %v4508, 0
        %v4709 = vsel %vm4635, %v4523, 0
        %v4712 = vsel %vm4635, %v4538, 0
        %v4715 = vsel %vm4635, %v4553, 0
        %v4718 = vsel %vm4635, %v4568, 0
        %v4721 = vsel %vm4635, %v4583, 0
        %v4724 = vsel %vm4635, %v4598, 0
        %v4727 = vsel %vm4635, %v4613, 0
        %v4730 = vsel %vm4635, %v4628, 0
        %vm4732 = vcmask 1040384
        %v4734 = vsel %vm4732, %v4632, 0
        %v4737 = vsel %vm4732, %v4633, 0
        %v4740 = vsel %vm4732, %v4634, 0
        %4742 = vmatpush.msra.mxu0 0.0
        %4743 = vmatpush.msra.mxu0 0.0
        %4744 = vmatpush.msra.mxu0 0.0
        %4745 = vmatpush.msra.mxu0 0.0
        %4746 = vmatpush.msra.mxu0 0.0
        %4747 = vmatpush.msra.mxu0 0.0
        %4748 = vmatpush.msra.mxu0 0.0
        %4749 = vmatpush.msra.mxu0 0.0
        %4750 = vmatpush.msra.mxu0 0.0
        %4751 = vmatpush.msra.mxu0 0.0
        %4752 = vmatpush.msra.mxu0 0.0
        %4753 = vmatpush.msra.mxu0 0.0
        %4754 = vmatpush.msra.mxu0 0.0
        %4755 = vmatpush.msra.mxu0 0.0
        %4756 = vmatpush.msra.mxu0 %v4734
        %4757 = vmatpush.msra.mxu0 %v4629
        %4758 = vmatmul.f32.gmra.mxu0 %v4637
        %v4759 = vpop.f32.mrf.mxu0
        %v4760 = vadd.f32 0.0, %v4759
        %4761 = vmatmul.f32.gmra.mxu0 %v4640
        %v4762 = vpop.f32.mrf.mxu0
        %v4763 = vadd.f32 0.0, %v4762
        %4764 = vmatmul.f32.gmra.mxu0 %v4643
        %v4765 = vpop.f32.mrf.mxu0
        %v4766 = vadd.f32 0.0, %v4765
        %4767 = vmatmul.f32.gmra.mxu0 %v4646
        %v4768 = vpop.f32.mrf.mxu0
        %v4769 = vadd.f32 0.0, %v4768
        %4770 = vmatmul.f32.gmra.mxu0 %v4649
        %v4771 = vpop.f32.mrf.mxu0
        %v4772 = vadd.f32 0.0, %v4771
        %4773 = vmatmul.f32.gmra.mxu0 %v4652
        %v4774 = vpop.f32.mrf.mxu0
        %v4775 = vadd.f32 0.0, %v4774
        %4776 = vmatmul.f32.gmra.mxu0 %v4655
        %v4777 = vpop.f32.mrf.mxu0
        %v4778 = vadd.f32 0.0, %v4777
        %4779 = vmatmul.f32.gmra.mxu0 %v4658
        %v4780 = vpop.f32.mrf.mxu0
        %v4781 = vadd.f32 0.0, %v4780
        %4782 = vmatmul.f32.gmra.mxu0 %v4661
        %v4783 = vpop.f32.mrf.mxu0
        %v4784 = vadd.f32 0.0, %v4783
        %4785 = vmatmul.f32.gmra.mxu0 %v4664
        %v4786 = vpop.f32.mrf.mxu0
        %v4787 = vadd.f32 0.0, %v4786
        %4788 = vmatmul.f32.gmra.mxu0 %v4667
        %v4789 = vpop.f32.mrf.mxu0
        %v4790 = vadd.f32 0.0, %v4789
        %4791 = vmatmul.f32.gmra.mxu0 %v4670
        %v4792 = vpop.f32.mrf.mxu0
        %v4793 = vadd.f32 0.0, %v4792
        %4794 = vmatmul.f32.gmra.mxu0 %v4673
        %v4795 = vpop.f32.mrf.mxu0
        %v4796 = vadd.f32 0.0, %v4795
        %4797 = vmatmul.f32.gmra.mxu0 %v4676
        %v4798 = vpop.f32.mrf.mxu0
        %v4799 = vadd.f32 0.0, %v4798
        %4800 = vmatmul.f32.gmra.mxu0 %v4679
        %v4801 = vpop.f32.mrf.mxu0
        %v4802 = vadd.f32 0.0, %v4801
        %4803 = vmatmul.f32.gmra.mxu0 %v4682
        %v4804 = vpop.f32.mrf.mxu0
        %v4805 = vadd.f32 0.0, %v4804
        %4806 = vmatmul.f32.gmra.mxu0 %v4685
        %v4807 = vpop.f32.mrf.mxu0
        %v4808 = vadd.f32 0.0, %v4807
        %4809 = vmatmul.f32.gmra.mxu0 %v4688
        %v4810 = vpop.f32.mrf.mxu0
        %v4811 = vadd.f32 0.0, %v4810
        %4812 = vmatmul.f32.gmra.mxu0 %v4691
        %v4813 = vpop.f32.mrf.mxu0
        %v4814 = vadd.f32 0.0, %v4813
        %4815 = vmatmul.f32.gmra.mxu0 %v4694
        %v4816 = vpop.f32.mrf.mxu0
        %v4817 = vadd.f32 0.0, %v4816
        %4818 = vmatmul.f32.gmra.mxu0 %v4697
        %v4819 = vpop.f32.mrf.mxu0
        %v4820 = vadd.f32 0.0, %v4819
        %4821 = vmatmul.f32.gmra.mxu0 %v4700
        %v4822 = vpop.f32.mrf.mxu0
        %v4823 = vadd.f32 0.0, %v4822
        %4824 = vmatmul.f32.gmra.mxu0 %v4703
        %v4825 = vpop.f32.mrf.mxu0
        %v4826 = vadd.f32 0.0, %v4825
        %4827 = vmatmul.f32.gmra.mxu0 %v4706
        %v4828 = vpop.f32.mrf.mxu0
        %v4829 = vadd.f32 0.0, %v4828
        %4830 = vmatmul.f32.gmra.mxu0 %v4709
        %v4831 = vpop.f32.mrf.mxu0
        %v4832 = vadd.f32 0.0, %v4831
        %4833 = vmatmul.f32.gmra.mxu0 %v4712
        %v4834 = vpop.f32.mrf.mxu0
        %v4835 = vadd.f32 0.0, %v4834
        %4836 = vmatmul.f32.gmra.mxu0 %v4715
        %v4837 = vpop.f32.mrf.mxu0
        %v4838 = vadd.f32 0.0, %v4837
        %4839 = vmatmul.f32.gmra.mxu0 %v4718
        %v4840 = vpop.f32.mrf.mxu0
        %v4841 = vadd.f32 0.0, %v4840
        %4842 = vmatmul.f32.gmra.mxu0 %v4721
        %v4843 = vpop.f32.mrf.mxu0
        %v4844 = vadd.f32 0.0, %v4843
        %4845 = vmatmul.f32.gmra.mxu0 %v4724
        %v4846 = vpop.f32.mrf.mxu0
        %v4847 = vadd.f32 0.0, %v4846
        %4848 = vmatmul.f32.gmra.mxu0 %v4727
        %v4849 = vpop.f32.mrf.mxu0
        %v4850 = vadd.f32 0.0, %v4849
        %4851 = vmatmul.f32.gmra.mxu0 %v4730
        %v4852 = vpop.f32.mrf.mxu0
        %v4853 = vadd.f32 0.0, %v4852
        %4854 = vdwg.mxu0
        %4855 = vmatpush.msra.mxu0 0.0
        %4856 = vmatpush.msra.mxu0 0.0
        %4857 = vmatpush.msra.mxu0 0.0
        %4858 = vmatpush.msra.mxu0 0.0
        %4859 = vmatpush.msra.mxu0 0.0
        %4860 = vmatpush.msra.mxu0 0.0
        %4861 = vmatpush.msra.mxu0 0.0
        %4862 = vmatpush.msra.mxu0 0.0
        %4863 = vmatpush.msra.mxu0 0.0
        %4864 = vmatpush.msra.mxu0 0.0
        %4865 = vmatpush.msra.mxu0 0.0
        %4866 = vmatpush.msra.mxu0 0.0
        %4867 = vmatpush.msra.mxu0 0.0
        %4868 = vmatpush.msra.mxu0 0.0
        %4869 = vmatpush.msra.mxu0 %v4737
        %4870 = vmatpush.msra.mxu0 %v4630
        %4871 = vmatmul.f32.gmra.mxu0 %v4637
        %v4872 = vpop.f32.mrf.mxu0
        %v4873 = vadd.f32 0.0, %v4872
        %4874 = vmatmul.f32.gmra.mxu0 %v4640
        %v4875 = vpop.f32.mrf.mxu0
        %v4876 = vadd.f32 0.0, %v4875
        %4877 = vmatmul.f32.gmra.mxu0 %v4643
        %v4878 = vpop.f32.mrf.mxu0
        %v4879 = vadd.f32 0.0, %v4878
        %4880 = vmatmul.f32.gmra.mxu0 %v4646
        %v4881 = vpop.f32.mrf.mxu0
        %v4882 = vadd.f32 0.0, %v4881
        %4883 = vmatmul.f32.gmra.mxu0 %v4649
        %v4884 = vpop.f32.mrf.mxu0
        %v4885 = vadd.f32 0.0, %v4884
        %4886 = vmatmul.f32.gmra.mxu0 %v4652
        %v4887 = vpop.f32.mrf.mxu0
        %v4888 = vadd.f32 0.0, %v4887
        %4889 = vmatmul.f32.gmra.mxu0 %v4655
        %v4890 = vpop.f32.mrf.mxu0
        %v4891 = vadd.f32 0.0, %v4890
        %4892 = vmatmul.f32.gmra.mxu0 %v4658
        %v4893 = vpop.f32.mrf.mxu0
        %v4894 = vadd.f32 0.0, %v4893
        %4895 = vmatmul.f32.gmra.mxu0 %v4661
        %v4896 = vpop.f32.mrf.mxu0
        %v4897 = vadd.f32 0.0, %v4896
        %4898 = vmatmul.f32.gmra.mxu0 %v4664
        %v4899 = vpop.f32.mrf.mxu0
        %v4900 = vadd.f32 0.0, %v4899
        %4901 = vmatmul.f32.gmra.mxu0 %v4667
        %v4902 = vpop.f32.mrf.mxu0
        %v4903 = vadd.f32 0.0, %v4902
        %4904 = vmatmul.f32.gmra.mxu0 %v4670
        %v4905 = vpop.f32.mrf.mxu0
        %v4906 = vadd.f32 0.0, %v4905
        %4907 = vmatmul.f32.gmra.mxu0 %v4673
        %v4908 = vpop.f32.mrf.mxu0
        %v4909 = vadd.f32 0.0, %v4908
        %4910 = vmatmul.f32.gmra.mxu0 %v4676
        %v4911 = vpop.f32.mrf.mxu0
        %v4912 = vadd.f32 0.0, %v4911
        %4913 = vmatmul.f32.gmra.mxu0 %v4679
        %v4914 = vpop.f32.mrf.mxu0
        %v4915 = vadd.f32 0.0, %v4914
        %4916 = vmatmul.f32.gmra.mxu0 %v4682
        %v4917 = vpop.f32.mrf.mxu0
        %v4918 = vadd.f32 0.0, %v4917
        %4919 = vmatmul.f32.gmra.mxu0 %v4685
        %v4920 = vpop.f32.mrf.mxu0
        %v4921 = vadd.f32 0.0, %v4920
        %4922 = vmatmul.f32.gmra.mxu0 %v4688
        %v4923 = vpop.f32.mrf.mxu0
        %v4924 = vadd.f32 0.0, %v4923
        %4925 = vmatmul.f32.gmra.mxu0 %v4691
        %v4926 = vpop.f32.mrf.mxu0
        %v4927 = vadd.f32 0.0, %v4926
        %4928 = vmatmul.f32.gmra.mxu0 %v4694
        %v4929 = vpop.f32.mrf.mxu0
        %v4930 = vadd.f32 0.0, %v4929
        %4931 = vmatmul.f32.gmra.mxu0 %v4697
        %v4932 = vpop.f32.mrf.mxu0
        %v4933 = vadd.f32 0.0, %v4932
        %4934 = vmatmul.f32.gmra.mxu0 %v4700
        %v4935 = vpop.f32.mrf.mxu0
        %v4936 = vadd.f32 0.0, %v4935
        %4937 = vmatmul.f32.gmra.mxu0 %v4703
        %v4938 = vpop.f32.mrf.mxu0
        %v4939 = vadd.f32 0.0, %v4938
        %4940 = vmatmul.f32.gmra.mxu0 %v4706
        %v4941 = vpop.f32.mrf.mxu0
        %v4942 = vadd.f32 0.0, %v4941
        %4943 = vmatmul.f32.gmra.mxu0 %v4709
        %v4944 = vpop.f32.mrf.mxu0
        %v4945 = vadd.f32 0.0, %v4944
        %4946 = vmatmul.f32.gmra.mxu0 %v4712
        %v4947 = vpop.f32.mrf.mxu0
        %v4948 = vadd.f32 0.0, %v4947
        %4949 = vmatmul.f32.gmra.mxu0 %v4715
        %v4950 = vpop.f32.mrf.mxu0
        %v4951 = vadd.f32 0.0, %v4950
        %4952 = vmatmul.f32.gmra.mxu0 %v4718
        %v4953 = vpop.f32.mrf.mxu0
        %v4954 = vadd.f32 0.0, %v4953
        %4955 = vmatmul.f32.gmra.mxu0 %v4721
        %v4956 = vpop.f32.mrf.mxu0
        %v4957 = vadd.f32 0.0, %v4956
        %4958 = vmatmul.f32.gmra.mxu0 %v4724
        %v4959 = vpop.f32.mrf.mxu0
        %v4960 = vadd.f32 0.0, %v4959
        %4961 = vmatmul.f32.gmra.mxu0 %v4727
        %v4962 = vpop.f32.mrf.mxu0
        %v4963 = vadd.f32 0.0, %v4962
        %4964 = vmatmul.f32.gmra.mxu0 %v4730
        %v4965 = vpop.f32.mrf.mxu0
        %v4966 = vadd.f32 0.0, %v4965
        %4967 = vdwg.mxu0
        %4968 = vmatpush.msra.mxu0 0.0
        %4969 = vmatpush.msra.mxu0 0.0
        %4970 = vmatpush.msra.mxu0 0.0
        %4971 = vmatpush.msra.mxu0 0.0
        %4972 = vmatpush.msra.mxu0 0.0
        %4973 = vmatpush.msra.mxu0 0.0
        %4974 = vmatpush.msra.mxu0 0.0
        %4975 = vmatpush.msra.mxu0 0.0
        %4976 = vmatpush.msra.mxu0 0.0
        %4977 = vmatpush.msra.mxu0 0.0
        %4978 = vmatpush.msra.mxu0 0.0
        %4979 = vmatpush.msra.mxu0 0.0
        %4980 = vmatpush.msra.mxu0 0.0
        %4981 = vmatpush.msra.mxu0 0.0
        %4982 = vmatpush.msra.mxu0 %v4740
        %4983 = vmatpush.msra.mxu0 %v4631
        %4984 = vmatmul.f32.gmra.mxu0 %v4637
        %v4985 = vpop.f32.mrf.mxu0
        %v4986 = vadd.f32 0.0, %v4985
        %4987 = vmatmul.f32.gmra.mxu0 %v4640
        %v4988 = vpop.f32.mrf.mxu0
        %v4989 = vadd.f32 0.0, %v4988
        %4990 = vmatmul.f32.gmra.mxu0 %v4643
        %v4991 = vpop.f32.mrf.mxu0
        %v4992 = vadd.f32 0.0, %v4991
        %4993 = vmatmul.f32.gmra.mxu0 %v4646
        %v4994 = vpop.f32.mrf.mxu0
        %v4995 = vadd.f32 0.0, %v4994
        %4996 = vmatmul.f32.gmra.mxu0 %v4649
        %v4997 = vpop.f32.mrf.mxu0
        %v4998 = vadd.f32 0.0, %v4997
        %4999 = vmatmul.f32.gmra.mxu0 %v4652
        %v5000 = vpop.f32.mrf.mxu0
        %v5001 = vadd.f32 0.0, %v5000
        %5002 = vmatmul.f32.gmra.mxu0 %v4655
        %v5003 = vpop.f32.mrf.mxu0
        %v5004 = vadd.f32 0.0, %v5003
        %5005 = vmatmul.f32.gmra.mxu0 %v4658
        %v5006 = vpop.f32.mrf.mxu0
        %v5007 = vadd.f32 0.0, %v5006
        %5008 = vmatmul.f32.gmra.mxu0 %v4661
        %v5009 = vpop.f32.mrf.mxu0
        %v5010 = vadd.f32 0.0, %v5009
        %5011 = vmatmul.f32.gmra.mxu0 %v4664
        %v5012 = vpop.f32.mrf.mxu0
        %v5013 = vadd.f32 0.0, %v5012
        %5014 = vmatmul.f32.gmra.mxu0 %v4667
        %v5015 = vpop.f32.mrf.mxu0
        %v5016 = vadd.f32 0.0, %v5015
        %5017 = vmatmul.f32.gmra.mxu0 %v4670
        %v5018 = vpop.f32.mrf.mxu0
        %v5019 = vadd.f32 0.0, %v5018
        %5020 = vmatmul.f32.gmra.mxu0 %v4673
        %v5021 = vpop.f32.mrf.mxu0
        %v5022 = vadd.f32 0.0, %v5021
        %5023 = vmatmul.f32.gmra.mxu0 %v4676
        %v5024 = vpop.f32.mrf.mxu0
        %v5025 = vadd.f32 0.0, %v5024
        %5026 = vmatmul.f32.gmra.mxu0 %v4679
        %v5027 = vpop.f32.mrf.mxu0
        %v5028 = vadd.f32 0.0, %v5027
        %5029 = vmatmul.f32.gmra.mxu0 %v4682
        %v5030 = vpop.f32.mrf.mxu0
        %v5031 = vadd.f32 0.0, %v5030
        %5032 = vmatmul.f32.gmra.mxu0 %v4685
        %v5033 = vpop.f32.mrf.mxu0
        %v5034 = vadd.f32 0.0, %v5033
        %5035 = vmatmul.f32.gmra.mxu0 %v4688
        %v5036 = vpop.f32.mrf.mxu0
        %v5037 = vadd.f32 0.0, %v5036
        %5038 = vmatmul.f32.gmra.mxu0 %v4691
        %v5039 = vpop.f32.mrf.mxu0
        %v5040 = vadd.f32 0.0, %v5039
        %5041 = vmatmul.f32.gmra.mxu0 %v4694
        %v5042 = vpop.f32.mrf.mxu0
        %v5043 = vadd.f32 0.0, %v5042
        %5044 = vmatmul.f32.gmra.mxu0 %v4697
        %v5045 = vpop.f32.mrf.mxu0
        %v5046 = vadd.f32 0.0, %v5045
        %5047 = vmatmul.f32.gmra.mxu0 %v4700
        %v5048 = vpop.f32.mrf.mxu0
        %v5049 = vadd.f32 0.0, %v5048
        %5050 = vmatmul.f32.gmra.mxu0 %v4703
        %v5051 = vpop.f32.mrf.mxu0
        %v5052 = vadd.f32 0.0, %v5051
        %5053 = vmatmul.f32.gmra.mxu0 %v4706
        %v5054 = vpop.f32.mrf.mxu0
        %v5055 = vadd.f32 0.0, %v5054
        %5056 = vmatmul.f32.gmra.mxu0 %v4709
        %v5057 = vpop.f32.mrf.mxu0
        %v5058 = vadd.f32 0.0, %v5057
        %5059 = vmatmul.f32.gmra.mxu0 %v4712
        %v5060 = vpop.f32.mrf.mxu0
        %v5061 = vadd.f32 0.0, %v5060
        %5062 = vmatmul.f32.gmra.mxu0 %v4715
        %v5063 = vpop.f32.mrf.mxu0
        %v5064 = vadd.f32 0.0, %v5063
        %5065 = vmatmul.f32.gmra.mxu0 %v4718
        %v5066 = vpop.f32.mrf.mxu0
        %v5067 = vadd.f32 0.0, %v5066
        %5068 = vmatmul.f32.gmra.mxu0 %v4721
        %v5069 = vpop.f32.mrf.mxu0
        %v5070 = vadd.f32 0.0, %v5069
        %5071 = vmatmul.f32.gmra.mxu0 %v4724
        %v5072 = vpop.f32.mrf.mxu0
        %v5073 = vadd.f32 0.0, %v5072
        %5074 = vmatmul.f32.gmra.mxu0 %v4727
        %v5075 = vpop.f32.mrf.mxu0
        %v5076 = vadd.f32 0.0, %v5075
        %5077 = vmatmul.f32.gmra.mxu0 %v4730
        %v5078 = vpop.f32.mrf.mxu0
        %v5079 = vadd.f32 0.0, %v5078
        %5080 = vdwg.mxu0
        %v5081 = vmul.f32 %v2075, %v4760
        %v5082 = vmul.f32 %v2171, %v4873
        %v5083 = vmul.f32 %v1105, %v4986
        %v5084 = vmul.f32 %v2076, %v4763
        %v5085 = vmul.f32 %v2172, %v4876
        %v5086 = vmul.f32 %v1107, %v4989
        %v5087 = vmul.f32 %v2077, %v4766
        %v5088 = vmul.f32 %v2173, %v4879
        %v5089 = vmul.f32 %v1110, %v4992
        %v5090 = vmul.f32 %v2078, %v4769
        %v5091 = vmul.f32 %v2174, %v4882
        %v5092 = vmul.f32 %v1112, %v4995
        %v5093 = vmul.f32 %v2079, %v4772
        %v5094 = vmul.f32 %v2175, %v4885
        %v5095 = vmul.f32 %v1115, %v4998
        %v5096 = vmul.f32 %v2080, %v4775
        %v5097 = vmul.f32 %v2176, %v4888
        %v5098 = vmul.f32 %v1117, %v5001
        %v5099 = vmul.f32 %v2081, %v4778
        %v5100 = vmul.f32 %v2177, %v4891
        %v5101 = vmul.f32 %v1120, %v5004
        %v5102 = vmul.f32 %v2082, %v4781
        %v5103 = vmul.f32 %v2178, %v4894
        %v5104 = vmul.f32 %v1122, %v5007
        %v5105 = vmul.f32 %v2083, %v4784
        %v5106 = vmul.f32 %v2179, %v4897
        %v5107 = vmul.f32 %v1125, %v5010
        %v5108 = vmul.f32 %v2084, %v4787
        %v5109 = vmul.f32 %v2180, %v4900
        %v5110 = vmul.f32 %v1127, %v5013
        %v5111 = vmul.f32 %v2085, %v4790
        %v5112 = vmul.f32 %v2181, %v4903
        %v5113 = vmul.f32 %v1130, %v5016
        %v5114 = vmul.f32 %v2086, %v4793
        %v5115 = vmul.f32 %v2182, %v4906
        %v5116 = vmul.f32 %v1132, %v5019
        %v5117 = vmul.f32 %v2087, %v4796
        %v5118 = vmul.f32 %v2183, %v4909
        %v5119 = vmul.f32 %v1135, %v5022
        %v5120 = vmul.f32 %v2088, %v4799
        %v5121 = vmul.f32 %v2184, %v4912
        %v5122 = vmul.f32 %v1137, %v5025
        %v5123 = vmul.f32 %v2089, %v4802
        %v5124 = vmul.f32 %v2185, %v4915
        %v5125 = vmul.f32 %v1140, %v5028
        %v5126 = vmul.f32 %v2090, %v4805
        %v5127 = vmul.f32 %v2186, %v4918
        %v5128 = vmul.f32 %v1142, %v5031
        %v5129 = vmul.f32 %v2091, %v4808
        %v5130 = vmul.f32 %v2187, %v4921
        %v5131 = vmul.f32 %v1145, %v5034
        %v5132 = vmul.f32 %v2092, %v4811
        %v5133 = vmul.f32 %v2188, %v4924
        %v5134 = vmul.f32 %v1147, %v5037
        %v5135 = vmul.f32 %v2093, %v4814
        %v5136 = vmul.f32 %v2189, %v4927
        %v5137 = vmul.f32 %v1150, %v5040
        %v5138 = vmul.f32 %v2094, %v4817
        %v5139 = vmul.f32 %v2190, %v4930
        %v5140 = vmul.f32 %v1152, %v5043
        %v5141 = vmul.f32 %v2095, %v4820
        %v5142 = vmul.f32 %v2191, %v4933
        %v5143 = vmul.f32 %v1155, %v5046
        %v5144 = vmul.f32 %v2096, %v4823
        %v5145 = vmul.f32 %v2192, %v4936
        %v5146 = vmul.f32 %v1157, %v5049
        %v5147 = vmul.f32 %v2097, %v4826
        %v5148 = vmul.f32 %v2193, %v4939
        %v5149 = vmul.f32 %v1160, %v5052
        %v5150 = vmul.f32 %v2098, %v4829
        %v5151 = vmul.f32 %v2194, %v4942
        %v5152 = vmul.f32 %v1162, %v5055
        %v5153 = vmul.f32 %v2099, %v4832
        %v5154 = vmul.f32 %v2195, %v4945
        %v5155 = vmul.f32 %v1165, %v5058
        %v5156 = vmul.f32 %v2100, %v4835
        %v5157 = vmul.f32 %v2196, %v4948
        %v5158 = vmul.f32 %v1167, %v5061
        %v5159 = vmul.f32 %v2101, %v4838
        %v5160 = vmul.f32 %v2197, %v4951
        %v5161 = vmul.f32 %v1170, %v5064
        %v5162 = vmul.f32 %v2102, %v4841
        %v5163 = vmul.f32 %v2198, %v4954
        %v5164 = vmul.f32 %v1172, %v5067
        %v5165 = vmul.f32 %v2103, %v4844
        %v5166 = vmul.f32 %v2199, %v4957
        %v5167 = vmul.f32 %v1335, %v5070
        %v5168 = vmul.f32 %v2104, %v4847
        %v5169 = vmul.f32 %v2200, %v4960
        %v5170 = vmul.f32 %v1337, %v5073
        %v5171 = vmul.f32 %v2105, %v4850
        %v5172 = vmul.f32 %v2201, %v4963
        %v5173 = vmul.f32 %v1361, %v5076
        %v5174 = vmul.f32 %v2106, %v4853
        %v5175 = vmul.f32 %v2202, %v4966
        %v5176 = vmul.f32 %v1363, %v5079
        %v5177 = vpack.c.bf16 %v5084, %v5081
        %v5178 = vpack.c.bf16 %v5085, %v5082
        %v5179 = vpack.c.bf16 %v5086, %v5083
        %v5180 = vpack.c.bf16 %v5090, %v5087
        %v5181 = vpack.c.bf16 %v5091, %v5088
        %v5182 = vpack.c.bf16 %v5092, %v5089
        %v5183 = vpack.c.bf16 %v5096, %v5093
        %v5184 = vpack.c.bf16 %v5097, %v5094
        %v5185 = vpack.c.bf16 %v5098, %v5095
        %v5186 = vpack.c.bf16 %v5102, %v5099
        %v5187 = vpack.c.bf16 %v5103, %v5100
        %v5188 = vpack.c.bf16 %v5104, %v5101
        %v5189 = vpack.c.bf16 %v5108, %v5105
        %v5190 = vpack.c.bf16 %v5109, %v5106
        %v5191 = vpack.c.bf16 %v5110, %v5107
        %v5192 = vpack.c.bf16 %v5114, %v5111
        %v5193 = vpack.c.bf16 %v5115, %v5112
        %v5194 = vpack.c.bf16 %v5116, %v5113
        %v5195 = vpack.c.bf16 %v5120, %v5117
        %v5196 = vpack.c.bf16 %v5121, %v5118
        %v5197 = vpack.c.bf16 %v5122, %v5119
        %v5198 = vpack.c.bf16 %v5126, %v5123
        %v5199 = vpack.c.bf16 %v5127, %v5124
        %v5200 = vpack.c.bf16 %v5128, %v5125
        %v5201 = vpack.c.bf16 %v5132, %v5129
        %v5202 = vpack.c.bf16 %v5133, %v5130
        %v5203 = vpack.c.bf16 %v5134, %v5131
        %v5204 = vpack.c.bf16 %v5138, %v5135
        %v5205 = vpack.c.bf16 %v5139, %v5136
        %v5206 = vpack.c.bf16 %v5140, %v5137
        %v5207 = vpack.c.bf16 %v5144, %v5141
        %v5208 = vpack.c.bf16 %v5145, %v5142
        %v5209 = vpack.c.bf16 %v5146, %v5143
        %v5210 = vpack.c.bf16 %v5150, %v5147
        %v5211 = vpack.c.bf16 %v5151, %v5148
        %v5212 = vpack.c.bf16 %v5152, %v5149
        %v5213 = vpack.c.bf16 %v5156, %v5153
        %v5214 = vpack.c.bf16 %v5157, %v5154
        %v5215 = vpack.c.bf16 %v5158, %v5155
        %v5216 = vpack.c.bf16 %v5162, %v5159
        %v5217 = vpack.c.bf16 %v5163, %v5160
        %v5218 = vpack.c.bf16 %v5164, %v5161
        %v5219 = vpack.c.bf16 %v5168, %v5165
        %v5220 = vpack.c.bf16 %v5169, %v5166
        %v5221 = vpack.c.bf16 %v5170, %v5167
        %v5222 = vpack.c.bf16 %v5174, %v5171
        %v5223 = vpack.c.bf16 %v5175, %v5172
        %v5224 = vpack.c.bf16 %v5176, %v5173
        %v5225 = vld [vmem:[%s7] sm:$0xf]
        %v5226 = vld [vmem:[%s7 + $0x4] sm:$0xf]
        %v5227 = vld [vmem:[%s7 + $0x8] sm:$0xf]
        %v5228 = vld [vmem:[%s7 + $0xc] sm:$0xf]
        %v5229 = vld [vmem:[%s7 + $0x10] sm:$0xf]
        %v5230 = vld [vmem:[%s7 + $0x14] sm:$0xf]
        %v5231 = vld [vmem:[%s7 + $0x18] sm:$0xf]
        %v5232 = vld [vmem:[%s7 + $0x1c] sm:$0xf]
        %v5233 = vld [vmem:[%s7 + $0x20] sm:$0xf]
        %v5234 = vld [vmem:[%s7 + $0x24] sm:$0xf]
        %v5235 = vld [vmem:[%s7 + $0x28] sm:$0xf]
        %v5236 = vld [vmem:[%s7 + $0x2c] sm:$0xf]
        %v5237 = vld [vmem:[%s7 + $0x30] sm:$0xf]
        %v5238 = vld [vmem:[%s7 + $0x34] sm:$0xf]
        %v5239 = vld [vmem:[%s7 + $0x38] sm:$0xf]
        %v5240 = vld [vmem:[%s7 + $0x3c] sm:$0xf]
        %v5241 = vld [vmem:[%s7 + $0x40] sm:$0xf]
        %v5242 = vld [vmem:[%s7 + $0x44] sm:$0xf]
        %v5243 = vld [vmem:[%s7 + $0x48] sm:$0xf]
        %v5244 = vld [vmem:[%s7 + $0x4c] sm:$0xf]
        %v5245 = vld [vmem:[%s7 + $0x50] sm:$0xf]
        %v5246 = vld [vmem:[%s7 + $0x54] sm:$0xf]
        %v5247 = vld [vmem:[%s7 + $0x58] sm:$0xf]
        %v5248 = vld [vmem:[%s7 + $0x5c] sm:$0xf]
        %v5249 = vld [vmem:[%s7 + $0x60] sm:$0xf]
        %v5250 = vld [vmem:[%s7 + $0x64] sm:$0xf]
        %v5251 = vld [vmem:[%s7 + $0x68] sm:$0xf]
        %v5252 = vld [vmem:[%s7 + $0x6c] sm:$0xf]
        %v5253 = vld [vmem:[%s7 + $0x70] sm:$0xf]
        %v5254 = vld [vmem:[%s7 + $0x74] sm:$0xf]
        %v5255 = vld [vmem:[%s7 + $0x78] sm:$0xf]
        %v5256 = vld [vmem:[%s7 + $0x7c] sm:$0xf]
        %v5257 = vld [vmem:[%s7 + $0x80] sm:$0xf]
        %v5258 = vld [vmem:[%s7 + $0x84] sm:$0xf]
        %v5259 = vld [vmem:[%s7 + $0x88] sm:$0xf]
        %v5260 = vld [vmem:[%s7 + $0x8c] sm:$0xf]
        %v5261 = vld [vmem:[%s8] sm:$0x1]
        %v5263 = vperm.slane %v5261, 0
        %v5301 = vunpack.c.l.b16 %v5225
        %v5302 = vunpack.c.l.b16 %v5226
        %v5303 = vunpack.c.l.b16 %v5227
        %v5304 = vunpack.c.l.b16 %v5228
        %v5305 = vunpack.c.l.b16 %v5229
        %v5306 = vunpack.c.l.b16 %v5230
        %v5307 = vunpack.c.l.b16 %v5231
        %v5308 = vunpack.c.l.b16 %v5232
        %v5309 = vunpack.c.l.b16 %v5233
        %v5310 = vunpack.c.l.b16 %v5234
        %v5311 = vunpack.c.l.b16 %v5235
        %v5312 = vunpack.c.l.b16 %v5236
        %v5313 = vunpack.c.l.b16 %v5237
        %v5314 = vunpack.c.l.b16 %v5238
        %v5315 = vunpack.c.l.b16 %v5239
        %v5316 = vunpack.c.l.b16 %v5240
        %v5317 = vunpack.c.l.b16 %v5241
        %v5318 = vunpack.c.l.b16 %v5242
        %v5319 = vunpack.c.l.b16 %v5243
        %v5320 = vunpack.c.l.b16 %v5244
        %v5321 = vunpack.c.l.b16 %v5245
        %v5322 = vunpack.c.l.b16 %v5246
        %v5323 = vunpack.c.l.b16 %v5247
        %v5324 = vunpack.c.l.b16 %v5248
        %v5325 = vunpack.c.l.b16 %v5249
        %v5326 = vunpack.c.l.b16 %v5250
        %v5327 = vunpack.c.l.b16 %v5251
        %v5328 = vunpack.c.l.b16 %v5252
        %v5329 = vunpack.c.l.b16 %v5253
        %v5330 = vunpack.c.l.b16 %v5254
        %v5331 = vunpack.c.l.b16 %v5255
        %v5332 = vunpack.c.l.b16 %v5256
        %v5333 = vunpack.c.l.b16 %v5257
        %v5334 = vunpack.c.l.b16 %v5258
        %v5335 = vunpack.c.l.b16 %v5259
        %v5336 = vunpack.c.l.b16 %v5260
        %v5337 = vpack.c.b16 %v5302, %v5301
        %v5338 = vpack.c.b16 %v5304, %v5303
        %v5339 = vpack.c.b16 %v5306, %v5305
        %v5340 = vpack.c.b16 %v5308, %v5307
        %v5341 = vpack.c.b16 %v5310, %v5309
        %v5342 = vpack.c.b16 %v5312, %v5311
        %v5343 = vpack.c.b16 %v5314, %v5313
        %v5344 = vpack.c.b16 %v5316, %v5315
        %v5345 = vpack.c.b16 %v5318, %v5317
        %v5346 = vpack.c.b16 %v5320, %v5319
        %v5347 = vpack.c.b16 %v5322, %v5321
        %v5348 = vpack.c.b16 %v5324, %v5323
        %v5349 = vpack.c.b16 %v5326, %v5325
        %v5350 = vpack.c.b16 %v5328, %v5327
        %v5351 = vpack.c.b16 %v5330, %v5329
        %v5352 = vpack.c.b16 %v5332, %v5331
        %v5353 = vpack.c.b16 %v5334, %v5333
        %v5354 = vpack.c.b16 %v5336, %v5335
        %v5374 = vsel %vm501, %v5179, 0
        %v5377 = vsel %vm501, %v5182, 0
        %v5380 = vsel %vm501, %v5185, 0
        %v5383 = vsel %vm501, %v5188, 0
        %v5386 = vsel %vm501, %v5191, 0
        %v5389 = vsel %vm501, %v5194, 0
        %v5392 = vsel %vm501, %v5197, 0
        %v5395 = vsel %vm501, %v5200, 0
        %v5398 = vsel %vm501, %v5203, 0
        %v5401 = vsel %vm501, %v5206, 0
        %v5404 = vsel %vm501, %v5209, 0
        %v5407 = vsel %vm501, %v5212, 0
        %v5410 = vsel %vm501, %v5215, 0
        %v5413 = vsel %vm501, %v5218, 0
        %v5416 = vsel %vm501, %v5221, 0
        %v5419 = vsel %vm501, %v5224, 0
        %5421 = vmatpush.bf16.msra.mxu0 %v5344
        %5422 = vmatpush.bf16.msra.mxu0 %v5343
        %5423 = vmatpush.bf16.msra.mxu0 %v5342
        %5424 = vmatpush.bf16.msra.mxu0 %v5341
        %5425 = vmatpush.bf16.msra.mxu0 %v5340
        %5426 = vmatpush.bf16.msra.mxu0 %v5339
        %5427 = vmatpush.bf16.msra.mxu0 %v5338
        %5428 = vmatpush.bf16.msra.mxu0 %v5337
        %5429 = vmatmul.bf16.gmra.mxu0 %v5177
        %v5430 = vpop.f32.mrf.mxu0
        %v5431 = vadd.f32 %v5263, %v5430
        %v5432 = vpop.f32.mrf.mxu0
        %v5433 = vadd.f32 %v5263, %v5432
        %5434 = vmatmul.bf16.gmra.mxu0 %v5180
        %v5435 = vpop.f32.mrf.mxu0
        %v5436 = vadd.f32 %v5263, %v5435
        %v5437 = vpop.f32.mrf.mxu0
        %v5438 = vadd.f32 %v5263, %v5437
        %5439 = vmatmul.bf16.gmra.mxu0 %v5183
        %v5440 = vpop.f32.mrf.mxu0
        %v5441 = vadd.f32 %v5263, %v5440
        %v5442 = vpop.f32.mrf.mxu0
        %v5443 = vadd.f32 %v5263, %v5442
        %5444 = vmatmul.bf16.gmra.mxu0 %v5186
        %v5445 = vpop.f32.mrf.mxu0
        %v5446 = vadd.f32 %v5263, %v5445
        %v5447 = vpop.f32.mrf.mxu0
        %v5448 = vadd.f32 %v5263, %v5447
        %5449 = vmatmul.bf16.gmra.mxu0 %v5189
        %v5450 = vpop.f32.mrf.mxu0
        %v5451 = vadd.f32 %v5263, %v5450
        %v5452 = vpop.f32.mrf.mxu0
        %v5453 = vadd.f32 %v5263, %v5452
        %5454 = vmatmul.bf16.gmra.mxu0 %v5192
        %v5455 = vpop.f32.mrf.mxu0
        %v5456 = vadd.f32 %v5263, %v5455
        %v5457 = vpop.f32.mrf.mxu0
        %v5458 = vadd.f32 %v5263, %v5457
        %5459 = vmatmul.bf16.gmra.mxu0 %v5195
        %v5460 = vpop.f32.mrf.mxu0
        %v5461 = vadd.f32 %v5263, %v5460
        %v5462 = vpop.f32.mrf.mxu0
        %v5463 = vadd.f32 %v5263, %v5462
        %5464 = vmatmul.bf16.gmra.mxu0 %v5198
        %v5465 = vpop.f32.mrf.mxu0
        %v5466 = vadd.f32 %v5263, %v5465
        %v5467 = vpop.f32.mrf.mxu0
        %v5468 = vadd.f32 %v5263, %v5467
        %5469 = vmatmul.bf16.gmra.mxu0 %v5201
        %v5470 = vpop.f32.mrf.mxu0
        %v5471 = vadd.f32 %v5263, %v5470
        %v5472 = vpop.f32.mrf.mxu0
        %v5473 = vadd.f32 %v5263, %v5472
        %5474 = vmatmul.bf16.gmra.mxu0 %v5204
        %v5475 = vpop.f32.mrf.mxu0
        %v5476 = vadd.f32 %v5263, %v5475
        %v5477 = vpop.f32.mrf.mxu0
        %v5478 = vadd.f32 %v5263, %v5477
        %5479 = vmatmul.bf16.gmra.mxu0 %v5207
        %v5480 = vpop.f32.mrf.mxu0
        %v5481 = vadd.f32 %v5263, %v5480
        %v5482 = vpop.f32.mrf.mxu0
        %v5483 = vadd.f32 %v5263, %v5482
        %5484 = vmatmul.bf16.gmra.mxu0 %v5210
        %v5485 = vpop.f32.mrf.mxu0
        %v5486 = vadd.f32 %v5263, %v5485
        %v5487 = vpop.f32.mrf.mxu0
        %v5488 = vadd.f32 %v5263, %v5487
        %5489 = vmatmul.bf16.gmra.mxu0 %v5213
        %v5490 = vpop.f32.mrf.mxu0
        %v5491 = vadd.f32 %v5263, %v5490
        %v5492 = vpop.f32.mrf.mxu0
        %v5493 = vadd.f32 %v5263, %v5492
        %5494 = vmatmul.bf16.gmra.mxu0 %v5216
        %v5495 = vpop.f32.mrf.mxu0
        %v5496 = vadd.f32 %v5263, %v5495
        %v5497 = vpop.f32.mrf.mxu0
        %v5498 = vadd.f32 %v5263, %v5497
        %5499 = vmatmul.bf16.gmra.mxu0 %v5219
        %v5500 = vpop.f32.mrf.mxu0
        %v5501 = vadd.f32 %v5263, %v5500
        %v5502 = vpop.f32.mrf.mxu0
        %v5503 = vadd.f32 %v5263, %v5502
        %5504 = vmatmul.bf16.gmra.mxu0 %v5222
        %v5505 = vpop.f32.mrf.mxu0
        %v5506 = vadd.f32 %v5263, %v5505
        %v5507 = vpop.f32.mrf.mxu0
        %v5508 = vadd.f32 %v5263, %v5507
        %5509 = vdwg.mxu0
        %5510 = vmatpush.bf16.msra.mxu0 %v5352
        %5511 = vmatpush.bf16.msra.mxu0 %v5351
        %5512 = vmatpush.bf16.msra.mxu0 %v5350
        %5513 = vmatpush.bf16.msra.mxu0 %v5349
        %5514 = vmatpush.bf16.msra.mxu0 %v5348
        %5515 = vmatpush.bf16.msra.mxu0 %v5347
        %5516 = vmatpush.bf16.msra.mxu0 %v5346
        %5517 = vmatpush.bf16.msra.mxu0 %v5345
        %5518 = vmatmul.bf16.gmra.mxu0 %v5178
        %v5519 = vpop.f32.mrf.mxu0
        %v5520 = vadd.f32 %v5431, %v5519
        %v5521 = vpop.f32.mrf.mxu0
        %v5522 = vadd.f32 %v5433, %v5521
        %5523 = vmatmul.bf16.gmra.mxu0 %v5181
        %v5524 = vpop.f32.mrf.mxu0
        %v5525 = vadd.f32 %v5436, %v5524
        %v5526 = vpop.f32.mrf.mxu0
        %v5527 = vadd.f32 %v5438, %v5526
        %5528 = vmatmul.bf16.gmra.mxu0 %v5184
        %v5529 = vpop.f32.mrf.mxu0
        %v5530 = vadd.f32 %v5441, %v5529
        %v5531 = vpop.f32.mrf.mxu0
        %v5532 = vadd.f32 %v5443, %v5531
        %5533 = vmatmul.bf16.gmra.mxu0 %v5187
        %v5534 = vpop.f32.mrf.mxu0
        %v5535 = vadd.f32 %v5446, %v5534
        %v5536 = vpop.f32.mrf.mxu0
        %v5537 = vadd.f32 %v5448, %v5536
        %5538 = vmatmul.bf16.gmra.mxu0 %v5190
        %v5539 = vpop.f32.mrf.mxu0
        %v5540 = vadd.f32 %v5451, %v5539
        %v5541 = vpop.f32.mrf.mxu0
        %v5542 = vadd.f32 %v5453, %v5541
        %5543 = vmatmul.bf16.gmra.mxu0 %v5193
        %v5544 = vpop.f32.mrf.mxu0
        %v5545 = vadd.f32 %v5456, %v5544
        %v5546 = vpop.f32.mrf.mxu0
        %v5547 = vadd.f32 %v5458, %v5546
        %5548 = vmatmul.bf16.gmra.mxu0 %v5196
        %v5549 = vpop.f32.mrf.mxu0
        %v5550 = vadd.f32 %v5461, %v5549
        %v5551 = vpop.f32.mrf.mxu0
        %v5552 = vadd.f32 %v5463, %v5551
        %5553 = vmatmul.bf16.gmra.mxu0 %v5199
        %v5554 = vpop.f32.mrf.mxu0
        %v5555 = vadd.f32 %v5466, %v5554
        %v5556 = vpop.f32.mrf.mxu0
        %v5557 = vadd.f32 %v5468, %v5556
        %5558 = vmatmul.bf16.gmra.mxu0 %v5202
        %v5559 = vpop.f32.mrf.mxu0
        %v5560 = vadd.f32 %v5471, %v5559
        %v5561 = vpop.f32.mrf.mxu0
        %v5562 = vadd.f32 %v5473, %v5561
        %5563 = vmatmul.bf16.gmra.mxu0 %v5205
        %v5564 = vpop.f32.mrf.mxu0
        %v5565 = vadd.f32 %v5476, %v5564
        %v5566 = vpop.f32.mrf.mxu0
        %v5567 = vadd.f32 %v5478, %v5566
        %5568 = vmatmul.bf16.gmra.mxu0 %v5208
        %v5569 = vpop.f32.mrf.mxu0
        %v5570 = vadd.f32 %v5481, %v5569
        %v5571 = vpop.f32.mrf.mxu0
        %v5572 = vadd.f32 %v5483, %v5571
        %5573 = vmatmul.bf16.gmra.mxu0 %v5211
        %v5574 = vpop.f32.mrf.mxu0
        %v5575 = vadd.f32 %v5486, %v5574
        %v5576 = vpop.f32.mrf.mxu0
        %v5577 = vadd.f32 %v5488, %v5576
        %5578 = vmatmul.bf16.gmra.mxu0 %v5214
        %v5579 = vpop.f32.mrf.mxu0
        %v5580 = vadd.f32 %v5491, %v5579
        %v5581 = vpop.f32.mrf.mxu0
        %v5582 = vadd.f32 %v5493, %v5581
        %5583 = vmatmul.bf16.gmra.mxu0 %v5217
        %v5584 = vpop.f32.mrf.mxu0
        %v5585 = vadd.f32 %v5496, %v5584
        %v5586 = vpop.f32.mrf.mxu0
        %v5587 = vadd.f32 %v5498, %v5586
        %5588 = vmatmul.bf16.gmra.mxu0 %v5220
        %v5589 = vpop.f32.mrf.mxu0
        %v5590 = vadd.f32 %v5501, %v5589
        %v5591 = vpop.f32.mrf.mxu0
        %v5592 = vadd.f32 %v5503, %v5591
        %5593 = vmatmul.bf16.gmra.mxu0 %v5223
        %v5594 = vpop.f32.mrf.mxu0
        %v5595 = vadd.f32 %v5506, %v5594
        %v5596 = vpop.f32.mrf.mxu0
        %v5597 = vadd.f32 %v5508, %v5596
        %5598 = vdwg.mxu0
        %5599 = vmatpush.bf16.msra.mxu0 0
        %5600 = vmatpush.bf16.msra.mxu0 0
        %5601 = vmatpush.bf16.msra.mxu0 0
        %5602 = vmatpush.bf16.msra.mxu0 0
        %5603 = vmatpush.bf16.msra.mxu0 0
        %5604 = vmatpush.bf16.msra.mxu0 0
        %5605 = vmatpush.bf16.msra.mxu0 %v5354
        %5606 = vmatpush.bf16.msra.mxu0 %v5353
        %5607 = vmatmul.bf16.gmra.mxu0 %v5374
        %v5608 = vpop.f32.mrf.mxu0
        %v5609 = vadd.f32 %v5520, %v5608
        %v5610 = vpop.f32.mrf.mxu0
        %v5611 = vadd.f32 %v5522, %v5610
        %5612 = vmatmul.bf16.gmra.mxu0 %v5377
        %v5613 = vpop.f32.mrf.mxu0
        %v5614 = vadd.f32 %v5525, %v5613
        %v5615 = vpop.f32.mrf.mxu0
        %v5616 = vadd.f32 %v5527, %v5615
        %5617 = vmatmul.bf16.gmra.mxu0 %v5380
        %v5618 = vpop.f32.mrf.mxu0
        %v5619 = vadd.f32 %v5530, %v5618
        %v5620 = vpop.f32.mrf.mxu0
        %v5621 = vadd.f32 %v5532, %v5620
        %5622 = vmatmul.bf16.gmra.mxu0 %v5383
        %v5623 = vpop.f32.mrf.mxu0
        %v5624 = vadd.f32 %v5535, %v5623
        %v5625 = vpop.f32.mrf.mxu0
        %v5626 = vadd.f32 %v5537, %v5625
        %5627 = vmatmul.bf16.gmra.mxu0 %v5386
        %v5628 = vpop.f32.mrf.mxu0
        %v5629 = vadd.f32 %v5540, %v5628
        %v5630 = vpop.f32.mrf.mxu0
        %v5631 = vadd.f32 %v5542, %v5630
        %5632 = vmatmul.bf16.gmra.mxu0 %v5389
        %v5633 = vpop.f32.mrf.mxu0
        %v5634 = vadd.f32 %v5545, %v5633
        %v5635 = vpop.f32.mrf.mxu0
        %v5636 = vadd.f32 %v5547, %v5635
        %5637 = vmatmul.bf16.gmra.mxu0 %v5392
        %v5638 = vpop.f32.mrf.mxu0
        %v5639 = vadd.f32 %v5550, %v5638
        %v5640 = vpop.f32.mrf.mxu0
        %v5641 = vadd.f32 %v5552, %v5640
        %5642 = vmatmul.bf16.gmra.mxu0 %v5395
        %v5643 = vpop.f32.mrf.mxu0
        %v5644 = vadd.f32 %v5555, %v5643
        %v5645 = vpop.f32.mrf.mxu0
        %v5646 = vadd.f32 %v5557, %v5645
        %5647 = vmatmul.bf16.gmra.mxu0 %v5398
        %v5648 = vpop.f32.mrf.mxu0
        %v5649 = vadd.f32 %v5560, %v5648
        %v5650 = vpop.f32.mrf.mxu0
        %v5651 = vadd.f32 %v5562, %v5650
        %5652 = vmatmul.bf16.gmra.mxu0 %v5401
        %v5653 = vpop.f32.mrf.mxu0
        %v5654 = vadd.f32 %v5565, %v5653
        %v5655 = vpop.f32.mrf.mxu0
        %v5656 = vadd.f32 %v5567, %v5655
        %5657 = vmatmul.bf16.gmra.mxu0 %v5404
        %v5658 = vpop.f32.mrf.mxu0
        %v5659 = vadd.f32 %v5570, %v5658
        %v5660 = vpop.f32.mrf.mxu0
        %v5661 = vadd.f32 %v5572, %v5660
        %5662 = vmatmul.bf16.gmra.mxu0 %v5407
        %v5663 = vpop.f32.mrf.mxu0
        %v5664 = vadd.f32 %v5575, %v5663
        %v5665 = vpop.f32.mrf.mxu0
        %v5666 = vadd.f32 %v5577, %v5665
        %5667 = vmatmul.bf16.gmra.mxu0 %v5410
        %v5668 = vpop.f32.mrf.mxu0
        %v5669 = vadd.f32 %v5580, %v5668
        %v5670 = vpop.f32.mrf.mxu0
        %v5671 = vadd.f32 %v5582, %v5670
        %5672 = vmatmul.bf16.gmra.mxu0 %v5413
        %v5673 = vpop.f32.mrf.mxu0
        %v5674 = vadd.f32 %v5585, %v5673
        %v5675 = vpop.f32.mrf.mxu0
        %v5676 = vadd.f32 %v5587, %v5675
        %5677 = vmatmul.bf16.gmra.mxu0 %v5416
        %v5678 = vpop.f32.mrf.mxu0
        %v5679 = vadd.f32 %v5590, %v5678
        %v5680 = vpop.f32.mrf.mxu0
        %v5681 = vadd.f32 %v5592, %v5680
        %5682 = vmatmul.bf16.gmra.mxu0 %v5419
        %v5683 = vpop.f32.mrf.mxu0
        %v5684 = vadd.f32 %v5595, %v5683
        %v5685 = vpop.f32.mrf.mxu0
        %v5686 = vadd.f32 %v5597, %v5685
        %5687 = vdwg.mxu0
        %v5688 = vld [vmem:[%s10] sm:$0x1]
        %v5690 = vperm.slane %v5688, 0
        %v5692 = vmul.f32 %v5609, %v5690
        %v5693 = vmul.f32 %v5611, %v5690
        %v5694 = vmul.f32 %v5614, %v5690
        %v5695 = vmul.f32 %v5616, %v5690
        %v5696 = vmul.f32 %v5619, %v5690
        %v5697 = vmul.f32 %v5621, %v5690
        %v5698 = vmul.f32 %v5624, %v5690
        %v5699 = vmul.f32 %v5626, %v5690
        %v5700 = vmul.f32 %v5629, %v5690
        %v5701 = vmul.f32 %v5631, %v5690
        %v5702 = vmul.f32 %v5634, %v5690
        %v5703 = vmul.f32 %v5636, %v5690
        %v5704 = vmul.f32 %v5639, %v5690
        %v5705 = vmul.f32 %v5641, %v5690
        %v5706 = vmul.f32 %v5644, %v5690
        %v5707 = vmul.f32 %v5646, %v5690
        %v5708 = vmul.f32 %v5649, %v5690
        %v5709 = vmul.f32 %v5651, %v5690
        %v5710 = vmul.f32 %v5654, %v5690
        %v5711 = vmul.f32 %v5656, %v5690
        %v5712 = vmul.f32 %v5659, %v5690
        %v5713 = vmul.f32 %v5661, %v5690
        %v5714 = vmul.f32 %v5664, %v5690
        %v5715 = vmul.f32 %v5666, %v5690
        %v5716 = vmul.f32 %v5669, %v5690
        %v5717 = vmul.f32 %v5671, %v5690
        %v5718 = vmul.f32 %v5674, %v5690
        %v5719 = vmul.f32 %v5676, %v5690
        %v5720 = vmul.f32 %v5679, %v5690
        %v5721 = vmul.f32 %v5681, %v5690
        %v5722 = vmul.f32 %v5684, %v5690
        %v5723 = vmul.f32 %v5686, %v5690
        %v5724 = vld [vmem:[%s11] sm:$0x1]
        %v5726 = vperm.slane %v5724, 0
        %v5728 = vadd.f32 %v5692, %v5726
        %v5729 = vadd.f32 %v5693, %v5726
        %v5730 = vadd.f32 %v5694, %v5726
        %v5731 = vadd.f32 %v5695, %v5726
        %v5732 = vadd.f32 %v5696, %v5726
        %v5733 = vadd.f32 %v5697, %v5726
        %v5734 = vadd.f32 %v5698, %v5726
        %v5735 = vadd.f32 %v5699, %v5726
        %v5736 = vadd.f32 %v5700, %v5726
        %v5737 = vadd.f32 %v5701, %v5726
        %v5738 = vadd.f32 %v5702, %v5726
        %v5739 = vadd.f32 %v5703, %v5726
        %v5740 = vadd.f32 %v5704, %v5726
        %v5741 = vadd.f32 %v5705, %v5726
        %v5742 = vadd.f32 %v5706, %v5726
        %v5743 = vadd.f32 %v5707, %v5726
        %v5744 = vadd.f32 %v5708, %v5726
        %v5745 = vadd.f32 %v5709, %v5726
        %v5746 = vadd.f32 %v5710, %v5726
        %v5747 = vadd.f32 %v5711, %v5726
        %v5748 = vadd.f32 %v5712, %v5726
        %v5749 = vadd.f32 %v5713, %v5726
        %v5750 = vadd.f32 %v5714, %v5726
        %v5751 = vadd.f32 %v5715, %v5726
        %v5752 = vadd.f32 %v5716, %v5726
        %v5753 = vadd.f32 %v5717, %v5726
        %v5754 = vadd.f32 %v5718, %v5726
        %v5755 = vadd.f32 %v5719, %v5726
        %v5756 = vadd.f32 %v5720, %v5726
        %v5757 = vadd.f32 %v5721, %v5726
        %v5758 = vadd.f32 %v5722, %v5726
        %v5759 = vadd.f32 %v5723, %v5726
        %v5760 = vadd.f32 %v560, %v5728
        %v5761 = vadd.f32 %v562, %v5729
        %v5762 = vadd.f32 %v565, %v5730
        %v5763 = vadd.f32 %v567, %v5731
        %v5764 = vadd.f32 %v570, %v5732
        %v5765 = vadd.f32 %v572, %v5733
        %v5766 = vadd.f32 %v575, %v5734
        %v5767 = vadd.f32 %v577, %v5735
        %v5768 = vadd.f32 %v580, %v5736
        %v5769 = vadd.f32 %v582, %v5737
        %v5770 = vadd.f32 %v585, %v5738
        %v5771 = vadd.f32 %v587, %v5739
        %v5772 = vadd.f32 %v590, %v5740
        %v5773 = vadd.f32 %v592, %v5741
        %v5774 = vadd.f32 %v595, %v5742
        %v5775 = vadd.f32 %v597, %v5743
        %v5776 = vadd.f32 %v600, %v5744
        %v5777 = vadd.f32 %v602, %v5745
        %v5778 = vadd.f32 %v605, %v5746
        %v5779 = vadd.f32 %v607, %v5747
        %v5780 = vadd.f32 %v610, %v5748
        %v5781 = vadd.f32 %v612, %v5749
        %v5782 = vadd.f32 %v615, %v5750
        %v5783 = vadd.f32 %v617, %v5751
        %v5784 = vadd.f32 %v620, %v5752
        %v5785 = vadd.f32 %v622, %v5753
        %v5786 = vadd.f32 %v625, %v5754
        %v5787 = vadd.f32 %v627, %v5755
        %v5788 = vadd.f32 %v630, %v5756
        %v5789 = vadd.f32 %v632, %v5757
        %v5790 = vadd.f32 %v635, %v5758
        %v5791 = vadd.f32 %v637, %v5759
        %v5792 = vmax.f32 %v5760, 0.0
        %v5793 = vmax.f32 %v5761, 0.0
        %v5794 = vmax.f32 %v5762, 0.0
        %v5795 = vmax.f32 %v5763, 0.0
        %v5796 = vmax.f32 %v5764, 0.0
        %v5797 = vmax.f32 %v5765, 0.0
        %v5798 = vmax.f32 %v5766, 0.0
        %v5799 = vmax.f32 %v5767, 0.0
        %v5800 = vmax.f32 %v5768, 0.0
        %v5801 = vmax.f32 %v5769, 0.0
        %v5802 = vmax.f32 %v5770, 0.0
        %v5803 = vmax.f32 %v5771, 0.0
        %v5804 = vmax.f32 %v5772, 0.0
        %v5805 = vmax.f32 %v5773, 0.0
        %v5806 = vmax.f32 %v5774, 0.0
        %v5807 = vmax.f32 %v5775, 0.0
        %v5808 = vmax.f32 %v5776, 0.0
        %v5809 = vmax.f32 %v5777, 0.0
        %v5810 = vmax.f32 %v5778, 0.0
        %v5811 = vmax.f32 %v5779, 0.0
        %v5812 = vmax.f32 %v5780, 0.0
        %v5813 = vmax.f32 %v5781, 0.0
        %v5814 = vmax.f32 %v5782, 0.0
        %v5815 = vmax.f32 %v5783, 0.0
        %v5816 = vmax.f32 %v5784, 0.0
        %v5817 = vmax.f32 %v5785, 0.0
        %v5818 = vmax.f32 %v5786, 0.0
        %v5819 = vmax.f32 %v5787, 0.0
        %v5820 = vmax.f32 %v5788, 0.0
        %v5821 = vmax.f32 %v5789, 0.0
        %v5822 = vmax.f32 %v5790, 0.0
        %v5823 = vmax.f32 %v5791, 0.0
        %5824 = vst.msk [vmem:[%s421] sm:$0xff] %vm501, %v5792
        %5825 = vst.msk [vmem:[%s421 + $0x8] sm:$0xff] %vm501, %v5793
        %5826 = vst.msk [vmem:[%s421 + $0x10] sm:$0xff] %vm501, %v5794
        %5827 = vst.msk [vmem:[%s421 + $0x18] sm:$0xff] %vm501, %v5795
        %5828 = vst.msk [vmem:[%s421 + $0x20] sm:$0xff] %vm501, %v5796
        %5829 = vst.msk [vmem:[%s421 + $0x28] sm:$0xff] %vm501, %v5797
        %5830 = vst.msk [vmem:[%s421 + $0x30] sm:$0xff] %vm501, %v5798
        %5831 = vst.msk [vmem:[%s421 + $0x38] sm:$0xff] %vm501, %v5799
        %5832 = vst.msk [vmem:[%s421 + $0x40] sm:$0xff] %vm501, %v5800
        %5833 = vst.msk [vmem:[%s421 + $0x48] sm:$0xff] %vm501, %v5801
        %5834 = vst.msk [vmem:[%s421 + $0x50] sm:$0xff] %vm501, %v5802
        %5835 = vst.msk [vmem:[%s421 + $0x58] sm:$0xff] %vm501, %v5803
        %5836 = vst.msk [vmem:[%s421 + $0x60] sm:$0xff] %vm501, %v5804
        %5837 = vst.msk [vmem:[%s421 + $0x68] sm:$0xff] %vm501, %v5805
        %5838 = vst.msk [vmem:[%s421 + $0x70] sm:$0xff] %vm501, %v5806
        %5839 = vst.msk [vmem:[%s421 + $0x78] sm:$0xff] %vm501, %v5807
        %5840 = vst.msk [vmem:[%s421 + $0x80] sm:$0xff] %vm501, %v5808
        %5841 = vst.msk [vmem:[%s421 + $0x88] sm:$0xff] %vm501, %v5809
        %5842 = vst.msk [vmem:[%s421 + $0x90] sm:$0xff] %vm501, %v5810
        %5843 = vst.msk [vmem:[%s421 + $0x98] sm:$0xff] %vm501, %v5811
        %5844 = vst.msk [vmem:[%s421 + $0xa0] sm:$0xff] %vm501, %v5812
        %5845 = vst.msk [vmem:[%s421 + $0xa8] sm:$0xff] %vm501, %v5813
        %5846 = vst.msk [vmem:[%s421 + $0xb0] sm:$0xff] %vm501, %v5814
        %5847 = vst.msk [vmem:[%s421 + $0xb8] sm:$0xff] %vm501, %v5815
        %5848 = vst.msk [vmem:[%s421 + $0xc0] sm:$0xff] %vm501, %v5816
        %5849 = vst.msk [vmem:[%s421 + $0xc8] sm:$0xff] %vm501, %v5817
        %5850 = vst.msk [vmem:[%s421 + $0xd0] sm:$0xff] %vm501, %v5818
        %5851 = vst.msk [vmem:[%s421 + $0xd8] sm:$0xff] %vm501, %v5819
        %5852 = vst.msk [vmem:[%s421 + $0xe0] sm:$0xff] %vm501, %v5820
        %5853 = vst.msk [vmem:[%s421 + $0xe8] sm:$0xff] %vm501, %v5821
        %5854 = vst.msk [vmem:[%s421 + $0xf0] sm:$0xff] %vm501, %v5822
        %5855 = vst.msk [vmem:[%s421 + $0xf8] sm:$0xff] %vm501, %v5823
        %s5856 = sand.u32 %s296, 1
        %s5857 = scalar_lea.sflag [#allocation4], %s5856
        %s5858 = sand.u32 %s296, 1
        %s5859 = smul.addr %s5858, 256
        %s5860 = scalar_lea.vmem [#allocation3], %s5859
        // Predicated region
        $region69: #{tpu_custom_call.1} parent=67 // pred_check
          %p5861 = pneg %p306
        $region70: #{tpu_custom_call.1} parent=67 // pred_check_branch
          %5863 = sbr.rel (%p5861) target = $region72
        $region71: #{tpu_custom_call.1} parent=67 // pred_region
          %5865 = vsyncadd %s5857, 0
          %s5866 = smul.addr %s26, 32
          %s5867 = smul.addr %s5866, 8
          %s5868 = scalar_lea.hbm %s12, %s5867
          %s5869 = sshll.u32 %s5860, 4
          %s5870 = int_to_ptr.vmem [resolvable:$true] %s5869
          %s5871 = sshll.u32 %s5868, 4
          %s5872 = int_to_ptr.hbm [resolvable:$true] %s5871
          %5877 = dma.vmem_to_hbm [thread:$0]  %s5870, 4096, %s5872, %s5857, 128, 128, 8
        $region72: #{tpu_custom_call.1} parent=67 // pred_fallthru
          _
      $region68: #{tpu_custom_call.1} parent=5 // pred_fallthru
        _
      %p5878 = scmp.le.s32.totalorder 2, %s21
      // Predicated region
      $region73: #{tpu_custom_call.1} parent=5 // pred_check
        %p5879 = pneg %p5878
      $region74: #{tpu_custom_call.1} parent=5 // pred_check_branch
        %5881 = sbr.rel (%p5879) target = $region76
      $region75: #{tpu_custom_call.1} parent=5 // pred_region
        %s5882 = ssub.s32 %s21, 2
        // Predicated region
        $region77: #{tpu_custom_call.1} parent=75 // pred_check
          %p5883 = pneg %p312
        $region78: #{tpu_custom_call.1} parent=75 // pred_check_branch
          %5885 = sbr.rel (%p5883) target = $region80
        $region79: #{tpu_custom_call.1} parent=75 // pred_region
          %s5886 = sand.u32 %s297, 1
          %s5887 = scalar_lea.sflag [#allocation4], %s5886
          %s5888 = sand.u32 %s297, 1
          %s5889 = smul.addr %s5888, 256
          %s5890 = scalar_lea.vmem [#allocation3], %s5889
          %5892 = dma.done %s5887, 4096
        $region80: #{tpu_custom_call.1} parent=75 // pred_fallthru
          _
      $region76: #{tpu_custom_call.1} parent=5 // pred_fallthru
        _
    $region6: #{tpu_custom_call.1} parent=1 // loop_footer
      %s25 = sadd.s32 1, %s21
    $region7: #{tpu_custom_call.1} parent=1 // loop_footer_branch
      %20 = sbr.rel target = $region3
    $region8: #{tpu_custom_call.1} parent=1 // loop_exit
      _
    %5893 = vsyncpa [#allocation4], 1
    %s5894 = scalar_lea.sflag [#allocation4], 1
    %5895 = vsyncpa %s5894, 1

</llo_original>
